<compile_context>
chip_gen: v7x
topology: tpu7x:2x2x1
jax: 0.10.0
libtpu: 0.0.40
codegen_flags: <defaults>
</compile_context>

<pallas_src>
import math

import jax
import jax.numpy as jnp
from jax.experimental import pallas as pl
from jax.experimental.pallas import tpu as pltpu

EMB = 256  # embedding_size in the PyTorch module


def _round_up(n, m):
    return (n + m - 1) // m * m


# --------------------------------------------------------------------------- #
# Kernel.  grid = (B // b_tile, Vp // v_tile)
#   axis 0 (batch): "parallel"  -- independent rows, megacore-shardable.
#   axis 1 (vocab): "arbitrary" -- encoder/LSTM computed once at j == 0 into a
#                                  VMEM scratch and reused for j > 0 (sequential
#                                  dependency along this axis).
# --------------------------------------------------------------------------- #
def _seq2seq_kernel(x_ref, w_enc_ref, b_enc_ref,
                    w_ih0_ref, b0_ref,
                    w_ih1_ref, b1_ref,
                    w_dec_ref, b_dec_ref,
                    out_ref, h1_ref):
    E = EMB
    j = pl.program_id(1)

    @pl.when(j == 0)
    def _():
        # ---- encode: Linear + Dropout(identity in eval) + ReLU ----
        x = x_ref[...]                                               # (Bt, Vp) bf16
        em = jnp.maximum(
            jnp.dot(x, w_enc_ref[...], preferred_element_type=jnp.float32)
            + b_enc_ref[...], 0.0)                                   # (Bt, E) f32

        # ---- 2-layer LSTM, seq_len = 1, zero initial (h, c) ----
        # With h_prev = c_prev = 0:  c = sigmoid(i)*tanh(g);  h = sigmoid(o)*tanh(c).
        # w_hh matmuls and the f gate are exactly dead; gate columns were
        # pre-sliced host-side to (i, g, o) and biases pre-summed (b_ih + b_hh).
        def lstm_cell(inp_f32, w_ih_ref, b_ref):
            gates = jnp.dot(inp_f32.astype(jnp.bfloat16), w_ih_ref[...],
                            preferred_element_type=jnp.float32) + b_ref[...]
            i_g = jax.nn.sigmoid(gates[:, 0:E])
            g_g = jnp.tanh(gates[:, E:2 * E])
            o_g = jax.nn.sigmoid(gates[:, 2 * E:3 * E])
            return o_g * jnp.tanh(i_g * g_g)

        h0 = lstm_cell(em, w_ih0_ref, b0_ref)
        h1_ref[...] = lstm_cell(h0, w_ih1_ref, b1_ref)               # (Bt, E) f32, persists over j

    # ---- decode (one output-V tile): Linear, then 2*(sigmoid(z)-0.5) == tanh(z/2) ----
    logits = jnp.dot(h1_ref[...].astype(jnp.bfloat16), w_dec_ref[...],
                     preferred_element_type=jnp.float32) + b_dec_ref[...]
    # tanh in f32 (portable: v5e has no bf16 EUP); bf16 store halves HBM writeback.
    out_ref[...] = jnp.tanh(0.5 * logits).astype(out_ref.dtype)


# --------------------------------------------------------------------------- #
# Wrapper
# --------------------------------------------------------------------------- #
def _vmem_limit_bytes(b_tile, v_padded, v_tile):
    """Conservative scoped-VMEM request: resident weights (assume double-buffered),
    double-buffered x/out tiles, h1 scratch, plus headroom for temporaries."""
    E, bf, f4 = EMB, 2, 4
    weights = (v_padded * E + 2 * E * 3 * E + E * v_tile) * bf
    biases = (E + 2 * 3 * E + v_tile) * f4
    io = 2 * (b_tile * v_padded + b_tile * v_tile) * bf
    scratch = b_tile * E * f4
    need = 2 * (weights + biases) + io + scratch
    need = int(need * 1.5) + (8 << 20)
    return min(max(need, 32 << 20), 64 << 20)   # never below default, never above v7x VMEM


def net_forward(x, kparams, *, b_tile=None, v_tile=None):
    B, V = x.shape
    w_enc = kparams[0]
    Vp = w_enc.shape[0]                     # onehot_num padded to a multiple of 128
    assert Vp % 128 == 0 and Vp >= V

    if b_tile is None:
        # >= 4 batch grid steps (DMA pipelining + both v7x TCs engaged), <= 256 rows.
        b_tile = min(256, max(8, B // 4))
    assert B % b_tile == 0 and b_tile % 8 == 0, "batch tile must divide B and be 8-aligned"

    if v_tile is None:
        v_tile = next(t for t in (512, 384, 256, 128) if t <= Vp and Vp % t == 0)
    assert Vp % v_tile == 0 and v_tile % 128 == 0, "bad v_tile"

    grid = (B // b_tile, Vp // v_tile)

    def build(single_buffer_weights):
        def wspec(shape):
            # Resident weights/biases: constant index_map; single-buffer when supported.
            if single_buffer_weights:
                return pl.BlockSpec(shape, lambda i, j: (0, 0),
                                    pipeline_mode=pl.Buffered(1))
            return pl.BlockSpec(shape, lambda i, j: (0, 0))

        in_specs = [
            pl.BlockSpec((b_tile, Vp), lambda i, j: (i, 0)),      # x      (bf16)
            wspec((Vp, EMB)),                                     # w_enc  (bf16)
            wspec((1, EMB)),                                      # b_enc  (f32)
            wspec((EMB, 3 * EMB)),                                # w_ih0  (bf16, i|g|o)
            wspec((1, 3 * EMB)),                                  # b0     (f32)
            wspec((EMB, 3 * EMB)),                                # w_ih1  (bf16, i|g|o)
            wspec((1, 3 * EMB)),                                  # b1     (f32)
            pl.BlockSpec((EMB, v_tile), lambda i, j: (0, j)),     # w_dec  (bf16)
            pl.BlockSpec((1, v_tile), lambda i, j: (0, j)),       # b_dec  (f32)
        ]
        return pl.pallas_call(
            _seq2seq_kernel,
            out_shape=jax.ShapeDtypeStruct((B, Vp), jnp.bfloat16),
            grid_spec=pltpu.PrefetchScalarGridSpec(
                num_scalar_prefetch=0,
                grid=grid,
                in_specs=in_specs,
                out_specs=pl.BlockSpec((b_tile, v_tile), lambda i, j: (i, j)),
                scratch_shapes=[pltpu.VMEM((b_tile, EMB), jnp.float32)],  # h1
            ),
            compiler_params=pltpu.CompilerParams(
                dimension_semantics=("parallel", "arbitrary"),
                vmem_limit_bytes=_vmem_limit_bytes(b_tile, Vp, v_tile)),
        )

    # Pad the feature axis to the lane-dense width and feed bf16 (halves x DMA bytes).
    x_pad = x if V == Vp else jnp.pad(x, ((0, 0), (0, Vp - V)))
    x_pad = x_pad.astype(jnp.bfloat16)

    try:
        out = jax.block_until_ready(build(True)(x_pad, *kparams))
    except Exception:
        # pipeline_mode=pl.Buffered(1) not supported on this jax/Mosaic version;
        # fall back to default double-buffered resident weights.
        out = build(False)(x_pad, *kparams)

    return out if V == Vp else out[:, :V]


# --------------------------------------------------------------------------- #
# Parameters (PyTorch-native layout) + host-side preparation for the kernel
# --------------------------------------------------------------------------- #
def init_torch_params(key, onehot, emb=EMB):
    """f32 parameters in PyTorch's native layout, U(-1/sqrt(fan_in), 1/sqrt(fan_in))."""
    ks = jax.random.split(key, 12)

    def u(k, shape, bound):
        return jax.random.uniform(k, shape, jnp.float32, -bound, bound)

    be = 1.0 / math.sqrt(onehot)
    bl = 1.0 / math.sqrt(emb)
    return dict(
        w_enc=u(ks[0], (emb, onehot), be), b_enc=u(ks[1], (emb,), be),
        w_ih0=u(ks[2], (4 * emb, emb), bl), w_hh0=u(ks[3], (4 * emb, emb), bl),
        b_ih0=u(ks[4], (4 * emb,), bl),     b_hh0=u(ks[5], (4 * emb,), bl),
        w_ih1=u(ks[6], (4 * emb, emb), bl), w_hh1=u(ks[7], (4 * emb, emb), bl),
        b_ih1=u(ks[8], (4 * emb,), bl),     b_hh1=u(ks[9], (4 * emb,), bl),
        w_dec=u(ks[10], (onehot, emb), bl), b_dec=u(ks[11], (onehot,), bl),
    )


def prepare_kernel_params(tp):
    """Transpose to (in, out), pad the vocab axis to a multiple of 128, drop dead
    w_hh / f-gate columns, pre-sum LSTM biases, cast weight matrices to bf16
    (biases stay f32)."""
    E = EMB
    V = tp["w_enc"].shape[1]
    pad_v = _round_up(V, 128) - V

    def igo_w(w_ih):   # (4E, E) rows ordered i,f,g,o  ->  (E, 3E) cols i|g|o, bf16
        w = jnp.concatenate([w_ih[0:E], w_ih[2 * E:3 * E], w_ih[3 * E:4 * E]], axis=0)
        return w.T.astype(jnp.bfloat16)

    def igo_b(b_ih, b_hh):
        b = b_ih + b_hh
        return jnp.concatenate([b[0:E], b[2 * E:3 * E], b[3 * E:4 * E]])[None, :]

    w_enc = jnp.pad(tp["w_enc"].T, ((0, pad_v), (0, 0))).astype(jnp.bfloat16)  # (Vp, E)
    w_dec = jnp.pad(tp["w_dec"].T, ((0, 0), (0, pad_v))).astype(jnp.bfloat16)  # (E, Vp)
    b_dec = jnp.pad(tp["b_dec"], ((0, pad_v),))[None, :]                        # (1, Vp) f32

    return (
        w_enc, tp["b_enc"][None, :],
        igo_w(tp["w_ih0"]), igo_b(tp["b_ih0"], tp["b_hh0"]),
        igo_w(tp["w_ih1"]), igo_b(tp["b_ih1"], tp["b_hh1"]),
        w_dec, b_dec,
    )


# --------------------------------------------------------------------------- #
# Pure-JAX reference: FULL PyTorch math (w_hh terms, f-gate, 2*(sigmoid-0.5)),
# using the same bf16 matmul-input precision as the kernel so the comparison is
# tight.  The h_prev @ w_hh and f * c_prev terms are exactly zero, which is what
# licenses the kernel's algebraic simplification.
# --------------------------------------------------------------------------- #
def ref_forward(x, tp):
    E = EMB

    def dot16(a, w):
        return jnp.dot(a.astype(jnp.bfloat16), w.astype(jnp.bfloat16),
                       preferred_element_type=jnp.float32)

    em = jnp.maximum(dot16(x, tp["w_enc"].T) + tp["b_enc"], 0.0)

    inp = em
    for layer in range(2):
        w_ih, w_hh = tp[f"w_ih{layer}"], tp[f"w_hh{layer}"]
        b = tp[f"b_ih{layer}"] + tp[f"b_hh{layer}"]
        h0 = jnp.zeros((x.shape[0], E), jnp.float32)
        c0 = jnp.zeros((x.shape[0], E), jnp.float32)
        gates = dot16(inp, w_ih.T) + dot16(h0, w_hh.T) + b
        i, f, g, o = jnp.split(gates, 4, axis=-1)
        c = jax.nn.sigmoid(f) * c0 + jax.nn.sigmoid(i) * jnp.tanh(g)
        inp = jax.nn.sigmoid(o) * jnp.tanh(c)

    logits = dot16(inp, tp["w_dec"].T) + tp["b_dec"]
    return 2.0 * (jax.nn.sigmoid(logits) - 0.5)


# --------------------------------------------------------------------------- #
if __name__ == "__main__":
    # onehot_num = 250 (deliberately NOT a multiple of 128) exercises the host-side
    # pad-to-256 + slice-off path; batch = 256 with default b_tile = 64 and
    # v_tile = 128 gives a (4, 2) grid: batch pipelining/megacore sharding plus
    # reuse of the LSTM scratch across two decoder-V tiles.
    B, V = 256, 250
    key = jax.random.PRNGKey(0)
    k_x, k_p = jax.random.split(key)

    x = jax.random.uniform(k_x, (B, V), jnp.float32)    # one-hot-ish input features
    tparams = init_torch_params(k_p, V)
    kparams = prepare_kernel_params(tparams)

    out = net_forward(x, kparams, v_tile=128)
    out = jax.block_until_ready(out)

    assert out.shape == (B, V) and out.dtype == jnp.bfloat16
    ref = ref_forward(x, tparams)
    max_err = float(jnp.max(jnp.abs(out.astype(jnp.float32) - ref)))
    assert max_err < 1.5e-2, f"kernel mismatch: {max_err}"

    # Note: nn.Dropout(0.5) layers are identity at inference time (eval mode).
    print("KERNEL_OK")
</pallas_src>

<mosaic_0001>
module attributes {stable_mosaic.version = 11 : i64} {
  func.func @_seq2seq_kernel(%arg0: i32, %arg1: i32, %arg2: memref<64x256xbf16, #tpu.memory_space<vmem>>, %arg3: memref<256x256xbf16, #tpu.memory_space<vmem>>, %arg4: memref<1x256xf32, #tpu.memory_space<vmem>>, %arg5: memref<256x768xbf16, #tpu.memory_space<vmem>>, %arg6: memref<1x768xf32, #tpu.memory_space<vmem>>, %arg7: memref<256x768xbf16, #tpu.memory_space<vmem>>, %arg8: memref<1x768xf32, #tpu.memory_space<vmem>>, %arg9: memref<256x128xbf16, #tpu.memory_space<vmem>>, %arg10: memref<1x128xf32, #tpu.memory_space<vmem>>, %arg11: memref<64x128xbf16, #tpu.memory_space<vmem>>, %arg12: memref<64x256xf32, #tpu.memory_space<vmem>>) attributes {dimension_semantics = [#tpu.dimension_semantics<parallel>, #tpu.dimension_semantics<arbitrary>], iteration_bounds = array<i64: 4, 2>, scalar_prefetch = 0 : i64, scratch_operands = 1 : i64, tpu.core_type = #tpu.core_type<tc>, window_params = [{transform_indices = @transform_0, window_bounds = array<i64: 64, 256>}, {pipeline_mode = #tpu.pipeline_mode<synchronous>, transform_indices = @transform_1, window_bounds = array<i64: 256, 256>}, {pipeline_mode = #tpu.pipeline_mode<synchronous>, transform_indices = @transform_2, window_bounds = array<i64: 1, 256>}, {pipeline_mode = #tpu.pipeline_mode<synchronous>, transform_indices = @transform_3, window_bounds = array<i64: 256, 768>}, {pipeline_mode = #tpu.pipeline_mode<synchronous>, transform_indices = @transform_4, window_bounds = array<i64: 1, 768>}, {pipeline_mode = #tpu.pipeline_mode<synchronous>, transform_indices = @transform_5, window_bounds = array<i64: 256, 768>}, {pipeline_mode = #tpu.pipeline_mode<synchronous>, transform_indices = @transform_6, window_bounds = array<i64: 1, 768>}, {transform_indices = @transform_7, window_bounds = array<i64: 256, 128>}, {transform_indices = @transform_8, window_bounds = array<i64: 1, 128>}, {transform_indices = @transform_9, window_bounds = array<i64: 64, 128>}]} {
    %c0_i32 = arith.constant 0 : i32
    %0 = arith.cmpi eq, %arg1, %c0_i32 : i32
    %1 = arith.extui %0 : i1 to i32
    %c0_i32_0 = arith.constant 0 : i32
    %2 = arith.cmpi ne, %1, %c0_i32_0 : i32
    scf.if %2 {
      %c0_9 = arith.constant 0 : index
      %c0_10 = arith.constant 0 : index
      %15 = vector.load %arg2[%c0_9, %c0_10] : memref<64x256xbf16, #tpu.memory_space<vmem>>, vector<64x256xbf16>
      %c0_11 = arith.constant 0 : index
      %c0_12 = arith.constant 0 : index
      %16 = vector.load %arg3[%c0_11, %c0_12] : memref<256x256xbf16, #tpu.memory_space<vmem>>, vector<256x256xbf16>
      %cst_13 = arith.constant dense<0.000000e+00> : vector<64x256xf32>
      %17 = tpu.matmul %15, %16, %cst_13 {dimension_numbers = #tpu.dot_dimension_numbers<[1], [0], [0], [1], [0, 0, 1, 1], [], []>} : vector<64x256xbf16>, vector<256x256xbf16>, vector<64x256xf32> -> vector<64x256xf32>
      %c0_14 = arith.constant 0 : index
      %c0_15 = arith.constant 0 : index
      %18 = vector.load %arg4[%c0_14, %c0_15] : memref<1x256xf32, #tpu.memory_space<vmem>>, vector<1x256xf32>
      %19 = vector.broadcast %18 : vector<1x256xf32> to vector<64x256xf32>
      %20 = arith.addf %17, %19 : vector<64x256xf32>
      %cst_16 = arith.constant 0.000000e+00 : f32
      %21 = vector.broadcast %cst_16 : f32 to vector<64x256xf32>
      %22 = arith.maximumf %20, %21 : vector<64x256xf32>
      %23 = arith.truncf %22 : vector<64x256xf32> to vector<64x256xbf16>
      %c0_17 = arith.constant 0 : index
      %c0_18 = arith.constant 0 : index
      %24 = vector.load %arg5[%c0_17, %c0_18] : memref<256x768xbf16, #tpu.memory_space<vmem>>, vector<256x768xbf16>
      %cst_19 = arith.constant dense<0.000000e+00> : vector<64x768xf32>
      %25 = tpu.matmul %23, %24, %cst_19 {dimension_numbers = #tpu.dot_dimension_numbers<[1], [0], [0], [1], [0, 0, 1, 1], [], []>} : vector<64x256xbf16>, vector<256x768xbf16>, vector<64x768xf32> -> vector<64x768xf32>
      %c0_20 = arith.constant 0 : index
      %c0_21 = arith.constant 0 : index
      %26 = vector.load %arg6[%c0_20, %c0_21] : memref<1x768xf32, #tpu.memory_space<vmem>>, vector<1x768xf32>
      %27 = vector.broadcast %26 : vector<1x768xf32> to vector<64x768xf32>
      %28 = arith.addf %25, %27 : vector<64x768xf32>
      %29 = vector.extract_strided_slice %28 {offsets = [0, 0], sizes = [64, 256], strides = [1, 1]} : vector<64x768xf32> to vector<64x256xf32>
      %30 = arith.negf %29 : vector<64x256xf32>
      %31 = math.exp %30 : vector<64x256xf32>
      %cst_22 = arith.constant 1.000000e+00 : f32
      %32 = vector.broadcast %cst_22 : f32 to vector<64x256xf32>
      %33 = arith.addf %32, %31 : vector<64x256xf32>
      %34 = arith.divf %32, %33 : vector<64x256xf32>
      %35 = vector.extract_strided_slice %28 {offsets = [0, 256], sizes = [64, 256], strides = [1, 1]} : vector<64x768xf32> to vector<64x256xf32>
      %36 = math.tanh %35 : vector<64x256xf32>
      %37 = vector.extract_strided_slice %28 {offsets = [0, 512], sizes = [64, 256], strides = [1, 1]} : vector<64x768xf32> to vector<64x256xf32>
      %38 = arith.negf %37 : vector<64x256xf32>
      %39 = math.exp %38 : vector<64x256xf32>
      %cst_23 = arith.constant 1.000000e+00 : f32
      %40 = vector.broadcast %cst_23 : f32 to vector<64x256xf32>
      %41 = arith.addf %40, %39 : vector<64x256xf32>
      %42 = arith.divf %40, %41 : vector<64x256xf32>
      %43 = arith.mulf %34, %36 : vector<64x256xf32>
      %44 = math.tanh %43 : vector<64x256xf32>
      %45 = arith.mulf %42, %44 : vector<64x256xf32>
      %46 = arith.truncf %45 : vector<64x256xf32> to vector<64x256xbf16>
      %c0_24 = arith.constant 0 : index
      %c0_25 = arith.constant 0 : index
      %47 = vector.load %arg7[%c0_24, %c0_25] : memref<256x768xbf16, #tpu.memory_space<vmem>>, vector<256x768xbf16>
      %cst_26 = arith.constant dense<0.000000e+00> : vector<64x768xf32>
      %48 = tpu.matmul %46, %47, %cst_26 {dimension_numbers = #tpu.dot_dimension_numbers<[1], [0], [0], [1], [0, 0, 1, 1], [], []>} : vector<64x256xbf16>, vector<256x768xbf16>, vector<64x768xf32> -> vector<64x768xf32>
      %c0_27 = arith.constant 0 : index
      %c0_28 = arith.constant 0 : index
      %49 = vector.load %arg8[%c0_27, %c0_28] : memref<1x768xf32, #tpu.memory_space<vmem>>, vector<1x768xf32>
      %50 = vector.broadcast %49 : vector<1x768xf32> to vector<64x768xf32>
      %51 = arith.addf %48, %50 : vector<64x768xf32>
      %52 = vector.extract_strided_slice %51 {offsets = [0, 0], sizes = [64, 256], strides = [1, 1]} : vector<64x768xf32> to vector<64x256xf32>
      %53 = arith.negf %52 : vector<64x256xf32>
      %54 = math.exp %53 : vector<64x256xf32>
      %cst_29 = arith.constant 1.000000e+00 : f32
      %55 = vector.broadcast %cst_29 : f32 to vector<64x256xf32>
      %56 = arith.addf %55, %54 : vector<64x256xf32>
      %57 = arith.divf %55, %56 : vector<64x256xf32>
      %58 = vector.extract_strided_slice %51 {offsets = [0, 256], sizes = [64, 256], strides = [1, 1]} : vector<64x768xf32> to vector<64x256xf32>
      %59 = math.tanh %58 : vector<64x256xf32>
      %60 = vector.extract_strided_slice %51 {offsets = [0, 512], sizes = [64, 256], strides = [1, 1]} : vector<64x768xf32> to vector<64x256xf32>
      %61 = arith.negf %60 : vector<64x256xf32>
      %62 = math.exp %61 : vector<64x256xf32>
      %cst_30 = arith.constant 1.000000e+00 : f32
      %63 = vector.broadcast %cst_30 : f32 to vector<64x256xf32>
      %64 = arith.addf %63, %62 : vector<64x256xf32>
      %65 = arith.divf %63, %64 : vector<64x256xf32>
      %66 = arith.mulf %57, %59 : vector<64x256xf32>
      %67 = math.tanh %66 : vector<64x256xf32>
      %68 = arith.mulf %65, %67 : vector<64x256xf32>
      %c0_31 = arith.constant 0 : index
      %c0_32 = arith.constant 0 : index
      %69 = vector.load %arg12[%c0_31, %c0_32] : memref<64x256xf32, #tpu.memory_space<vmem>>, vector<64x256xf32>
      tpu.vector_store %arg12[%c0_31, %c0_32], %68 {strides = array<i32>} : memref<64x256xf32, #tpu.memory_space<vmem>>, vector<64x256xf32>,
    } else {
    }
    %c0 = arith.constant 0 : index
    %c0_1 = arith.constant 0 : index
    %3 = vector.load %arg12[%c0, %c0_1] : memref<64x256xf32, #tpu.memory_space<vmem>>, vector<64x256xf32>
    %4 = arith.truncf %3 : vector<64x256xf32> to vector<64x256xbf16>
    %c0_2 = arith.constant 0 : index
    %c0_3 = arith.constant 0 : index
    %5 = vector.load %arg9[%c0_2, %c0_3] : memref<256x128xbf16, #tpu.memory_space<vmem>>, vector<256x128xbf16>
    %cst = arith.constant dense<0.000000e+00> : vector<64x128xf32>
    %6 = tpu.matmul %4, %5, %cst {dimension_numbers = #tpu.dot_dimension_numbers<[1], [0], [0], [1], [0, 0, 1, 1], [], []>} : vector<64x256xbf16>, vector<256x128xbf16>, vector<64x128xf32> -> vector<64x128xf32>
    %c0_4 = arith.constant 0 : index
    %c0_5 = arith.constant 0 : index
    %7 = vector.load %arg10[%c0_4, %c0_5] : memref<1x128xf32, #tpu.memory_space<vmem>>, vector<1x128xf32>
    %8 = vector.broadcast %7 : vector<1x128xf32> to vector<64x128xf32>
    %9 = arith.addf %6, %8 : vector<64x128xf32>
    %cst_6 = arith.constant 5.000000e-01 : f32
    %10 = vector.broadcast %cst_6 : f32 to vector<64x128xf32>
    %11 = arith.mulf %10, %9 : vector<64x128xf32>
    %12 = math.tanh %11 : vector<64x128xf32>
    %13 = arith.truncf %12 : vector<64x128xf32> to vector<64x128xbf16>
    %c0_7 = arith.constant 0 : index
    %c0_8 = arith.constant 0 : index
    %14 = vector.load %arg11[%c0_7, %c0_8] : memref<64x128xbf16, #tpu.memory_space<vmem>>, vector<64x128xbf16>
    tpu.vector_store %arg11[%c0_7, %c0_8], %13 {strides = array<i32>} : memref<64x128xbf16, #tpu.memory_space<vmem>>, vector<64x128xbf16>,
    return
  }
  func.func @transform_0(%arg0: i32, %arg1: i32) -> (i32, i32) {
    %c0_i32 = arith.constant 0 : i32
    %c0_i32_0 = arith.constant 0 : i32
    return %arg0, %c0_i32 : i32, i32
  }
  func.func @transform_1(%arg0: i32, %arg1: i32) -> (i32, i32) {
    %c0_i32 = arith.constant 0 : i32
    %c0_i32_0 = arith.constant 0 : i32
    %c0_i32_1 = arith.constant 0 : i32
    return %c0_i32, %c0_i32_0 : i32, i32
  }
  func.func @transform_2(%arg0: i32, %arg1: i32) -> (i32, i32) {
    %c0_i32 = arith.constant 0 : i32
    %c0_i32_0 = arith.constant 0 : i32
    %c0_i32_1 = arith.constant 0 : i32
    return %c0_i32, %c0_i32_0 : i32, i32
  }
  func.func @transform_3(%arg0: i32, %arg1: i32) -> (i32, i32) {
    %c0_i32 = arith.constant 0 : i32
    %c0_i32_0 = arith.constant 0 : i32
    %c0_i32_1 = arith.constant 0 : i32
    return %c0_i32, %c0_i32_0 : i32, i32
  }
  func.func @transform_4(%arg0: i32, %arg1: i32) -> (i32, i32) {
    %c0_i32 = arith.constant 0 : i32
    %c0_i32_0 = arith.constant 0 : i32
    %c0_i32_1 = arith.constant 0 : i32
    return %c0_i32, %c0_i32_0 : i32, i32
  }
  func.func @transform_5(%arg0: i32, %arg1: i32) -> (i32, i32) {
    %c0_i32 = arith.constant 0 : i32
    %c0_i32_0 = arith.constant 0 : i32
    %c0_i32_1 = arith.constant 0 : i32
    return %c0_i32, %c0_i32_0 : i32, i32
  }
  func.func @transform_6(%arg0: i32, %arg1: i32) -> (i32, i32) {
    %c0_i32 = arith.constant 0 : i32
    %c0_i32_0 = arith.constant 0 : i32
    %c0_i32_1 = arith.constant 0 : i32
    return %c0_i32, %c0_i32_0 : i32, i32
  }
  func.func @transform_7(%arg0: i32, %arg1: i32) -> (i32, i32) {
    %c0_i32 = arith.constant 0 : i32
    %c0_i32_0 = arith.constant 0 : i32
    return %c0_i32, %arg1 : i32, i32
  }
  func.func @transform_8(%arg0: i32, %arg1: i32) -> (i32, i32) {
    %c0_i32 = arith.constant 0 : i32
    %c0_i32_0 = arith.constant 0 : i32
    return %c0_i32, %arg1 : i32, i32
  }
  func.func @transform_9(%arg0: i32, %arg1: i32) -> (i32, i32) {
    %c0_i32 = arith.constant 0 : i32
    return %arg0, %arg1 : i32, i32
  }
}

module attributes {stable_mosaic.version = 11 : i64} {
  func.func @_seq2seq_kernel(%arg0: i32, %arg1: i32, %arg2: memref<64x256xbf16, #tpu.memory_space<vmem>>, %arg3: memref<256x256xbf16, #tpu.memory_space<vmem>>, %arg4: memref<1x256xf32, #tpu.memory_space<vmem>>, %arg5: memref<256x768xbf16, #tpu.memory_space<vmem>>, %arg6: memref<1x768xf32, #tpu.memory_space<vmem>>, %arg7: memref<256x768xbf16, #tpu.memory_space<vmem>>, %arg8: memref<1x768xf32, #tpu.memory_space<vmem>>, %arg9: memref<256x128xbf16, #tpu.memory_space<vmem>>, %arg10: memref<1x128xf32, #tpu.memory_space<vmem>>, %arg11: memref<64x128xbf16, #tpu.memory_space<vmem>>, %arg12: memref<64x256xf32, #tpu.memory_space<vmem>>) attributes {dimension_semantics = [#tpu.dimension_semantics<parallel>, #tpu.dimension_semantics<arbitrary>], iteration_bounds = array<i64: 4, 2>, scalar_prefetch = 0 : i64, scratch_operands = 1 : i64, tpu.core_type = #tpu.core_type<tc>, window_params = [{transform_indices = @transform_0, window_bounds = array<i64: 64, 256>}, {pipeline_mode = #tpu.pipeline_mode<synchronous>, transform_indices = @transform_1, window_bounds = array<i64: 256, 256>}, {pipeline_mode = #tpu.pipeline_mode<synchronous>, transform_indices = @transform_2, window_bounds = array<i64: 1, 256>}, {pipeline_mode = #tpu.pipeline_mode<synchronous>, transform_indices = @transform_3, window_bounds = array<i64: 256, 768>}, {pipeline_mode = #tpu.pipeline_mode<synchronous>, transform_indices = @transform_4, window_bounds = array<i64: 1, 768>}, {pipeline_mode = #tpu.pipeline_mode<synchronous>, transform_indices = @transform_5, window_bounds = array<i64: 256, 768>}, {pipeline_mode = #tpu.pipeline_mode<synchronous>, transform_indices = @transform_6, window_bounds = array<i64: 1, 768>}, {transform_indices = @transform_7, window_bounds = array<i64: 256, 128>}, {transform_indices = @transform_8, window_bounds = array<i64: 1, 128>}, {transform_indices = @transform_9, window_bounds = array<i64: 64, 128>}]} {
    %c0_i32 = arith.constant 0 : i32
    %0 = arith.cmpi eq, %arg1, %c0_i32 : i32
    %1 = arith.extui %0 : i1 to i32
    %c0_i32_0 = arith.constant 0 : i32
    %2 = arith.cmpi ne, %1, %c0_i32_0 : i32
    scf.if %2 {
      %c0_9 = arith.constant 0 : index
      %c0_10 = arith.constant 0 : index
      %15 = vector.load %arg2[%c0_9, %c0_10] : memref<64x256xbf16, #tpu.memory_space<vmem>>, vector<64x256xbf16>
      %c0_11 = arith.constant 0 : index
      %c0_12 = arith.constant 0 : index
      %16 = vector.load %arg3[%c0_11, %c0_12] : memref<256x256xbf16, #tpu.memory_space<vmem>>, vector<256x256xbf16>
      %cst_13 = arith.constant dense<0.000000e+00> : vector<64x256xf32>
      %17 = tpu.matmul %15, %16, %cst_13 {dimension_numbers = #tpu.dot_dimension_numbers<[1], [0], [0], [1], [0, 0, 1, 1], [], []>} : vector<64x256xbf16>, vector<256x256xbf16>, vector<64x256xf32> -> vector<64x256xf32>
      %c0_14 = arith.constant 0 : index
      %c0_15 = arith.constant 0 : index
      %18 = vector.load %arg4[%c0_14, %c0_15] : memref<1x256xf32, #tpu.memory_space<vmem>>, vector<1x256xf32>
      %19 = vector.broadcast %18 : vector<1x256xf32> to vector<64x256xf32>
      %20 = arith.addf %17, %19 : vector<64x256xf32>
      %cst_16 = arith.constant 0.000000e+00 : f32
      %21 = vector.broadcast %cst_16 : f32 to vector<64x256xf32>
      %22 = arith.maximumf %20, %21 : vector<64x256xf32>
      %23 = arith.truncf %22 : vector<64x256xf32> to vector<64x256xbf16>
      %c0_17 = arith.constant 0 : index
      %c0_18 = arith.constant 0 : index
      %24 = vector.load %arg5[%c0_17, %c0_18] : memref<256x768xbf16, #tpu.memory_space<vmem>>, vector<256x768xbf16>
      %cst_19 = arith.constant dense<0.000000e+00> : vector<64x768xf32>
      %25 = tpu.matmul %23, %24, %cst_19 {dimension_numbers = #tpu.dot_dimension_numbers<[1], [0], [0], [1], [0, 0, 1, 1], [], []>} : vector<64x256xbf16>, vector<256x768xbf16>, vector<64x768xf32> -> vector<64x768xf32>
      %c0_20 = arith.constant 0 : index
      %c0_21 = arith.constant 0 : index
      %26 = vector.load %arg6[%c0_20, %c0_21] : memref<1x768xf32, #tpu.memory_space<vmem>>, vector<1x768xf32>
      %27 = vector.broadcast %26 : vector<1x768xf32> to vector<64x768xf32>
      %28 = arith.addf %25, %27 : vector<64x768xf32>
      %29 = vector.extract_strided_slice %28 {offsets = [0, 0], sizes = [64, 256], strides = [1, 1]} : vector<64x768xf32> to vector<64x256xf32>
      %30 = arith.negf %29 : vector<64x256xf32>
      %31 = math.exp %30 : vector<64x256xf32>
      %cst_22 = arith.constant 1.000000e+00 : f32
      %32 = vector.broadcast %cst_22 : f32 to vector<64x256xf32>
      %33 = arith.addf %32, %31 : vector<64x256xf32>
      %34 = arith.divf %32, %33 : vector<64x256xf32>
      %35 = vector.extract_strided_slice %28 {offsets = [0, 256], sizes = [64, 256], strides = [1, 1]} : vector<64x768xf32> to vector<64x256xf32>
      %36 = math.tanh %35 : vector<64x256xf32>
      %37 = vector.extract_strided_slice %28 {offsets = [0, 512], sizes = [64, 256], strides = [1, 1]} : vector<64x768xf32> to vector<64x256xf32>
      %38 = arith.negf %37 : vector<64x256xf32>
      %39 = math.exp %38 : vector<64x256xf32>
      %cst_23 = arith.constant 1.000000e+00 : f32
      %40 = vector.broadcast %cst_23 : f32 to vector<64x256xf32>
      %41 = arith.addf %40, %39 : vector<64x256xf32>
      %42 = arith.divf %40, %41 : vector<64x256xf32>
      %43 = arith.mulf %34, %36 : vector<64x256xf32>
      %44 = math.tanh %43 : vector<64x256xf32>
      %45 = arith.mulf %42, %44 : vector<64x256xf32>
      %46 = arith.truncf %45 : vector<64x256xf32> to vector<64x256xbf16>
      %c0_24 = arith.constant 0 : index
      %c0_25 = arith.constant 0 : index
      %47 = vector.load %arg7[%c0_24, %c0_25] : memref<256x768xbf16, #tpu.memory_space<vmem>>, vector<256x768xbf16>
      %cst_26 = arith.constant dense<0.000000e+00> : vector<64x768xf32>
      %48 = tpu.matmul %46, %47, %cst_26 {dimension_numbers = #tpu.dot_dimension_numbers<[1], [0], [0], [1], [0, 0, 1, 1], [], []>} : vector<64x256xbf16>, vector<256x768xbf16>, vector<64x768xf32> -> vector<64x768xf32>
      %c0_27 = arith.constant 0 : index
      %c0_28 = arith.constant 0 : index
      %49 = vector.load %arg8[%c0_27, %c0_28] : memref<1x768xf32, #tpu.memory_space<vmem>>, vector<1x768xf32>
      %50 = vector.broadcast %49 : vector<1x768xf32> to vector<64x768xf32>
      %51 = arith.addf %48, %50 : vector<64x768xf32>
      %52 = vector.extract_strided_slice %51 {offsets = [0, 0], sizes = [64, 256], strides = [1, 1]} : vector<64x768xf32> to vector<64x256xf32>
      %53 = arith.negf %52 : vector<64x256xf32>
      %54 = math.exp %53 : vector<64x256xf32>
      %cst_29 = arith.constant 1.000000e+00 : f32
      %55 = vector.broadcast %cst_29 : f32 to vector<64x256xf32>
      %56 = arith.addf %55, %54 : vector<64x256xf32>
      %57 = arith.divf %55, %56 : vector<64x256xf32>
      %58 = vector.extract_strided_slice %51 {offsets = [0, 256], sizes = [64, 256], strides = [1, 1]} : vector<64x768xf32> to vector<64x256xf32>
      %59 = math.tanh %58 : vector<64x256xf32>
      %60 = vector.extract_strided_slice %51 {offsets = [0, 512], sizes = [64, 256], strides = [1, 1]} : vector<64x768xf32> to vector<64x256xf32>
      %61 = arith.negf %60 : vector<64x256xf32>
      %62 = math.exp %61 : vector<64x256xf32>
      %cst_30 = arith.constant 1.000000e+00 : f32
      %63 = vector.broadcast %cst_30 : f32 to vector<64x256xf32>
      %64 = arith.addf %63, %62 : vector<64x256xf32>
      %65 = arith.divf %63, %64 : vector<64x256xf32>
      %66 = arith.mulf %57, %59 : vector<64x256xf32>
      %67 = math.tanh %66 : vector<64x256xf32>
      %68 = arith.mulf %65, %67 : vector<64x256xf32>
      %c0_31 = arith.constant 0 : index
      %c0_32 = arith.constant 0 : index
      %69 = vector.load %arg12[%c0_31, %c0_32] : memref<64x256xf32, #tpu.memory_space<vmem>>, vector<64x256xf32>
      tpu.vector_store %arg12[%c0_31, %c0_32], %68 {strides = array<i32>} : memref<64x256xf32, #tpu.memory_space<vmem>>, vector<64x256xf32>,
    } else {
    }
    %c0 = arith.constant 0 : index
    %c0_1 = arith.constant 0 : index
    %3 = vector.load %arg12[%c0, %c0_1] : memref<64x256xf32, #tpu.memory_space<vmem>>, vector<64x256xf32>
    %4 = arith.truncf %3 : vector<64x256xf32> to vector<64x256xbf16>
    %c0_2 = arith.constant 0 : index
    %c0_3 = arith.constant 0 : index
    %5 = vector.load %arg9[%c0_2, %c0_3] : memref<256x128xbf16, #tpu.memory_space<vmem>>, vector<256x128xbf16>
    %cst = arith.constant dense<0.000000e+00> : vector<64x128xf32>
    %6 = tpu.matmul %4, %5, %cst {dimension_numbers = #tpu.dot_dimension_numbers<[1], [0], [0], [1], [0, 0, 1, 1], [], []>} : vector<64x256xbf16>, vector<256x128xbf16>, vector<64x128xf32> -> vector<64x128xf32>
    %c0_4 = arith.constant 0 : index
    %c0_5 = arith.constant 0 : index
    %7 = vector.load %arg10[%c0_4, %c0_5] : memref<1x128xf32, #tpu.memory_space<vmem>>, vector<1x128xf32>
    %8 = vector.broadcast %7 : vector<1x128xf32> to vector<64x128xf32>
    %9 = arith.addf %6, %8 : vector<64x128xf32>
    %cst_6 = arith.constant 5.000000e-01 : f32
    %10 = vector.broadcast %cst_6 : f32 to vector<64x128xf32>
    %11 = arith.mulf %10, %9 : vector<64x128xf32>
    %12 = math.tanh %11 : vector<64x128xf32>
    %13 = arith.truncf %12 : vector<64x128xf32> to vector<64x128xbf16>
    %c0_7 = arith.constant 0 : index
    %c0_8 = arith.constant 0 : index
    %14 = vector.load %arg11[%c0_7, %c0_8] : memref<64x128xbf16, #tpu.memory_space<vmem>>, vector<64x128xbf16>
    tpu.vector_store %arg11[%c0_7, %c0_8], %13 {strides = array<i32>} : memref<64x128xbf16, #tpu.memory_space<vmem>>, vector<64x128xbf16>,
    return
  }
  func.func @transform_0(%arg0: i32, %arg1: i32) -> (i32, i32) {
    %c0_i32 = arith.constant 0 : i32
    %c0_i32_0 = arith.constant 0 : i32
    return %arg0, %c0_i32 : i32, i32
  }
  func.func @transform_1(%arg0: i32, %arg1: i32) -> (i32, i32) {
    %c0_i32 = arith.constant 0 : i32
    %c0_i32_0 = arith.constant 0 : i32
    %c0_i32_1 = arith.constant 0 : i32
    return %c0_i32, %c0_i32_0 : i32, i32
  }
  func.func @transform_2(%arg0: i32, %arg1: i32) -> (i32, i32) {
    %c0_i32 = arith.constant 0 : i32
    %c0_i32_0 = arith.constant 0 : i32
    %c0_i32_1 = arith.constant 0 : i32
    return %c0_i32, %c0_i32_0 : i32, i32
  }
  func.func @transform_3(%arg0: i32, %arg1: i32) -> (i32, i32) {
    %c0_i32 = arith.constant 0 : i32
    %c0_i32_0 = arith.constant 0 : i32
    %c0_i32_1 = arith.constant 0 : i32
    return %c0_i32, %c0_i32_0 : i32, i32
  }
  func.func @transform_4(%arg0: i32, %arg1: i32) -> (i32, i32) {
    %c0_i32 = arith.constant 0 : i32
    %c0_i32_0 = arith.constant 0 : i32
    %c0_i32_1 = arith.constant 0 : i32
    return %c0_i32, %c0_i32_0 : i32, i32
  }
  func.func @transform_5(%arg0: i32, %arg1: i32) -> (i32, i32) {
    %c0_i32 = arith.constant 0 : i32
    %c0_i32_0 = arith.constant 0 : i32
    %c0_i32_1 = arith.constant 0 : i32
    return %c0_i32, %c0_i32_0 : i32, i32
  }
  func.func @transform_6(%arg0: i32, %arg1: i32) -> (i32, i32) {
    %c0_i32 = arith.constant 0 : i32
    %c0_i32_0 = arith.constant 0 : i32
    %c0_i32_1 = arith.constant 0 : i32
    return %c0_i32, %c0_i32_0 : i32, i32
  }
  func.func @transform_7(%arg0: i32, %arg1: i32) -> (i32, i32) {
    %c0_i32 = arith.constant 0 : i32
    %c0_i32_0 = arith.constant 0 : i32
    return %c0_i32, %arg1 : i32, i32
  }
  func.func @transform_8(%arg0: i32, %arg1: i32) -> (i32, i32) {
    %c0_i32 = arith.constant 0 : i32
    %c0_i32_0 = arith.constant 0 : i32
    return %c0_i32, %arg1 : i32, i32
  }
  func.func @transform_9(%arg0: i32, %arg1: i32) -> (i32, i32) {
    %c0_i32 = arith.constant 0 : i32
    return %arg0, %arg1 : i32, i32
  }
}

</mosaic_0001>

<llo_original>
// kernel: tpu_custom_call.1
$region0: #{tpu_custom_call.1}
  #allocation0 [shape = 'u32[]', space=smem, size = 0x4, offset = 0x4, fixed_abs, tag = 'smem constant byte address 0x4 - core index']
  #allocation1 [shape = 'u32[144,128]{1,0:T(1,128)}', space=vmem, size = 0x12000, scoped, tag = 'internal scratch']
  #allocation2 [shape = 'f32[64,256]{1,0:T(8,128)}', space=vmem, size = 0x10000, scoped, tag = 'scratch operand']
  %s0 = inlined_call_operand.hbm [shape: bf16[256,256], index: 0, kind: input, shape index: {}]
  %s1 = inlined_call_operand.hbm [shape: bf16[256,256], index: 1, kind: input, shape index: {}]
  %s2 = inlined_call_operand.vmem [shape: f32[1,256], index: 2, kind: input, shape index: {}]
  %s3 = inlined_call_operand.hbm [shape: bf16[256,768], index: 3, kind: input, shape index: {}]
  %s4 = inlined_call_operand.vmem [shape: f32[1,768], index: 4, kind: input, shape index: {}]
  %s5 = inlined_call_operand.hbm [shape: bf16[256,768], index: 5, kind: input, shape index: {}]
  %s6 = inlined_call_operand.vmem [shape: f32[1,768], index: 6, kind: input, shape index: {}]
  %s7 = inlined_call_operand.hbm [shape: bf16[256,256], index: 7, kind: input, shape index: {}]
  %s8 = inlined_call_operand.vmem [shape: f32[1,256], index: 8, kind: input, shape index: {}]
  %s9 = inlined_call_operand.hbm [shape: bf16[256,256], index: 9, kind: output, shape index: {}]
  %s10 = sld [smem:[#allocation0]]
  $region93: #{tpu_custom_call.1} parent=0
    _
  %s12 = ssub.s32 1, %s10
  %s13 = scalar_select 0, %s12, %s10
  $region1: #{tpu_custom_call.1} parent=0
    #allocation3 [shape = 'u8[65536]{0}', space=vmem, size = 0x10000, scoped, tag = 'input window, operand 0']
    #allocation4 [shape = 's32[2]{0}', space=sflag, size = 0x8, scoped, tag = 'scoped memory for tpu_custom_call.1']
    #allocation5 [shape = 's32[2]{0}', space=sflag, size = 0x8, scoped, tag = 'scoped memory for tpu_custom_call.1']
    #allocation6 [shape = 'u8[131072]{0}', space=vmem, size = 0x20000, scoped, tag = 'input window, operand 1, single buffered']
    #allocation7 [shape = 's32[1]{0}', space=sflag, size = 0x4, scoped, tag = 'scoped memory for tpu_custom_call.1']
    #allocation8 [shape = 'u8[393216]{0}', space=vmem, size = 0x60000, scoped, tag = 'input window, operand 3, single buffered']
    #allocation9 [shape = 'u8[393216]{0}', space=vmem, size = 0x60000, scoped, tag = 'input window, operand 5, single buffered']
    #allocation10 [shape = 's32[1]{0}', space=sflag, size = 0x4, scoped, tag = 'scoped memory for tpu_custom_call.1']
    #allocation11 [shape = 'u8[131072]{0}', space=vmem, size = 0x20000, scoped, tag = 'input window, operand 7']
    #allocation12 [shape = 'u8[32768]{0}', space=vmem, size = 0x8000, scoped, tag = 'output window, operand 0']
    %14 = vsyncpa [#allocation4], 0
    %s15 = scalar_lea.sflag [#allocation4], 1
    %16 = vsyncpa %s15, 0
    %17 = vsyncpa [#allocation7], 0
    %18 = vsyncpa [#allocation10], 0
    %19 = vsyncpa [#allocation5], 0
    %s20 = scalar_lea.sflag [#allocation5], 1
    %21 = vsyncpa %s20, 0
    loop: start=0, step=1, limit=10
    $region2: #{tpu_custom_call.1} parent=1 // loop_pre_header
      _
    $region3: #{tpu_custom_call.1} parent=1 // loop_header
      %s23 = sphi 0, %s27
      %p24 = scmp.ge.s32.totalorder %s23, 10
      %s30 = sphi 0, %s42
      %s31 = sphi 0, %s38
      %s32 = sphi 0, %s30
      %s33 = sphi 0, %s31
      %s34 = sphi 0, %s32
      %s35 = sphi 0, %s33
      %s45 = sphi 0, %s47
      %s48 = sphi 0, %s45
      %s49 = sphi 0, %s48
      %s65 = sphi 0, %s49
      %s69 = sphi 0, %s69
      %s71 = sphi 0, %s69
      %s72 = sphi 0, %s71
      %s86 = sphi 0, %s72
      %s90 = sphi 0, %s90
      %s92 = sphi 0, %s90
      %s93 = sphi 0, %s92
      %s107 = sphi 0, %s93
      %s111 = sphi 0, %s111
      %s113 = sphi 0, %s111
      %s114 = sphi 0, %s113
      %s128 = sphi 0, %s114
      %s132 = sphi 0, %s132
      %s134 = sphi 0, %s132
      %s135 = sphi 0, %s134
      %s149 = sphi 0, %s135
      %s153 = sphi 0, %s153
      %s155 = sphi 0, %s153
      %s156 = sphi 0, %s155
      %s170 = sphi 0, %s156
      %s174 = sphi 0, %s174
      %s176 = sphi 0, %s174
      %s177 = sphi 0, %s176
      %s191 = sphi 0, %s177
      %s197 = sphi 0, %s199
      %s200 = sphi 0, %s197
      %s201 = sphi 0, %s200
      %s217 = sphi 0, %s201
      %s223 = sphi 0, %s225
      %s226 = sphi 0, %s223
      %s227 = sphi 0, %s226
      %s243 = sphi 0, %s227
      %s251 = sphi 0, %s253
      %s254 = sphi 0, %s251
      %s255 = sphi 0, %s254
      %s271 = sphi 0, %s255
    $region4: #{tpu_custom_call.1} parent=1 // loop_header_branch
      %26 = sbr.rel (%p24) target = $region8
    $region5: #{tpu_custom_call.1} parent=1 // loop_body
      %s28 = ssub.s32 %s23, 1
      %s29 = ssub.s32 %s23, 2
      %s36 = sadd.s32 1, %s31
      %p37 = scmp.ge.s32.totalorder %s36, 2
      %s38 = scalar_select %p37, 0, %s36
      %s39 = sadd.s32 1, %s30
      %s40 = scalar_select %p37, %s39, %s30
      %p41 = scmp.ge.s32.totalorder %s40, 4
      %s42 = scalar_select %p41, 0, %s40
      %s43 = ssub.s32 %s30, %s42
      %p44 = scmp.eq.s32.totalorder %s43, 0
      %s46 = sadd.s32 %s45, 1
      %s47 = scalar_select %p44, %s45, %s46
      %p50 = pneg %p44
      %p51 = scmp.eq.s32.totalorder %s23, 7
      %p52 = por %p50, %p51
      %p53 = scmp.ne.s32.totalorder %s45, %s48
      %p54 = scmp.eq.s32.totalorder %s23, 0
      %p55 = por %p53, %p54
      %p56 = scmp.ne.s32.totalorder %s45, %s48
      %p57 = scmp.eq.s32.totalorder %s28, 7
      %p58 = por %p56, %p57
      %p59 = scmp.ne.s32.totalorder %s48, %s49
      %p60 = scmp.eq.s32.totalorder %s28, 0
      %p61 = por %p59, %p60
      %p62 = scmp.ne.s32.totalorder %s48, %s49
      %p63 = scmp.eq.s32.totalorder %s29, 7
      %p64 = por %p62, %p63
      %p66 = scmp.ne.s32.totalorder %s49, %s65
      %p67 = scmp.eq.s32.totalorder %s29, 0
      %p68 = por %p66, %p67
      %s70 = sadd.s32 %s69, 1
      %p73 = scmp.eq.s32.totalorder %s23, 7
      %p74 = scmp.ne.s32.totalorder %s69, %s71
      %p75 = scmp.eq.s32.totalorder %s23, 0
      %p76 = por %p74, %p75
      %p77 = scmp.ne.s32.totalorder %s69, %s71
      %p78 = scmp.eq.s32.totalorder %s28, 7
      %p79 = por %p77, %p78
      %p80 = scmp.ne.s32.totalorder %s71, %s72
      %p81 = scmp.eq.s32.totalorder %s28, 0
      %p82 = por %p80, %p81
      %p83 = scmp.ne.s32.totalorder %s71, %s72
      %p84 = scmp.eq.s32.totalorder %s29, 7
      %p85 = por %p83, %p84
      %p87 = scmp.ne.s32.totalorder %s72, %s86
      %p88 = scmp.eq.s32.totalorder %s29, 0
      %p89 = por %p87, %p88
      %s91 = sadd.s32 %s90, 1
      %p94 = scmp.eq.s32.totalorder %s23, 7
      %p95 = scmp.ne.s32.totalorder %s90, %s92
      %p96 = scmp.eq.s32.totalorder %s23, 0
      %p97 = por %p95, %p96
      %p98 = scmp.ne.s32.totalorder %s90, %s92
      %p99 = scmp.eq.s32.totalorder %s28, 7
      %p100 = por %p98, %p99
      %p101 = scmp.ne.s32.totalorder %s92, %s93
      %p102 = scmp.eq.s32.totalorder %s28, 0
      %p103 = por %p101, %p102
      %p104 = scmp.ne.s32.totalorder %s92, %s93
      %p105 = scmp.eq.s32.totalorder %s29, 7
      %p106 = por %p104, %p105
      %p108 = scmp.ne.s32.totalorder %s93, %s107
      %p109 = scmp.eq.s32.totalorder %s29, 0
      %p110 = por %p108, %p109
      %s112 = sadd.s32 %s111, 1
      %p115 = scmp.eq.s32.totalorder %s23, 7
      %p116 = scmp.ne.s32.totalorder %s111, %s113
      %p117 = scmp.eq.s32.totalorder %s23, 0
      %p118 = por %p116, %p117
      %p119 = scmp.ne.s32.totalorder %s111, %s113
      %p120 = scmp.eq.s32.totalorder %s28, 7
      %p121 = por %p119, %p120
      %p122 = scmp.ne.s32.totalorder %s113, %s114
      %p123 = scmp.eq.s32.totalorder %s28, 0
      %p124 = por %p122, %p123
      %p125 = scmp.ne.s32.totalorder %s113, %s114
      %p126 = scmp.eq.s32.totalorder %s29, 7
      %p127 = por %p125, %p126
      %p129 = scmp.ne.s32.totalorder %s114, %s128
      %p130 = scmp.eq.s32.totalorder %s29, 0
      %p131 = por %p129, %p130
      %s133 = sadd.s32 %s132, 1
      %p136 = scmp.eq.s32.totalorder %s23, 7
      %p137 = scmp.ne.s32.totalorder %s132, %s134
      %p138 = scmp.eq.s32.totalorder %s23, 0
      %p139 = por %p137, %p138
      %p140 = scmp.ne.s32.totalorder %s132, %s134
      %p141 = scmp.eq.s32.totalorder %s28, 7
      %p142 = por %p140, %p141
      %p143 = scmp.ne.s32.totalorder %s134, %s135
      %p144 = scmp.eq.s32.totalorder %s28, 0
      %p145 = por %p143, %p144
      %p146 = scmp.ne.s32.totalorder %s134, %s135
      %p147 = scmp.eq.s32.totalorder %s29, 7
      %p148 = por %p146, %p147
      %p150 = scmp.ne.s32.totalorder %s135, %s149
      %p151 = scmp.eq.s32.totalorder %s29, 0
      %p152 = por %p150, %p151
      %s154 = sadd.s32 %s153, 1
      %p157 = scmp.eq.s32.totalorder %s23, 7
      %p158 = scmp.ne.s32.totalorder %s153, %s155
      %p159 = scmp.eq.s32.totalorder %s23, 0
      %p160 = por %p158, %p159
      %p161 = scmp.ne.s32.totalorder %s153, %s155
      %p162 = scmp.eq.s32.totalorder %s28, 7
      %p163 = por %p161, %p162
      %p164 = scmp.ne.s32.totalorder %s155, %s156
      %p165 = scmp.eq.s32.totalorder %s28, 0
      %p166 = por %p164, %p165
      %p167 = scmp.ne.s32.totalorder %s155, %s156
      %p168 = scmp.eq.s32.totalorder %s29, 7
      %p169 = por %p167, %p168
      %p171 = scmp.ne.s32.totalorder %s156, %s170
      %p172 = scmp.eq.s32.totalorder %s29, 0
      %p173 = por %p171, %p172
      %s175 = sadd.s32 %s174, 1
      %p178 = scmp.eq.s32.totalorder %s23, 7
      %p179 = scmp.ne.s32.totalorder %s174, %s176
      %p180 = scmp.eq.s32.totalorder %s23, 0
      %p181 = por %p179, %p180
      %p182 = scmp.ne.s32.totalorder %s174, %s176
      %p183 = scmp.eq.s32.totalorder %s28, 7
      %p184 = por %p182, %p183
      %p185 = scmp.ne.s32.totalorder %s176, %s177
      %p186 = scmp.eq.s32.totalorder %s28, 0
      %p187 = por %p185, %p186
      %p188 = scmp.ne.s32.totalorder %s176, %s177
      %p189 = scmp.eq.s32.totalorder %s29, 7
      %p190 = por %p188, %p189
      %p192 = scmp.ne.s32.totalorder %s177, %s191
      %p193 = scmp.eq.s32.totalorder %s29, 0
      %p194 = por %p192, %p193
      %s195 = ssub.s32 %s31, %s38
      %p196 = scmp.eq.s32.totalorder %s195, 0
      %s198 = sadd.s32 %s197, 1
      %s199 = scalar_select %p196, %s197, %s198
      %p202 = pneg %p196
      %p203 = scmp.eq.s32.totalorder %s23, 7
      %p204 = por %p202, %p203
      %p205 = scmp.ne.s32.totalorder %s197, %s200
      %p206 = scmp.eq.s32.totalorder %s23, 0
      %p207 = por %p205, %p206
      %p208 = scmp.ne.s32.totalorder %s197, %s200
      %p209 = scmp.eq.s32.totalorder %s28, 7
      %p210 = por %p208, %p209
      %p211 = scmp.ne.s32.totalorder %s200, %s201
      %p212 = scmp.eq.s32.totalorder %s28, 0
      %p213 = por %p211, %p212
      %p214 = scmp.ne.s32.totalorder %s200, %s201
      %p215 = scmp.eq.s32.totalorder %s29, 7
      %p216 = por %p214, %p215
      %p218 = scmp.ne.s32.totalorder %s201, %s217
      %p219 = scmp.eq.s32.totalorder %s29, 0
      %p220 = por %p218, %p219
      %s221 = ssub.s32 %s31, %s38
      %p222 = scmp.eq.s32.totalorder %s221, 0
      %s224 = sadd.s32 %s223, 1
      %s225 = scalar_select %p222, %s223, %s224
      %p228 = pneg %p222
      %p229 = scmp.eq.s32.totalorder %s23, 7
      %p230 = por %p228, %p229
      %p231 = scmp.ne.s32.totalorder %s223, %s226
      %p232 = scmp.eq.s32.totalorder %s23, 0
      %p233 = por %p231, %p232
      %p234 = scmp.ne.s32.totalorder %s223, %s226
      %p235 = scmp.eq.s32.totalorder %s28, 7
      %p236 = por %p234, %p235
      %p237 = scmp.ne.s32.totalorder %s226, %s227
      %p238 = scmp.eq.s32.totalorder %s28, 0
      %p239 = por %p237, %p238
      %p240 = scmp.ne.s32.totalorder %s226, %s227
      %p241 = scmp.eq.s32.totalorder %s29, 7
      %p242 = por %p240, %p241
      %p244 = scmp.ne.s32.totalorder %s227, %s243
      %p245 = scmp.eq.s32.totalorder %s29, 0
      %p246 = por %p244, %p245
      %s247 = ssub.s32 %s30, %s42
      %s248 = ssub.s32 %s31, %s38
      %s249 = sor.u32 %s247, %s248
      %p250 = scmp.eq.s32.totalorder %s249, 0
      %s252 = sadd.s32 %s251, 1
      %s253 = scalar_select %p250, %s251, %s252
      %p256 = pneg %p250
      %p257 = scmp.eq.s32.totalorder %s23, 7
      %p258 = por %p256, %p257
      %p259 = scmp.ne.s32.totalorder %s251, %s254
      %p260 = scmp.eq.s32.totalorder %s23, 0
      %p261 = por %p259, %p260
      %p262 = scmp.ne.s32.totalorder %s251, %s254
      %p263 = scmp.eq.s32.totalorder %s28, 7
      %p264 = por %p262, %p263
      %p265 = scmp.ne.s32.totalorder %s254, %s255
      %p266 = scmp.eq.s32.totalorder %s28, 0
      %p267 = por %p265, %p266
      %p268 = scmp.ne.s32.totalorder %s254, %s255
      %p269 = scmp.eq.s32.totalorder %s29, 7
      %p270 = por %p268, %p269
      %p272 = scmp.ne.s32.totalorder %s255, %s271
      %p273 = scmp.eq.s32.totalorder %s29, 0
      %p274 = por %p272, %p273
      %p275 = scmp.le.s32.totalorder 1, %s23
      %p276 = scmp.lt.s32.totalorder %s23, 9
      %p277 = pnand %p275, %p276
      %p278 = pneg %p277
      // Predicated region
      $region9: #{tpu_custom_call.1} parent=5 // pred_check
        _
      $region10: #{tpu_custom_call.1} parent=5 // pred_check_branch
        %280 = sbr.rel (%p277) target = $region12
      $region11: #{tpu_custom_call.1} parent=5 // pred_region
        %s281 = ssub.s32 %s23, 1
        // Predicated region
        $region13: #{tpu_custom_call.1} parent=11 // pred_check
          %p282 = pneg %p82
        $region14: #{tpu_custom_call.1} parent=11 // pred_check_branch
          %284 = sbr.rel (%p282) target = $region16
        $region15: #{tpu_custom_call.1} parent=11 // pred_region
          %s286 = ssub.s32 4096, 4096
          %287 = vsyncadd [#allocation7], %s286
          %s288 = sshll.u32 [#allocation6], 4
          %s289 = int_to_ptr.vmem [resolvable:$true] %s288
          %294 = dma.hbm_to_vmem [thread:$0]  %s1, 4096, %s289, [#allocation7], 128, 128, 8
        $region16: #{tpu_custom_call.1} parent=11 // pred_fallthru
          _
        // Predicated region
        $region17: #{tpu_custom_call.1} parent=11 // pred_check
          %p295 = pneg %p103
        $region18: #{tpu_custom_call.1} parent=11 // pred_check_branch
          %297 = sbr.rel (%p295) target = $region20
        $region19: #{tpu_custom_call.1} parent=11 // pred_region
          _
        $region20: #{tpu_custom_call.1} parent=11 // pred_fallthru
          _
        // Predicated region
        $region21: #{tpu_custom_call.1} parent=11 // pred_check
          %p298 = pneg %p124
        $region22: #{tpu_custom_call.1} parent=11 // pred_check_branch
          %300 = sbr.rel (%p298) target = $region24
        $region23: #{tpu_custom_call.1} parent=11 // pred_region
          %s302 = ssub.s32 12288, 12288
          %303 = vsyncadd [#allocation7], %s302
          %s304 = sshll.u32 [#allocation8], 4
          %s305 = int_to_ptr.vmem [resolvable:$true] %s304
          %310 = dma.hbm_to_vmem [thread:$0]  %s3, 12288, %s305, [#allocation7], 384, 384, 24
        $region24: #{tpu_custom_call.1} parent=11 // pred_fallthru
          _
        // Predicated region
        $region25: #{tpu_custom_call.1} parent=11 // pred_check
          %p311 = pneg %p145
        $region26: #{tpu_custom_call.1} parent=11 // pred_check_branch
          %313 = sbr.rel (%p311) target = $region28
        $region27: #{tpu_custom_call.1} parent=11 // pred_region
          _
        $region28: #{tpu_custom_call.1} parent=11 // pred_fallthru
          _
        // Predicated region
        $region29: #{tpu_custom_call.1} parent=11 // pred_check
          %p314 = pneg %p166
        $region30: #{tpu_custom_call.1} parent=11 // pred_check_branch
          %316 = sbr.rel (%p314) target = $region32
        $region31: #{tpu_custom_call.1} parent=11 // pred_region
          %s318 = ssub.s32 12288, 12288
          %319 = vsyncadd [#allocation10], %s318
          %s320 = sshll.u32 [#allocation9], 4
          %s321 = int_to_ptr.vmem [resolvable:$true] %s320
          %326 = dma.hbm_to_vmem [thread:$0]  %s5, 12288, %s321, [#allocation10], 384, 384, 24
        $region32: #{tpu_custom_call.1} parent=11 // pred_fallthru
          _
        // Predicated region
        $region33: #{tpu_custom_call.1} parent=11 // pred_check
          %p327 = pneg %p187
        $region34: #{tpu_custom_call.1} parent=11 // pred_check_branch
          %329 = sbr.rel (%p327) target = $region36
        $region35: #{tpu_custom_call.1} parent=11 // pred_region
          _
        $region36: #{tpu_custom_call.1} parent=11 // pred_fallthru
          _
      $region12: #{tpu_custom_call.1} parent=5 // pred_fallthru
        _
      %p330 = scmp.lt.s32.totalorder %s23, 8
      // Predicated region
      $region37: #{tpu_custom_call.1} parent=5 // pred_check
        %p331 = pneg %p330
      $region38: #{tpu_custom_call.1} parent=5 // pred_check_branch
        %333 = sbr.rel (%p331) target = $region40
      $region39: #{tpu_custom_call.1} parent=5 // pred_region
        // Predicated region
        $region41: #{tpu_custom_call.1} parent=39 // pred_check
          %p334 = pneg %p55
        $region42: #{tpu_custom_call.1} parent=39 // pred_check_branch
          %336 = sbr.rel (%p334) target = $region44
        $region43: #{tpu_custom_call.1} parent=39 // pred_region
          %s337 = sand.u32 %s23, 1
          %s338 = scalar_lea.sflag [#allocation4], %s337
          %s339 = sand.u32 %s45, 1
          %s340 = smul.addr %s339, 64
          %s341 = scalar_lea.vmem [#allocation3], %s340
          %s342 = smul.u32 8, %s30
          %s344 = ssub.s32 1024, 1024
          %345 = vsyncadd %s338, %s344
          %s346 = smul.addr %s342, 2
          %s347 = smul.addr %s346, 64
          %s348 = scalar_lea.hbm %s0, %s347
          %s349 = sshll.u32 %s341, 4
          %s350 = int_to_ptr.vmem [resolvable:$true] %s349
          %355 = dma.hbm_to_vmem [thread:$0]  %s348, 1024, %s350, %s338, 128, 128, 8
        $region44: #{tpu_custom_call.1} parent=39 // pred_fallthru
          _
        // Predicated region
        $region45: #{tpu_custom_call.1} parent=39 // pred_check
          %p356 = pneg %p207
        $region46: #{tpu_custom_call.1} parent=39 // pred_check_branch
          %358 = sbr.rel (%p356) target = $region48
        $region47: #{tpu_custom_call.1} parent=39 // pred_region
          %s359 = sand.u32 %s23, 1
          %s360 = scalar_lea.sflag [#allocation4], %s359
          %s361 = sand.u32 %s197, 1
          %s362 = smul.addr %s361, 128
          %s363 = scalar_lea.vmem [#allocation11], %s362
          %s365 = ssub.s32 2048, 2048
          %366 = vsyncadd %s360, %s365
          %s367 = smul.addr %s31, 64
          %s368 = scalar_lea.hbm %s7, %s367
          %s369 = sshll.u32 %s363, 4
          %s370 = int_to_ptr.vmem [resolvable:$true] %s369
          %375 = dma.hbm_to_vmem [thread:$0]  %s368, 2048, %s370, %s360, 128, 64, 4
        $region48: #{tpu_custom_call.1} parent=39 // pred_fallthru
          _
        // Predicated region
        $region49: #{tpu_custom_call.1} parent=39 // pred_check
          %p376 = pneg %p233
        $region50: #{tpu_custom_call.1} parent=39 // pred_check_branch
          %378 = sbr.rel (%p376) target = $region52
        $region51: #{tpu_custom_call.1} parent=39 // pred_region
          %p379 = scmp.lt.s32.totalorder %s31, 1
          %s380 = scalar_select %p379, %s31, 1
          %s381 = scalar_lea.vmem %s8, %s380
        $region52: #{tpu_custom_call.1} parent=39 // pred_fallthru
          _
      $region40: #{tpu_custom_call.1} parent=5 // pred_fallthru
        _
      %p382 = scmp.le.s32.totalorder 1, %s23
      %p383 = scmp.lt.s32.totalorder %s23, 9
      %p384 = pnand %p382, %p383
      %p385 = pneg %p384
      // Predicated region
      $region53: #{tpu_custom_call.1} parent=5 // pred_check
        _
      $region54: #{tpu_custom_call.1} parent=5 // pred_check_branch
        %387 = sbr.rel (%p384) target = $region56
      $region55: #{tpu_custom_call.1} parent=5 // pred_region
        %s388 = ssub.s32 %s23, 1
        %s389 = sand.u32 %s28, 1
        %s390 = scalar_lea.sflag [#allocation4], %s389
        %s391 = sand.u32 %s48, 1
        %s392 = smul.addr %s391, 64
        %s393 = scalar_lea.vmem [#allocation3], %s392
        // Predicated region
        $region57: #{tpu_custom_call.1} parent=55 // pred_check
          %p394 = pneg %p61
        $region58: #{tpu_custom_call.1} parent=55 // pred_check_branch
          %396 = sbr.rel (%p394) target = $region60
        $region59: #{tpu_custom_call.1} parent=55 // pred_region
          %397 = dma.done %s390, 1024
        $region60: #{tpu_custom_call.1} parent=55 // pred_fallthru
          _
        // Predicated region
        $region61: #{tpu_custom_call.1} parent=55 // pred_check
          %p398 = pneg %p82
        $region62: #{tpu_custom_call.1} parent=55 // pred_check_branch
          %400 = sbr.rel (%p398) target = $region64
        $region63: #{tpu_custom_call.1} parent=55 // pred_region
          %401 = dma.done [#allocation7], 4096
        $region64: #{tpu_custom_call.1} parent=55 // pred_fallthru
          _
        // Predicated region
        $region65: #{tpu_custom_call.1} parent=55 // pred_check
          %p402 = pneg %p124
        $region66: #{tpu_custom_call.1} parent=55 // pred_check_branch
          %404 = sbr.rel (%p402) target = $region68
        $region67: #{tpu_custom_call.1} parent=55 // pred_region
          %405 = dma.done [#allocation7], 12288
        $region68: #{tpu_custom_call.1} parent=55 // pred_fallthru
          _
        // Predicated region
        $region69: #{tpu_custom_call.1} parent=55 // pred_check
          %p406 = pneg %p166
        $region70: #{tpu_custom_call.1} parent=55 // pred_check_branch
          %408 = sbr.rel (%p406) target = $region72
        $region71: #{tpu_custom_call.1} parent=55 // pred_region
          %409 = dma.done [#allocation10], 12288
        $region72: #{tpu_custom_call.1} parent=55 // pred_fallthru
          _
        %s410 = sand.u32 %s28, 1
        %s411 = scalar_lea.sflag [#allocation4], %s410
        %s412 = sand.u32 %s200, 1
        %s413 = smul.addr %s412, 128
        %s414 = scalar_lea.vmem [#allocation11], %s413
        // Predicated region
        $region73: #{tpu_custom_call.1} parent=55 // pred_check
          %p415 = pneg %p213
        $region74: #{tpu_custom_call.1} parent=55 // pred_check_branch
          %417 = sbr.rel (%p415) target = $region76
        $region75: #{tpu_custom_call.1} parent=55 // pred_region
          %418 = dma.done %s411, 2048
        $region76: #{tpu_custom_call.1} parent=55 // pred_fallthru
          _
        %s419 = sand.u32 %s28, 1
        %s420 = scalar_lea.sflag [#allocation4], %s419
        %s421 = sand.u32 %s48, 1
        %s422 = smul.addr %s421, 64
        %s423 = scalar_lea.vmem [#allocation3], %s422
        %p424 = pneg %p61
        %p425 = pneg %p58
        %p426 = pneg %p82
        %p427 = pneg %p79
        %p428 = pneg %p103
        %p429 = pneg %p100
        %p430 = pneg %p124
        %p431 = pneg %p121
        %p432 = pneg %p145
        %p433 = pneg %p142
        %p434 = pneg %p166
        %p435 = pneg %p163
        %p436 = pneg %p187
        %p437 = pneg %p184
        %s438 = sand.u32 %s28, 1
        %s439 = scalar_lea.sflag [#allocation4], %s438
        %s440 = sand.u32 %s200, 1
        %s441 = smul.addr %s440, 128
        %s442 = scalar_lea.vmem [#allocation11], %s441
        %p443 = pneg %p213
        %p444 = pneg %p210
        %p445 = scmp.lt.s32.totalorder %s33, 1
        %s446 = scalar_select %p445, %s33, 1
        %s447 = scalar_lea.vmem %s8, %s446
        %p448 = pneg %p239
        %p449 = pneg %p236
        %p450 = pneg %p267
        %p451 = pneg %p264
        %s452 = sand.u32 %s254, 1
        %s453 = scalar_lea.sflag [#allocation5], %s452
        %s454 = sand.u32 %s254, 1
        %s455 = smul.addr %s454, 32
        %s456 = scalar_lea.vmem [#allocation12], %s455
        %s457 = smul.u32 8, %s32
        %p458 = scmp.lt.s32.totalorder %s33, 1
        %s459 = scalar_select %p458, %s33, 1
        %s460 = scalar_lea.vmem %s8, %s459
        %s461 = smul.u32 8, %s32
        %p463 = scmp.eq.s32.totalorder %s33, 0
        // Predicated region
        $region77: #{tpu_custom_call.1} parent=55 // pred_check
          %p464 = pneg %p463
        $region78: #{tpu_custom_call.1} parent=55 // pred_check_branch
          %466 = sbr.rel (%p464) target = $region80
        $region79: #{tpu_custom_call.1} parent=55 // pred_region
          %v467 = vld [vmem:[%s393] sm:$0xff]
          %v468 = vld [vmem:[%s393 + $0x8] sm:$0xff]
          %v469 = vld [vmem:[%s393 + $0x10] sm:$0xff]
          %v470 = vld [vmem:[%s393 + $0x18] sm:$0xff]
          %v471 = vld [vmem:[%s393 + $0x20] sm:$0xff]
          %v472 = vld [vmem:[%s393 + $0x28] sm:$0xff]
          %v473 = vld [vmem:[%s393 + $0x30] sm:$0xff]
          %v474 = vld [vmem:[%s393 + $0x38] sm:$0xff]
          %v475 = vld [vmem:[#allocation6] sm:$0xff]
          %v476 = vld [vmem:[#allocation6 + $0x8] sm:$0xff]
          %v477 = vld [vmem:[#allocation6 + $0x10] sm:$0xff]
          %v478 = vld [vmem:[#allocation6 + $0x18] sm:$0xff]
          %v479 = vld [vmem:[#allocation6 + $0x20] sm:$0xff]
          %v480 = vld [vmem:[#allocation6 + $0x28] sm:$0xff]
          %v481 = vld [vmem:[#allocation6 + $0x30] sm:$0xff]
          %v482 = vld [vmem:[#allocation6 + $0x38] sm:$0xff]
          %v483 = vld [vmem:[#allocation6 + $0x40] sm:$0xff]
          %v484 = vld [vmem:[#allocation6 + $0x48] sm:$0xff]
          %v485 = vld [vmem:[#allocation6 + $0x50] sm:$0xff]
          %v486 = vld [vmem:[#allocation6 + $0x58] sm:$0xff]
          %v487 = vld [vmem:[#allocation6 + $0x60] sm:$0xff]
          %v488 = vld [vmem:[#allocation6 + $0x68] sm:$0xff]
          %v489 = vld [vmem:[#allocation6 + $0x70] sm:$0xff]
          %v490 = vld [vmem:[#allocation6 + $0x78] sm:$0xff]
          %v491 = vld [vmem:[#allocation6 + $0x80] sm:$0xff]
          %v492 = vld [vmem:[#allocation6 + $0x88] sm:$0xff]
          %v493 = vld [vmem:[#allocation6 + $0x90] sm:$0xff]
          %v494 = vld [vmem:[#allocation6 + $0x98] sm:$0xff]
          %v495 = vld [vmem:[#allocation6 + $0xa0] sm:$0xff]
          %v496 = vld [vmem:[#allocation6 + $0xa8] sm:$0xff]
          %v497 = vld [vmem:[#allocation6 + $0xb0] sm:$0xff]
          %v498 = vld [vmem:[#allocation6 + $0xb8] sm:$0xff]
          %v499 = vld [vmem:[#allocation6 + $0xc0] sm:$0xff]
          %v500 = vld [vmem:[#allocation6 + $0xc8] sm:$0xff]
          %v501 = vld [vmem:[#allocation6 + $0xd0] sm:$0xff]
          %v502 = vld [vmem:[#allocation6 + $0xd8] sm:$0xff]
          %v503 = vld [vmem:[#allocation6 + $0xe0] sm:$0xff]
          %v504 = vld [vmem:[#allocation6 + $0xe8] sm:$0xff]
          %v505 = vld [vmem:[#allocation6 + $0xf0] sm:$0xff]
          %v506 = vld [vmem:[#allocation6 + $0xf8] sm:$0xff]
          %v507 = vld [vmem:[%s2] sm:$0x3]
          %v509 = vlaneseq
          %v510 = vshrl.u32 %v509, 7
          %v511 = vsub.s32 0, %v510
          %v512 = vrot.slane %v507, %v511
          %v513 = vlaneseq
          %v514 = vshrl.u32 %v513, 7
          %v515 = vsub.s32 1, %v514
          %v516 = vrot.slane %v507, %v515
          %v527 = vunpack.c.l.b16 %v467
          %v528 = vunpack.c.h.b16 %v467
          %v529 = vunpack.c.l.b16 %v468
          %v530 = vunpack.c.h.b16 %v468
          %v531 = vunpack.c.l.b16 %v469
          %v532 = vunpack.c.h.b16 %v469
          %v533 = vunpack.c.l.b16 %v470
          %v534 = vunpack.c.h.b16 %v470
          %v535 = vunpack.c.l.b16 %v471
          %v536 = vunpack.c.h.b16 %v471
          %v537 = vunpack.c.l.b16 %v472
          %v538 = vunpack.c.h.b16 %v472
          %v539 = vunpack.c.l.b16 %v473
          %v540 = vunpack.c.h.b16 %v473
          %v541 = vunpack.c.l.b16 %v474
          %v542 = vunpack.c.h.b16 %v474
          %v543 = vpack.c.b16 %v529, %v527
          %v544 = vpack.c.b16 %v530, %v528
          %v545 = vpack.c.b16 %v533, %v531
          %v546 = vpack.c.b16 %v534, %v532
          %v547 = vpack.c.b16 %v537, %v535
          %v548 = vpack.c.b16 %v538, %v536
          %v549 = vpack.c.b16 %v541, %v539
          %v550 = vpack.c.b16 %v542, %v540
          %v591 = vunpack.c.l.b16 %v475
          %v592 = vunpack.c.h.b16 %v475
          %v593 = vunpack.c.l.b16 %v476
          %v594 = vunpack.c.h.b16 %v476
          %v595 = vunpack.c.l.b16 %v477
          %v596 = vunpack.c.h.b16 %v477
          %v597 = vunpack.c.l.b16 %v478
          %v598 = vunpack.c.h.b16 %v478
          %v599 = vunpack.c.l.b16 %v479
          %v600 = vunpack.c.h.b16 %v479
          %v601 = vunpack.c.l.b16 %v480
          %v602 = vunpack.c.h.b16 %v480
          %v603 = vunpack.c.l.b16 %v481
          %v604 = vunpack.c.h.b16 %v481
          %v605 = vunpack.c.l.b16 %v482
          %v606 = vunpack.c.h.b16 %v482
          %v607 = vunpack.c.l.b16 %v483
          %v608 = vunpack.c.h.b16 %v483
          %v609 = vunpack.c.l.b16 %v484
          %v610 = vunpack.c.h.b16 %v484
          %v611 = vunpack.c.l.b16 %v485
          %v612 = vunpack.c.h.b16 %v485
          %v613 = vunpack.c.l.b16 %v486
          %v614 = vunpack.c.h.b16 %v486
          %v615 = vunpack.c.l.b16 %v487
          %v616 = vunpack.c.h.b16 %v487
          %v617 = vunpack.c.l.b16 %v488
          %v618 = vunpack.c.h.b16 %v488
          %v619 = vunpack.c.l.b16 %v489
          %v620 = vunpack.c.h.b16 %v489
          %v621 = vunpack.c.l.b16 %v490
          %v622 = vunpack.c.h.b16 %v490
          %v623 = vunpack.c.l.b16 %v491
          %v624 = vunpack.c.h.b16 %v491
          %v625 = vunpack.c.l.b16 %v492
          %v626 = vunpack.c.h.b16 %v492
          %v627 = vunpack.c.l.b16 %v493
          %v628 = vunpack.c.h.b16 %v493
          %v629 = vunpack.c.l.b16 %v494
          %v630 = vunpack.c.h.b16 %v494
          %v631 = vunpack.c.l.b16 %v495
          %v632 = vunpack.c.h.b16 %v495
          %v633 = vunpack.c.l.b16 %v496
          %v634 = vunpack.c.h.b16 %v496
          %v635 = vunpack.c.l.b16 %v497
          %v636 = vunpack.c.h.b16 %v497
          %v637 = vunpack.c.l.b16 %v498
          %v638 = vunpack.c.h.b16 %v498
          %v639 = vunpack.c.l.b16 %v499
          %v640 = vunpack.c.h.b16 %v499
          %v641 = vunpack.c.l.b16 %v500
          %v642 = vunpack.c.h.b16 %v500
          %v643 = vunpack.c.l.b16 %v501
          %v644 = vunpack.c.h.b16 %v501
          %v645 = vunpack.c.l.b16 %v502
          %v646 = vunpack.c.h.b16 %v502
          %v647 = vunpack.c.l.b16 %v503
          %v648 = vunpack.c.h.b16 %v503
          %v649 = vunpack.c.l.b16 %v504
          %v650 = vunpack.c.h.b16 %v504
          %v651 = vunpack.c.l.b16 %v505
          %v652 = vunpack.c.h.b16 %v505
          %v653 = vunpack.c.l.b16 %v506
          %v654 = vunpack.c.h.b16 %v506
          %v655 = vpack.c.b16 %v593, %v591
          %v656 = vpack.c.b16 %v594, %v592
          %v657 = vpack.c.b16 %v597, %v595
          %v658 = vpack.c.b16 %v598, %v596
          %v659 = vpack.c.b16 %v601, %v599
          %v660 = vpack.c.b16 %v602, %v600
          %v661 = vpack.c.b16 %v605, %v603
          %v662 = vpack.c.b16 %v606, %v604
          %v663 = vpack.c.b16 %v609, %v607
          %v664 = vpack.c.b16 %v610, %v608
          %v665 = vpack.c.b16 %v613, %v611
          %v666 = vpack.c.b16 %v614, %v612
          %v667 = vpack.c.b16 %v617, %v615
          %v668 = vpack.c.b16 %v618, %v616
          %v669 = vpack.c.b16 %v621, %v619
          %v670 = vpack.c.b16 %v622, %v620
          %v671 = vpack.c.b16 %v625, %v623
          %v672 = vpack.c.b16 %v626, %v624
          %v673 = vpack.c.b16 %v629, %v627
          %v674 = vpack.c.b16 %v630, %v628
          %v675 = vpack.c.b16 %v633, %v631
          %v676 = vpack.c.b16 %v634, %v632
          %v677 = vpack.c.b16 %v637, %v635
          %v678 = vpack.c.b16 %v638, %v636
          %v679 = vpack.c.b16 %v641, %v639
          %v680 = vpack.c.b16 %v642, %v640
          %v681 = vpack.c.b16 %v645, %v643
          %v682 = vpack.c.b16 %v646, %v644
          %v683 = vpack.c.b16 %v649, %v647
          %v684 = vpack.c.b16 %v650, %v648
          %v685 = vpack.c.b16 %v653, %v651
          %v686 = vpack.c.b16 %v654, %v652
          %719 = vmatprep.subr.bf16.mxu0 %v656
          %720 = vmatpush1.bf16.msra.mxu0 %v655
          %721 = vmatprep.subr.bf16.mxu0 %v658
          %722 = vmatpush1.bf16.msra.mxu0 %v657
          %723 = vmatprep.subr.bf16.mxu0 %v660
          %724 = vmatpush1.bf16.msra.mxu0 %v659
          %725 = vmatprep.subr.bf16.mxu0 %v662
          %726 = vmatpush1.bf16.msra.mxu0 %v661
          %727 = vmatprep.subr.bf16.mxu0 %v664
          %728 = vmatpush1.bf16.msra.mxu0 %v663
          %729 = vmatprep.subr.bf16.mxu0 %v666
          %730 = vmatpush1.bf16.msra.mxu0 %v665
          %731 = vmatprep.subr.bf16.mxu0 %v668
          %732 = vmatpush1.bf16.msra.mxu0 %v667
          %733 = vmatprep.subr.bf16.mxu0 %v670
          %734 = vmatpush1.bf16.msra.mxu0 %v669
          %735 = vmatprep.subr.bf16.mxu0 %v672
          %736 = vmatpush1.bf16.msra.mxu0 %v671
          %737 = vmatprep.subr.bf16.mxu0 %v674
          %738 = vmatpush1.bf16.msra.mxu0 %v673
          %739 = vmatprep.subr.bf16.mxu0 %v676
          %740 = vmatpush1.bf16.msra.mxu0 %v675
          %741 = vmatprep.subr.bf16.mxu0 %v678
          %742 = vmatpush1.bf16.msra.mxu0 %v677
          %743 = vmatprep.subr.bf16.mxu0 %v680
          %744 = vmatpush1.bf16.msra.mxu0 %v679
          %745 = vmatprep.subr.bf16.mxu0 %v682
          %746 = vmatpush1.bf16.msra.mxu0 %v681
          %747 = vmatprep.subr.bf16.mxu0 %v684
          %748 = vmatpush1.bf16.msra.mxu0 %v683
          %749 = vmatprep.subr.bf16.mxu0 %v686
          %750 = vmatpush1.bf16.msra.mxu0 %v685
          %751 = vmatprep.mubr.bf16.mxu0 %v544
          %752 = vmatmul.mubr.bf16.gmra.mrb[0].mxu0 %v543
          %v753 = vpop.f32.mrb[0].mxu0
          %v754 = vadd.f32 %v512, %v753
          %v755 = vpop.f32.mrb[0].mxu0
          %v756 = vadd.f32 %v516, %v755
          %v757 = vpop.f32.mrb[0].mxu0
          %v758 = vadd.f32 %v512, %v757
          %v759 = vpop.f32.mrb[0].mxu0
          %v760 = vadd.f32 %v516, %v759
          %761 = vmatprep.mubr.bf16.mxu0 %v546
          %762 = vmatmul.mubr.bf16.gmra.mrb[0].mxu0 %v545
          %v763 = vpop.f32.mrb[0].mxu0
          %v764 = vadd.f32 %v512, %v763
          %v765 = vpop.f32.mrb[0].mxu0
          %v766 = vadd.f32 %v516, %v765
          %v767 = vpop.f32.mrb[0].mxu0
          %v768 = vadd.f32 %v512, %v767
          %v769 = vpop.f32.mrb[0].mxu0
          %v770 = vadd.f32 %v516, %v769
          %771 = vmatprep.mubr.bf16.mxu0 %v548
          %772 = vmatmul.mubr.bf16.gmra.mrb[0].mxu0 %v547
          %v773 = vpop.f32.mrb[0].mxu0
          %v774 = vadd.f32 %v512, %v773
          %v775 = vpop.f32.mrb[0].mxu0
          %v776 = vadd.f32 %v516, %v775
          %v777 = vpop.f32.mrb[0].mxu0
          %v778 = vadd.f32 %v512, %v777
          %v779 = vpop.f32.mrb[0].mxu0
          %v780 = vadd.f32 %v516, %v779
          %781 = vmatprep.mubr.bf16.mxu0 %v550
          %782 = vmatmul.mubr.bf16.gmra.mrb[0].mxu0 %v549
          %v783 = vpop.f32.mrb[0].mxu0
          %v784 = vadd.f32 %v512, %v783
          %v785 = vpop.f32.mrb[0].mxu0
          %v786 = vadd.f32 %v516, %v785
          %v787 = vpop.f32.mrb[0].mxu0
          %v788 = vadd.f32 %v512, %v787
          %v789 = vpop.f32.mrb[0].mxu0
          %v790 = vadd.f32 %v516, %v789
          %791 = vdwg.mxu0
          %v792 = vmax.f32 %v754, 0.0
          %v793 = vmax.f32 %v756, 0.0
          %v794 = vmax.f32 %v758, 0.0
          %v795 = vmax.f32 %v760, 0.0
          %v796 = vmax.f32 %v764, 0.0
          %v797 = vmax.f32 %v766, 0.0
          %v798 = vmax.f32 %v768, 0.0
          %v799 = vmax.f32 %v770, 0.0
          %v800 = vmax.f32 %v774, 0.0
          %v801 = vmax.f32 %v776, 0.0
          %v802 = vmax.f32 %v778, 0.0
          %v803 = vmax.f32 %v780, 0.0
          %v804 = vmax.f32 %v784, 0.0
          %v805 = vmax.f32 %v786, 0.0
          %v806 = vmax.f32 %v788, 0.0
          %v807 = vmax.f32 %v790, 0.0
          %v808 = vpack.c.bf16 %v794, %v792
          %v809 = vpack.c.bf16 %v795, %v793
          %v810 = vpack.c.bf16 %v798, %v796
          %v811 = vpack.c.bf16 %v799, %v797
          %v812 = vpack.c.bf16 %v802, %v800
          %v813 = vpack.c.bf16 %v803, %v801
          %v814 = vpack.c.bf16 %v806, %v804
          %v815 = vpack.c.bf16 %v807, %v805
          %v816 = vld [vmem:[#allocation8] sm:$0xff]
          %v817 = vld [vmem:[#allocation8 + $0x8] sm:$0xff]
          %v818 = vld [vmem:[#allocation8 + $0x10] sm:$0xff]
          %v819 = vld [vmem:[#allocation8 + $0x18] sm:$0xff]
          %v820 = vld [vmem:[#allocation8 + $0x20] sm:$0xff]
          %v821 = vld [vmem:[#allocation8 + $0x28] sm:$0xff]
          %v822 = vld [vmem:[#allocation8 + $0x30] sm:$0xff]
          %v823 = vld [vmem:[#allocation8 + $0x38] sm:$0xff]
          %v824 = vld [vmem:[#allocation8 + $0x40] sm:$0xff]
          %v825 = vld [vmem:[#allocation8 + $0x48] sm:$0xff]
          %v826 = vld [vmem:[#allocation8 + $0x50] sm:$0xff]
          %v827 = vld [vmem:[#allocation8 + $0x58] sm:$0xff]
          %v828 = vld [vmem:[#allocation8 + $0x60] sm:$0xff]
          %v829 = vld [vmem:[#allocation8 + $0x68] sm:$0xff]
          %v830 = vld [vmem:[#allocation8 + $0x70] sm:$0xff]
          %v831 = vld [vmem:[#allocation8 + $0x78] sm:$0xff]
          %v832 = vld [vmem:[#allocation8 + $0x80] sm:$0xff]
          %v833 = vld [vmem:[#allocation8 + $0x88] sm:$0xff]
          %v834 = vld [vmem:[#allocation8 + $0x90] sm:$0xff]
          %v835 = vld [vmem:[#allocation8 + $0x98] sm:$0xff]
          %v836 = vld [vmem:[#allocation8 + $0xa0] sm:$0xff]
          %v837 = vld [vmem:[#allocation8 + $0xa8] sm:$0xff]
          %v838 = vld [vmem:[#allocation8 + $0xb0] sm:$0xff]
          %v839 = vld [vmem:[#allocation8 + $0xb8] sm:$0xff]
          %v840 = vld [vmem:[#allocation8 + $0xc0] sm:$0xff]
          %v841 = vld [vmem:[#allocation8 + $0xc8] sm:$0xff]
          %v842 = vld [vmem:[#allocation8 + $0xd0] sm:$0xff]
          %v843 = vld [vmem:[#allocation8 + $0xd8] sm:$0xff]
          %v844 = vld [vmem:[#allocation8 + $0xe0] sm:$0xff]
          %v845 = vld [vmem:[#allocation8 + $0xe8] sm:$0xff]
          %v846 = vld [vmem:[#allocation8 + $0xf0] sm:$0xff]
          %v847 = vld [vmem:[#allocation8 + $0xf8] sm:$0xff]
          %v848 = vld [vmem:[#allocation8 + $0x100] sm:$0xff]
          %v849 = vld [vmem:[#allocation8 + $0x108] sm:$0xff]
          %v850 = vld [vmem:[#allocation8 + $0x110] sm:$0xff]
          %v851 = vld [vmem:[#allocation8 + $0x118] sm:$0xff]
          %v852 = vld [vmem:[#allocation8 + $0x120] sm:$0xff]
          %v853 = vld [vmem:[#allocation8 + $0x128] sm:$0xff]
          %v854 = vld [vmem:[#allocation8 + $0x130] sm:$0xff]
          %v855 = vld [vmem:[#allocation8 + $0x138] sm:$0xff]
          %v856 = vld [vmem:[#allocation8 + $0x140] sm:$0xff]
          %v857 = vld [vmem:[#allocation8 + $0x148] sm:$0xff]
          %v858 = vld [vmem:[#allocation8 + $0x150] sm:$0xff]
          %v859 = vld [vmem:[#allocation8 + $0x158] sm:$0xff]
          %v860 = vld [vmem:[#allocation8 + $0x160] sm:$0xff]
          %v861 = vld [vmem:[#allocation8 + $0x168] sm:$0xff]
          %v862 = vld [vmem:[#allocation8 + $0x170] sm:$0xff]
          %v863 = vld [vmem:[#allocation8 + $0x178] sm:$0xff]
          %v864 = vld [vmem:[#allocation8 + $0x180] sm:$0xff]
          %v865 = vld [vmem:[#allocation8 + $0x188] sm:$0xff]
          %v866 = vld [vmem:[#allocation8 + $0x190] sm:$0xff]
          %v867 = vld [vmem:[#allocation8 + $0x198] sm:$0xff]
          %v868 = vld [vmem:[#allocation8 + $0x1a0] sm:$0xff]
          %v869 = vld [vmem:[#allocation8 + $0x1a8] sm:$0xff]
          %v870 = vld [vmem:[#allocation8 + $0x1b0] sm:$0xff]
          %v871 = vld [vmem:[#allocation8 + $0x1b8] sm:$0xff]
          %v872 = vld [vmem:[#allocation8 + $0x1c0] sm:$0xff]
          %v873 = vld [vmem:[#allocation8 + $0x1c8] sm:$0xff]
          %v874 = vld [vmem:[#allocation8 + $0x1d0] sm:$0xff]
          %v875 = vld [vmem:[#allocation8 + $0x1d8] sm:$0xff]
          %v876 = vld [vmem:[#allocation8 + $0x1e0] sm:$0xff]
          %v877 = vld [vmem:[#allocation8 + $0x1e8] sm:$0xff]
          %v878 = vld [vmem:[#allocation8 + $0x1f0] sm:$0xff]
          %v879 = vld [vmem:[#allocation8 + $0x1f8] sm:$0xff]
          %v880 = vld [vmem:[#allocation8 + $0x200] sm:$0xff]
          %v881 = vld [vmem:[#allocation8 + $0x208] sm:$0xff]
          %v882 = vld [vmem:[#allocation8 + $0x210] sm:$0xff]
          %v883 = vld [vmem:[#allocation8 + $0x218] sm:$0xff]
          %v884 = vld [vmem:[#allocation8 + $0x220] sm:$0xff]
          %v885 = vld [vmem:[#allocation8 + $0x228] sm:$0xff]
          %v886 = vld [vmem:[#allocation8 + $0x230] sm:$0xff]
          %v887 = vld [vmem:[#allocation8 + $0x238] sm:$0xff]
          %v888 = vld [vmem:[#allocation8 + $0x240] sm:$0xff]
          %v889 = vld [vmem:[#allocation8 + $0x248] sm:$0xff]
          %v890 = vld [vmem:[#allocation8 + $0x250] sm:$0xff]
          %v891 = vld [vmem:[#allocation8 + $0x258] sm:$0xff]
          %v892 = vld [vmem:[#allocation8 + $0x260] sm:$0xff]
          %v893 = vld [vmem:[#allocation8 + $0x268] sm:$0xff]
          %v894 = vld [vmem:[#allocation8 + $0x270] sm:$0xff]
          %v895 = vld [vmem:[#allocation8 + $0x278] sm:$0xff]
          %v896 = vld [vmem:[#allocation8 + $0x280] sm:$0xff]
          %v897 = vld [vmem:[#allocation8 + $0x288] sm:$0xff]
          %v898 = vld [vmem:[#allocation8 + $0x290] sm:$0xff]
          %v899 = vld [vmem:[#allocation8 + $0x298] sm:$0xff]
          %v900 = vld [vmem:[#allocation8 + $0x2a0] sm:$0xff]
          %v901 = vld [vmem:[#allocation8 + $0x2a8] sm:$0xff]
          %v902 = vld [vmem:[#allocation8 + $0x2b0] sm:$0xff]
          %v903 = vld [vmem:[#allocation8 + $0x2b8] sm:$0xff]
          %v904 = vld [vmem:[#allocation8 + $0x2c0] sm:$0xff]
          %v905 = vld [vmem:[#allocation8 + $0x2c8] sm:$0xff]
          %v906 = vld [vmem:[#allocation8 + $0x2d0] sm:$0xff]
          %v907 = vld [vmem:[#allocation8 + $0x2d8] sm:$0xff]
          %v908 = vld [vmem:[#allocation8 + $0x2e0] sm:$0xff]
          %v909 = vld [vmem:[#allocation8 + $0x2e8] sm:$0xff]
          %v910 = vld [vmem:[#allocation8 + $0x2f0] sm:$0xff]
          %v911 = vld [vmem:[#allocation8 + $0x2f8] sm:$0xff]
          %v912 = vld [vmem:[%s4] sm:$0x3f]
          %v914 = vlaneseq
          %v915 = vshrl.u32 %v914, 7
          %v916 = vsub.s32 0, %v915
          %v917 = vrot.slane %v912, %v916
          %v918 = vlaneseq
          %v919 = vshrl.u32 %v918, 7
          %v920 = vsub.s32 1, %v919
          %v921 = vrot.slane %v912, %v920
          %v922 = vlaneseq
          %v923 = vshrl.u32 %v922, 7
          %v924 = vsub.s32 2, %v923
          %v925 = vrot.slane %v912, %v924
          %v926 = vlaneseq
          %v927 = vshrl.u32 %v926, 7
          %v928 = vsub.s32 3, %v927
          %v929 = vrot.slane %v912, %v928
          %v930 = vlaneseq
          %v931 = vshrl.u32 %v930, 7
          %v932 = vsub.s32 4, %v931
          %v933 = vrot.slane %v912, %v932
          %v934 = vlaneseq
          %v935 = vshrl.u32 %v934, 7
          %v936 = vsub.s32 5, %v935
          %v937 = vrot.slane %v912, %v936
          %v1040 = vunpack.c.l.b16 %v816
          %v1041 = vunpack.c.h.b16 %v816
          %v1042 = vunpack.c.l.b16 %v817
          %v1043 = vunpack.c.h.b16 %v817
          %v1044 = vunpack.c.l.b16 %v818
          %v1045 = vunpack.c.h.b16 %v818
          %v1046 = vunpack.c.l.b16 %v819
          %v1047 = vunpack.c.h.b16 %v819
          %v1048 = vunpack.c.l.b16 %v820
          %v1049 = vunpack.c.h.b16 %v820
          %v1050 = vunpack.c.l.b16 %v821
          %v1051 = vunpack.c.h.b16 %v821
          %v1052 = vunpack.c.l.b16 %v822
          %v1053 = vunpack.c.h.b16 %v822
          %v1054 = vunpack.c.l.b16 %v823
          %v1055 = vunpack.c.h.b16 %v823
          %v1056 = vunpack.c.l.b16 %v824
          %v1057 = vunpack.c.h.b16 %v824
          %v1058 = vunpack.c.l.b16 %v825
          %v1059 = vunpack.c.h.b16 %v825
          %v1060 = vunpack.c.l.b16 %v826
          %v1061 = vunpack.c.h.b16 %v826
          %v1062 = vunpack.c.l.b16 %v827
          %v1063 = vunpack.c.h.b16 %v827
          %v1064 = vunpack.c.l.b16 %v828
          %v1065 = vunpack.c.h.b16 %v828
          %v1066 = vunpack.c.l.b16 %v829
          %v1067 = vunpack.c.h.b16 %v829
          %v1068 = vunpack.c.l.b16 %v830
          %v1069 = vunpack.c.h.b16 %v830
          %v1070 = vunpack.c.l.b16 %v831
          %v1071 = vunpack.c.h.b16 %v831
          %v1072 = vunpack.c.l.b16 %v832
          %v1073 = vunpack.c.h.b16 %v832
          %v1074 = vunpack.c.l.b16 %v833
          %v1075 = vunpack.c.h.b16 %v833
          %v1076 = vunpack.c.l.b16 %v834
          %v1077 = vunpack.c.h.b16 %v834
          %v1078 = vunpack.c.l.b16 %v835
          %v1079 = vunpack.c.h.b16 %v835
          %v1080 = vunpack.c.l.b16 %v836
          %v1081 = vunpack.c.h.b16 %v836
          %v1082 = vunpack.c.l.b16 %v837
          %v1083 = vunpack.c.h.b16 %v837
          %v1084 = vunpack.c.l.b16 %v838
          %v1085 = vunpack.c.h.b16 %v838
          %v1086 = vunpack.c.l.b16 %v839
          %v1087 = vunpack.c.h.b16 %v839
          %v1088 = vunpack.c.l.b16 %v840
          %v1089 = vunpack.c.h.b16 %v840
          %v1090 = vunpack.c.l.b16 %v841
          %v1091 = vunpack.c.h.b16 %v841
          %v1092 = vunpack.c.l.b16 %v842
          %v1093 = vunpack.c.h.b16 %v842
          %v1094 = vunpack.c.l.b16 %v843
          %v1095 = vunpack.c.h.b16 %v843
          %v1096 = vunpack.c.l.b16 %v844
          %v1097 = vunpack.c.h.b16 %v844
          %v1098 = vunpack.c.l.b16 %v845
          %v1099 = vunpack.c.h.b16 %v845
          %v1100 = vunpack.c.l.b16 %v846
          %v1101 = vunpack.c.h.b16 %v846
          %v1102 = vunpack.c.l.b16 %v847
          %v1103 = vunpack.c.h.b16 %v847
          %v1104 = vunpack.c.l.b16 %v848
          %v1105 = vunpack.c.h.b16 %v848
          %v1106 = vunpack.c.l.b16 %v849
          %v1107 = vunpack.c.h.b16 %v849
          %v1108 = vunpack.c.l.b16 %v850
          %v1109 = vunpack.c.h.b16 %v850
          %v1110 = vunpack.c.l.b16 %v851
          %v1111 = vunpack.c.h.b16 %v851
          %v1112 = vunpack.c.l.b16 %v852
          %v1113 = vunpack.c.h.b16 %v852
          %v1114 = vunpack.c.l.b16 %v853
          %v1115 = vunpack.c.h.b16 %v853
          %v1116 = vunpack.c.l.b16 %v854
          %v1117 = vunpack.c.h.b16 %v854
          %v1118 = vunpack.c.l.b16 %v855
          %v1119 = vunpack.c.h.b16 %v855
          %v1120 = vunpack.c.l.b16 %v856
          %v1121 = vunpack.c.h.b16 %v856
          %v1122 = vunpack.c.l.b16 %v857
          %v1123 = vunpack.c.h.b16 %v857
          %v1124 = vunpack.c.l.b16 %v858
          %v1125 = vunpack.c.h.b16 %v858
          %v1126 = vunpack.c.l.b16 %v859
          %v1127 = vunpack.c.h.b16 %v859
          %v1128 = vunpack.c.l.b16 %v860
          %v1129 = vunpack.c.h.b16 %v860
          %v1130 = vunpack.c.l.b16 %v861
          %v1131 = vunpack.c.h.b16 %v861
          %v1132 = vunpack.c.l.b16 %v862
          %v1133 = vunpack.c.h.b16 %v862
          %v1134 = vunpack.c.l.b16 %v863
          %v1135 = vunpack.c.h.b16 %v863
          %v1136 = vunpack.c.l.b16 %v864
          %v1137 = vunpack.c.h.b16 %v864
          %v1138 = vunpack.c.l.b16 %v865
          %v1139 = vunpack.c.h.b16 %v865
          %v1140 = vunpack.c.l.b16 %v866
          %v1141 = vunpack.c.h.b16 %v866
          %v1142 = vunpack.c.l.b16 %v867
          %v1143 = vunpack.c.h.b16 %v867
          %v1144 = vunpack.c.l.b16 %v868
          %v1145 = vunpack.c.h.b16 %v868
          %v1146 = vunpack.c.l.b16 %v869
          %v1147 = vunpack.c.h.b16 %v869
          %v1148 = vunpack.c.l.b16 %v870
          %v1149 = vunpack.c.h.b16 %v870
          %v1150 = vunpack.c.l.b16 %v871
          %v1151 = vunpack.c.h.b16 %v871
          %v1152 = vunpack.c.l.b16 %v872
          %v1153 = vunpack.c.h.b16 %v872
          %v1154 = vunpack.c.l.b16 %v873
          %v1155 = vunpack.c.h.b16 %v873
          %v1156 = vunpack.c.l.b16 %v874
          %v1157 = vunpack.c.h.b16 %v874
          %v1158 = vunpack.c.l.b16 %v875
          %v1159 = vunpack.c.h.b16 %v875
          %v1160 = vunpack.c.l.b16 %v876
          %v1161 = vunpack.c.h.b16 %v876
          %v1162 = vunpack.c.l.b16 %v877
          %v1163 = vunpack.c.h.b16 %v877
          %v1164 = vunpack.c.l.b16 %v878
          %v1165 = vunpack.c.h.b16 %v878
          %v1166 = vunpack.c.l.b16 %v879
          %v1167 = vunpack.c.h.b16 %v879
          %v1168 = vunpack.c.l.b16 %v880
          %v1169 = vunpack.c.h.b16 %v880
          %v1170 = vunpack.c.l.b16 %v881
          %v1171 = vunpack.c.h.b16 %v881
          %v1172 = vunpack.c.l.b16 %v882
          %v1173 = vunpack.c.h.b16 %v882
          %v1174 = vunpack.c.l.b16 %v883
          %v1175 = vunpack.c.h.b16 %v883
          %v1176 = vunpack.c.l.b16 %v884
          %v1177 = vunpack.c.h.b16 %v884
          %v1178 = vunpack.c.l.b16 %v885
          %v1179 = vunpack.c.h.b16 %v885
          %v1180 = vunpack.c.l.b16 %v886
          %v1181 = vunpack.c.h.b16 %v886
          %v1182 = vunpack.c.l.b16 %v887
          %v1183 = vunpack.c.h.b16 %v887
          %v1184 = vunpack.c.l.b16 %v888
          %v1185 = vunpack.c.h.b16 %v888
          %v1186 = vunpack.c.l.b16 %v889
          %v1187 = vunpack.c.h.b16 %v889
          %v1188 = vunpack.c.l.b16 %v890
          %v1189 = vunpack.c.h.b16 %v890
          %v1190 = vunpack.c.l.b16 %v891
          %v1191 = vunpack.c.h.b16 %v891
          %v1192 = vunpack.c.l.b16 %v892
          %v1193 = vunpack.c.h.b16 %v892
          %v1194 = vunpack.c.l.b16 %v893
          %v1195 = vunpack.c.h.b16 %v893
          %v1196 = vunpack.c.l.b16 %v894
          %v1197 = vunpack.c.h.b16 %v894
          %v1198 = vunpack.c.l.b16 %v895
          %v1199 = vunpack.c.h.b16 %v895
          %v1200 = vunpack.c.l.b16 %v896
          %v1201 = vunpack.c.h.b16 %v896
          %v1202 = vunpack.c.l.b16 %v897
          %v1203 = vunpack.c.h.b16 %v897
          %v1204 = vunpack.c.l.b16 %v898
          %v1205 = vunpack.c.h.b16 %v898
          %v1206 = vunpack.c.l.b16 %v899
          %v1207 = vunpack.c.h.b16 %v899
          %v1208 = vunpack.c.l.b16 %v900
          %v1209 = vunpack.c.h.b16 %v900
          %v1210 = vunpack.c.l.b16 %v901
          %v1211 = vunpack.c.h.b16 %v901
          %v1212 = vunpack.c.l.b16 %v902
          %v1213 = vunpack.c.h.b16 %v902
          %v1214 = vunpack.c.l.b16 %v903
          %v1215 = vunpack.c.h.b16 %v903
          %v1216 = vunpack.c.l.b16 %v904
          %v1217 = vunpack.c.h.b16 %v904
          %v1218 = vunpack.c.l.b16 %v905
          %v1219 = vunpack.c.h.b16 %v905
          %v1220 = vunpack.c.l.b16 %v906
          %v1221 = vunpack.c.h.b16 %v906
          %v1222 = vunpack.c.l.b16 %v907
          %v1223 = vunpack.c.h.b16 %v907
          %v1224 = vunpack.c.l.b16 %v908
          %v1225 = vunpack.c.h.b16 %v908
          %v1226 = vunpack.c.l.b16 %v909
          %v1227 = vunpack.c.h.b16 %v909
          %v1228 = vunpack.c.l.b16 %v910
          %v1229 = vunpack.c.h.b16 %v910
          %v1230 = vunpack.c.l.b16 %v911
          %v1231 = vunpack.c.h.b16 %v911
          %v1232 = vpack.c.b16 %v1046, %v1040
          %v1233 = vpack.c.b16 %v1047, %v1041
          %v1234 = vpack.c.b16 %v1048, %v1042
          %v1235 = vpack.c.b16 %v1049, %v1043
          %v1236 = vpack.c.b16 %v1050, %v1044
          %v1237 = vpack.c.b16 %v1051, %v1045
          %v1238 = vpack.c.b16 %v1058, %v1052
          %v1239 = vpack.c.b16 %v1059, %v1053
          %v1240 = vpack.c.b16 %v1060, %v1054
          %v1241 = vpack.c.b16 %v1061, %v1055
          %v1242 = vpack.c.b16 %v1062, %v1056
          %v1243 = vpack.c.b16 %v1063, %v1057
          %v1244 = vpack.c.b16 %v1070, %v1064
          %v1245 = vpack.c.b16 %v1071, %v1065
          %v1246 = vpack.c.b16 %v1072, %v1066
          %v1247 = vpack.c.b16 %v1073, %v1067
          %v1248 = vpack.c.b16 %v1074, %v1068
          %v1249 = vpack.c.b16 %v1075, %v1069
          %v1250 = vpack.c.b16 %v1082, %v1076
          %v1251 = vpack.c.b16 %v1083, %v1077
          %v1252 = vpack.c.b16 %v1084, %v1078
          %v1253 = vpack.c.b16 %v1085, %v1079
          %v1254 = vpack.c.b16 %v1086, %v1080
          %v1255 = vpack.c.b16 %v1087, %v1081
          %v1256 = vpack.c.b16 %v1094, %v1088
          %v1257 = vpack.c.b16 %v1095, %v1089
          %v1258 = vpack.c.b16 %v1096, %v1090
          %v1259 = vpack.c.b16 %v1097, %v1091
          %v1260 = vpack.c.b16 %v1098, %v1092
          %v1261 = vpack.c.b16 %v1099, %v1093
          %v1262 = vpack.c.b16 %v1106, %v1100
          %v1263 = vpack.c.b16 %v1107, %v1101
          %v1264 = vpack.c.b16 %v1108, %v1102
          %v1265 = vpack.c.b16 %v1109, %v1103
          %v1266 = vpack.c.b16 %v1110, %v1104
          %v1267 = vpack.c.b16 %v1111, %v1105
          %v1268 = vpack.c.b16 %v1118, %v1112
          %v1269 = vpack.c.b16 %v1119, %v1113
          %v1270 = vpack.c.b16 %v1120, %v1114
          %v1271 = vpack.c.b16 %v1121, %v1115
          %v1272 = vpack.c.b16 %v1122, %v1116
          %v1273 = vpack.c.b16 %v1123, %v1117
          %v1274 = vpack.c.b16 %v1130, %v1124
          %v1275 = vpack.c.b16 %v1131, %v1125
          %v1276 = vpack.c.b16 %v1132, %v1126
          %v1277 = vpack.c.b16 %v1133, %v1127
          %v1278 = vpack.c.b16 %v1134, %v1128
          %v1279 = vpack.c.b16 %v1135, %v1129
          %v1280 = vpack.c.b16 %v1142, %v1136
          %v1281 = vpack.c.b16 %v1143, %v1137
          %v1282 = vpack.c.b16 %v1144, %v1138
          %v1283 = vpack.c.b16 %v1145, %v1139
          %v1284 = vpack.c.b16 %v1146, %v1140
          %v1285 = vpack.c.b16 %v1147, %v1141
          %v1286 = vpack.c.b16 %v1154, %v1148
          %v1287 = vpack.c.b16 %v1155, %v1149
          %v1288 = vpack.c.b16 %v1156, %v1150
          %v1289 = vpack.c.b16 %v1157, %v1151
          %v1290 = vpack.c.b16 %v1158, %v1152
          %v1291 = vpack.c.b16 %v1159, %v1153
          %v1292 = vpack.c.b16 %v1166, %v1160
          %v1293 = vpack.c.b16 %v1167, %v1161
          %v1294 = vpack.c.b16 %v1168, %v1162
          %v1295 = vpack.c.b16 %v1169, %v1163
          %v1296 = vpack.c.b16 %v1170, %v1164
          %v1297 = vpack.c.b16 %v1171, %v1165
          %v1298 = vpack.c.b16 %v1178, %v1172
          %v1299 = vpack.c.b16 %v1179, %v1173
          %v1300 = vpack.c.b16 %v1180, %v1174
          %v1301 = vpack.c.b16 %v1181, %v1175
          %v1302 = vpack.c.b16 %v1182, %v1176
          %v1303 = vpack.c.b16 %v1183, %v1177
          %v1304 = vpack.c.b16 %v1190, %v1184
          %v1305 = vpack.c.b16 %v1191, %v1185
          %v1306 = vpack.c.b16 %v1192, %v1186
          %v1307 = vpack.c.b16 %v1193, %v1187
          %v1308 = vpack.c.b16 %v1194, %v1188
          %v1309 = vpack.c.b16 %v1195, %v1189
          %v1310 = vpack.c.b16 %v1202, %v1196
          %v1311 = vpack.c.b16 %v1203, %v1197
          %v1312 = vpack.c.b16 %v1204, %v1198
          %v1313 = vpack.c.b16 %v1205, %v1199
          %v1314 = vpack.c.b16 %v1206, %v1200
          %v1315 = vpack.c.b16 %v1207, %v1201
          %v1316 = vpack.c.b16 %v1214, %v1208
          %v1317 = vpack.c.b16 %v1215, %v1209
          %v1318 = vpack.c.b16 %v1216, %v1210
          %v1319 = vpack.c.b16 %v1217, %v1211
          %v1320 = vpack.c.b16 %v1218, %v1212
          %v1321 = vpack.c.b16 %v1219, %v1213
          %v1322 = vpack.c.b16 %v1226, %v1220
          %v1323 = vpack.c.b16 %v1227, %v1221
          %v1324 = vpack.c.b16 %v1228, %v1222
          %v1325 = vpack.c.b16 %v1229, %v1223
          %v1326 = vpack.c.b16 %v1230, %v1224
          %v1327 = vpack.c.b16 %v1231, %v1225
          %1424 = vmatprep.subr.bf16.mxu0 %v1233
          %1425 = vmatpush1.bf16.msra.mxu0 %v1232
          %1426 = vmatprep.subr.bf16.mxu0 %v1239
          %1427 = vmatpush1.bf16.msra.mxu0 %v1238
          %1428 = vmatprep.subr.bf16.mxu0 %v1245
          %1429 = vmatpush1.bf16.msra.mxu0 %v1244
          %1430 = vmatprep.subr.bf16.mxu0 %v1251
          %1431 = vmatpush1.bf16.msra.mxu0 %v1250
          %1432 = vmatprep.subr.bf16.mxu0 %v1257
          %1433 = vmatpush1.bf16.msra.mxu0 %v1256
          %1434 = vmatprep.subr.bf16.mxu0 %v1263
          %1435 = vmatpush1.bf16.msra.mxu0 %v1262
          %1436 = vmatprep.subr.bf16.mxu0 %v1269
          %1437 = vmatpush1.bf16.msra.mxu0 %v1268
          %1438 = vmatprep.subr.bf16.mxu0 %v1275
          %1439 = vmatpush1.bf16.msra.mxu0 %v1274
          %1440 = vmatprep.subr.bf16.mxu0 %v1281
          %1441 = vmatpush1.bf16.msra.mxu0 %v1280
          %1442 = vmatprep.subr.bf16.mxu0 %v1287
          %1443 = vmatpush1.bf16.msra.mxu0 %v1286
          %1444 = vmatprep.subr.bf16.mxu0 %v1293
          %1445 = vmatpush1.bf16.msra.mxu0 %v1292
          %1446 = vmatprep.subr.bf16.mxu0 %v1299
          %1447 = vmatpush1.bf16.msra.mxu0 %v1298
          %1448 = vmatprep.subr.bf16.mxu0 %v1305
          %1449 = vmatpush1.bf16.msra.mxu0 %v1304
          %1450 = vmatprep.subr.bf16.mxu0 %v1311
          %1451 = vmatpush1.bf16.msra.mxu0 %v1310
          %1452 = vmatprep.subr.bf16.mxu0 %v1317
          %1453 = vmatpush1.bf16.msra.mxu0 %v1316
          %1454 = vmatprep.subr.bf16.mxu0 %v1323
          %1455 = vmatpush1.bf16.msra.mxu0 %v1322
          %1456 = vmatprep.mubr.bf16.mxu0 %v809
          %1457 = vmatmul.mubr.bf16.gmra.mrb[0].mxu0 %v808
          %v1458 = vpop.f32.mrb[0].mxu0
          %v1459 = vadd.f32 %v917, %v1458
          %v1460 = vpop.f32.mrb[0].mxu0
          %v1461 = vadd.f32 %v921, %v1460
          %v1462 = vpop.f32.mrb[0].mxu0
          %v1463 = vadd.f32 %v917, %v1462
          %v1464 = vpop.f32.mrb[0].mxu0
          %v1465 = vadd.f32 %v921, %v1464
          %1466 = vmatprep.mubr.bf16.mxu0 %v811
          %1467 = vmatmul.mubr.bf16.gmra.mrb[0].mxu0 %v810
          %v1468 = vpop.f32.mrb[0].mxu0
          %v1469 = vadd.f32 %v917, %v1468
          %v1470 = vpop.f32.mrb[0].mxu0
          %v1471 = vadd.f32 %v921, %v1470
          %v1472 = vpop.f32.mrb[0].mxu0
          %v1473 = vadd.f32 %v917, %v1472
          %v1474 = vpop.f32.mrb[0].mxu0
          %v1475 = vadd.f32 %v921, %v1474
          %1476 = vmatprep.mubr.bf16.mxu0 %v813
          %1477 = vmatmul.mubr.bf16.gmra.mrb[0].mxu0 %v812
          %v1478 = vpop.f32.mrb[0].mxu0
          %v1479 = vadd.f32 %v917, %v1478
          %v1480 = vpop.f32.mrb[0].mxu0
          %v1481 = vadd.f32 %v921, %v1480
          %v1482 = vpop.f32.mrb[0].mxu0
          %v1483 = vadd.f32 %v917, %v1482
          %v1484 = vpop.f32.mrb[0].mxu0
          %v1485 = vadd.f32 %v921, %v1484
          %1486 = vmatprep.mubr.bf16.mxu0 %v815
          %1487 = vmatmul.mubr.bf16.gmra.mrb[0].mxu0 %v814
          %v1488 = vpop.f32.mrb[0].mxu0
          %v1489 = vadd.f32 %v917, %v1488
          %v1490 = vpop.f32.mrb[0].mxu0
          %v1491 = vadd.f32 %v921, %v1490
          %v1492 = vpop.f32.mrb[0].mxu0
          %v1493 = vadd.f32 %v917, %v1492
          %v1494 = vpop.f32.mrb[0].mxu0
          %v1495 = vadd.f32 %v921, %v1494
          %1496 = vdwg.mxu0
          %1497 = vmatprep.subr.bf16.mxu0 %v1235
          %1498 = vmatpush1.bf16.msra.mxu0 %v1234
          %1499 = vmatprep.subr.bf16.mxu0 %v1241
          %1500 = vmatpush1.bf16.msra.mxu0 %v1240
          %1501 = vmatprep.subr.bf16.mxu0 %v1247
          %1502 = vmatpush1.bf16.msra.mxu0 %v1246
          %1503 = vmatprep.subr.bf16.mxu0 %v1253
          %1504 = vmatpush1.bf16.msra.mxu0 %v1252
          %1505 = vmatprep.subr.bf16.mxu0 %v1259
          %1506 = vmatpush1.bf16.msra.mxu0 %v1258
          %1507 = vmatprep.subr.bf16.mxu0 %v1265
          %1508 = vmatpush1.bf16.msra.mxu0 %v1264
          %1509 = vmatprep.subr.bf16.mxu0 %v1271
          %1510 = vmatpush1.bf16.msra.mxu0 %v1270
          %1511 = vmatprep.subr.bf16.mxu0 %v1277
          %1512 = vmatpush1.bf16.msra.mxu0 %v1276
          %1513 = vmatprep.subr.bf16.mxu0 %v1283
          %1514 = vmatpush1.bf16.msra.mxu0 %v1282
          %1515 = vmatprep.subr.bf16.mxu0 %v1289
          %1516 = vmatpush1.bf16.msra.mxu0 %v1288
          %1517 = vmatprep.subr.bf16.mxu0 %v1295
          %1518 = vmatpush1.bf16.msra.mxu0 %v1294
          %1519 = vmatprep.subr.bf16.mxu0 %v1301
          %1520 = vmatpush1.bf16.msra.mxu0 %v1300
          %1521 = vmatprep.subr.bf16.mxu0 %v1307
          %1522 = vmatpush1.bf16.msra.mxu0 %v1306
          %1523 = vmatprep.subr.bf16.mxu0 %v1313
          %1524 = vmatpush1.bf16.msra.mxu0 %v1312
          %1525 = vmatprep.subr.bf16.mxu0 %v1319
          %1526 = vmatpush1.bf16.msra.mxu0 %v1318
          %1527 = vmatprep.subr.bf16.mxu0 %v1325
          %1528 = vmatpush1.bf16.msra.mxu0 %v1324
          %1529 = vmatprep.mubr.bf16.mxu0 %v809
          %1530 = vmatmul.mubr.bf16.gmra.mrb[0].mxu0 %v808
          %v1531 = vpop.f32.mrb[0].mxu0
          %v1532 = vadd.f32 %v925, %v1531
          %v1533 = vpop.f32.mrb[0].mxu0
          %v1534 = vadd.f32 %v929, %v1533
          %v1535 = vpop.f32.mrb[0].mxu0
          %v1536 = vadd.f32 %v925, %v1535
          %v1537 = vpop.f32.mrb[0].mxu0
          %v1538 = vadd.f32 %v929, %v1537
          %1539 = vmatprep.mubr.bf16.mxu0 %v811
          %1540 = vmatmul.mubr.bf16.gmra.mrb[0].mxu0 %v810
          %v1541 = vpop.f32.mrb[0].mxu0
          %v1542 = vadd.f32 %v925, %v1541
          %v1543 = vpop.f32.mrb[0].mxu0
          %v1544 = vadd.f32 %v929, %v1543
          %v1545 = vpop.f32.mrb[0].mxu0
          %v1546 = vadd.f32 %v925, %v1545
          %v1547 = vpop.f32.mrb[0].mxu0
          %v1548 = vadd.f32 %v929, %v1547
          %1549 = vmatprep.mubr.bf16.mxu0 %v813
          %1550 = vmatmul.mubr.bf16.gmra.mrb[0].mxu0 %v812
          %v1551 = vpop.f32.mrb[0].mxu0
          %v1552 = vadd.f32 %v925, %v1551
          %v1553 = vpop.f32.mrb[0].mxu0
          %v1554 = vadd.f32 %v929, %v1553
          %v1555 = vpop.f32.mrb[0].mxu0
          %v1556 = vadd.f32 %v925, %v1555
          %v1557 = vpop.f32.mrb[0].mxu0
          %v1558 = vadd.f32 %v929, %v1557
          %1559 = vmatprep.mubr.bf16.mxu0 %v815
          %1560 = vmatmul.mubr.bf16.gmra.mrb[0].mxu0 %v814
          %v1561 = vpop.f32.mrb[0].mxu0
          %v1562 = vadd.f32 %v925, %v1561
          %v1563 = vpop.f32.mrb[0].mxu0
          %v1564 = vadd.f32 %v929, %v1563
          %v1565 = vpop.f32.mrb[0].mxu0
          %v1566 = vadd.f32 %v925, %v1565
          %v1567 = vpop.f32.mrb[0].mxu0
          %v1568 = vadd.f32 %v929, %v1567
          %1569 = vdwg.mxu0
          %1570 = vmatprep.subr.bf16.mxu0 %v1237
          %1571 = vmatpush1.bf16.msra.mxu0 %v1236
          %1572 = vmatprep.subr.bf16.mxu0 %v1243
          %1573 = vmatpush1.bf16.msra.mxu0 %v1242
          %1574 = vmatprep.subr.bf16.mxu0 %v1249
          %1575 = vmatpush1.bf16.msra.mxu0 %v1248
          %1576 = vmatprep.subr.bf16.mxu0 %v1255
          %1577 = vmatpush1.bf16.msra.mxu0 %v1254
          %1578 = vmatprep.subr.bf16.mxu0 %v1261
          %1579 = vmatpush1.bf16.msra.mxu0 %v1260
          %1580 = vmatprep.subr.bf16.mxu0 %v1267
          %1581 = vmatpush1.bf16.msra.mxu0 %v1266
          %1582 = vmatprep.subr.bf16.mxu0 %v1273
          %1583 = vmatpush1.bf16.msra.mxu0 %v1272
          %1584 = vmatprep.subr.bf16.mxu0 %v1279
          %1585 = vmatpush1.bf16.msra.mxu0 %v1278
          %1586 = vmatprep.subr.bf16.mxu0 %v1285
          %1587 = vmatpush1.bf16.msra.mxu0 %v1284
          %1588 = vmatprep.subr.bf16.mxu0 %v1291
          %1589 = vmatpush1.bf16.msra.mxu0 %v1290
          %1590 = vmatprep.subr.bf16.mxu0 %v1297
          %1591 = vmatpush1.bf16.msra.mxu0 %v1296
          %1592 = vmatprep.subr.bf16.mxu0 %v1303
          %1593 = vmatpush1.bf16.msra.mxu0 %v1302
          %1594 = vmatprep.subr.bf16.mxu0 %v1309
          %1595 = vmatpush1.bf16.msra.mxu0 %v1308
          %1596 = vmatprep.subr.bf16.mxu0 %v1315
          %1597 = vmatpush1.bf16.msra.mxu0 %v1314
          %1598 = vmatprep.subr.bf16.mxu0 %v1321
          %1599 = vmatpush1.bf16.msra.mxu0 %v1320
          %1600 = vmatprep.subr.bf16.mxu0 %v1327
          %1601 = vmatpush1.bf16.msra.mxu0 %v1326
          %1602 = vmatprep.mubr.bf16.mxu0 %v809
          %1603 = vmatmul.mubr.bf16.gmra.mrb[0].mxu0 %v808
          %v1604 = vpop.f32.mrb[0].mxu0
          %v1605 = vadd.f32 %v933, %v1604
          %v1606 = vpop.f32.mrb[0].mxu0
          %v1607 = vadd.f32 %v937, %v1606
          %v1608 = vpop.f32.mrb[0].mxu0
          %v1609 = vadd.f32 %v933, %v1608
          %v1610 = vpop.f32.mrb[0].mxu0
          %v1611 = vadd.f32 %v937, %v1610
          %1612 = vmatprep.mubr.bf16.mxu0 %v811
          %1613 = vmatmul.mubr.bf16.gmra.mrb[0].mxu0 %v810
          %v1614 = vpop.f32.mrb[0].mxu0
          %v1615 = vadd.f32 %v933, %v1614
          %v1616 = vpop.f32.mrb[0].mxu0
          %v1617 = vadd.f32 %v937, %v1616
          %v1618 = vpop.f32.mrb[0].mxu0
          %v1619 = vadd.f32 %v933, %v1618
          %v1620 = vpop.f32.mrb[0].mxu0
          %v1621 = vadd.f32 %v937, %v1620
          %1622 = vmatprep.mubr.bf16.mxu0 %v813
          %1623 = vmatmul.mubr.bf16.gmra.mrb[0].mxu0 %v812
          %v1624 = vpop.f32.mrb[0].mxu0
          %v1625 = vadd.f32 %v933, %v1624
          %v1626 = vpop.f32.mrb[0].mxu0
          %v1627 = vadd.f32 %v937, %v1626
          %v1628 = vpop.f32.mrb[0].mxu0
          %v1629 = vadd.f32 %v933, %v1628
          %v1630 = vpop.f32.mrb[0].mxu0
          %v1631 = vadd.f32 %v937, %v1630
          %1632 = vmatprep.mubr.bf16.mxu0 %v815
          %1633 = vmatmul.mubr.bf16.gmra.mrb[0].mxu0 %v814
          %v1634 = vpop.f32.mrb[0].mxu0
          %v1635 = vadd.f32 %v933, %v1634
          %v1636 = vpop.f32.mrb[0].mxu0
          %v1637 = vadd.f32 %v937, %v1636
          %v1638 = vpop.f32.mrb[0].mxu0
          %v1639 = vadd.f32 %v933, %v1638
          %v1640 = vpop.f32.mrb[0].mxu0
          %v1641 = vadd.f32 %v937, %v1640
          %1642 = vdwg.mxu0
          %v1643 = vxor.u32 %v1459, 2147483648
          %v1644 = vxor.u32 %v1461, 2147483648
          %v1645 = vxor.u32 %v1463, 2147483648
          %v1646 = vxor.u32 %v1465, 2147483648
          %v1647 = vxor.u32 %v1469, 2147483648
          %v1648 = vxor.u32 %v1471, 2147483648
          %v1649 = vxor.u32 %v1473, 2147483648
          %v1650 = vxor.u32 %v1475, 2147483648
          %v1651 = vxor.u32 %v1479, 2147483648
          %v1652 = vxor.u32 %v1481, 2147483648
          %v1653 = vxor.u32 %v1483, 2147483648
          %v1654 = vxor.u32 %v1485, 2147483648
          %v1655 = vxor.u32 %v1489, 2147483648
          %v1656 = vxor.u32 %v1491, 2147483648
          %v1657 = vxor.u32 %v1493, 2147483648
          %v1658 = vxor.u32 %v1495, 2147483648
          %v1659 = vmul.f32 %v1643, 1.442695
          %v1660 = vpow.pop %v1659
          %v1661 = vmul.f32 %v1644, 1.442695
          %v1662 = vpow.pop %v1661
          %v1663 = vmul.f32 %v1645, 1.442695
          %v1664 = vpow.pop %v1663
          %v1665 = vmul.f32 %v1646, 1.442695
          %v1666 = vpow.pop %v1665
          %v1667 = vmul.f32 %v1647, 1.442695
          %v1668 = vpow.pop %v1667
          %v1669 = vmul.f32 %v1648, 1.442695
          %v1670 = vpow.pop %v1669
          %v1671 = vmul.f32 %v1649, 1.442695
          %v1672 = vpow.pop %v1671
          %v1673 = vmul.f32 %v1650, 1.442695
          %v1674 = vpow.pop %v1673
          %v1675 = vmul.f32 %v1651, 1.442695
          %v1676 = vpow.pop %v1675
          %v1677 = vmul.f32 %v1652, 1.442695
          %v1678 = vpow.pop %v1677
          %v1679 = vmul.f32 %v1653, 1.442695
          %v1680 = vpow.pop %v1679
          %v1681 = vmul.f32 %v1654, 1.442695
          %v1682 = vpow.pop %v1681
          %v1683 = vmul.f32 %v1655, 1.442695
          %v1684 = vpow.pop %v1683
          %v1685 = vmul.f32 %v1656, 1.442695
          %v1686 = vpow.pop %v1685
          %v1687 = vmul.f32 %v1657, 1.442695
          %v1688 = vpow.pop %v1687
          %v1689 = vmul.f32 %v1658, 1.442695
          %v1690 = vpow.pop %v1689
          %v1691 = vadd.f32 %v1660, 1.0
          %v1692 = vadd.f32 %v1662, 1.0
          %v1693 = vadd.f32 %v1664, 1.0
          %v1694 = vadd.f32 %v1666, 1.0
          %v1695 = vadd.f32 %v1668, 1.0
          %v1696 = vadd.f32 %v1670, 1.0
          %v1697 = vadd.f32 %v1672, 1.0
          %v1698 = vadd.f32 %v1674, 1.0
          %v1699 = vadd.f32 %v1676, 1.0
          %v1700 = vadd.f32 %v1678, 1.0
          %v1701 = vadd.f32 %v1680, 1.0
          %v1702 = vadd.f32 %v1682, 1.0
          %v1703 = vadd.f32 %v1684, 1.0
          %v1704 = vadd.f32 %v1686, 1.0
          %v1705 = vadd.f32 %v1688, 1.0
          %v1706 = vadd.f32 %v1690, 1.0
          %v1707 = vrcp.pop %v1691
          %v1708 = vmul.f32 1.0, %v1707
          %v1709 = vrcp.pop %v1692
          %v1710 = vmul.f32 1.0, %v1709
          %v1711 = vrcp.pop %v1693
          %v1712 = vmul.f32 1.0, %v1711
          %v1713 = vrcp.pop %v1694
          %v1714 = vmul.f32 1.0, %v1713
          %v1715 = vrcp.pop %v1695
          %v1716 = vmul.f32 1.0, %v1715
          %v1717 = vrcp.pop %v1696
          %v1718 = vmul.f32 1.0, %v1717
          %v1719 = vrcp.pop %v1697
          %v1720 = vmul.f32 1.0, %v1719
          %v1721 = vrcp.pop %v1698
          %v1722 = vmul.f32 1.0, %v1721
          %v1723 = vrcp.pop %v1699
          %v1724 = vmul.f32 1.0, %v1723
          %v1725 = vrcp.pop %v1700
          %v1726 = vmul.f32 1.0, %v1725
          %v1727 = vrcp.pop %v1701
          %v1728 = vmul.f32 1.0, %v1727
          %v1729 = vrcp.pop %v1702
          %v1730 = vmul.f32 1.0, %v1729
          %v1731 = vrcp.pop %v1703
          %v1732 = vmul.f32 1.0, %v1731
          %v1733 = vrcp.pop %v1704
          %v1734 = vmul.f32 1.0, %v1733
          %v1735 = vrcp.pop %v1705
          %v1736 = vmul.f32 1.0, %v1735
          %v1737 = vrcp.pop %v1706
          %v1738 = vmul.f32 1.0, %v1737
          %v1739 = vtanh.pop %v1532
          %v1740 = vtanh.pop %v1534
          %v1741 = vtanh.pop %v1536
          %v1742 = vtanh.pop %v1538
          %v1743 = vtanh.pop %v1542
          %v1744 = vtanh.pop %v1544
          %v1745 = vtanh.pop %v1546
          %v1746 = vtanh.pop %v1548
          %v1747 = vtanh.pop %v1552
          %v1748 = vtanh.pop %v1554
          %v1749 = vtanh.pop %v1556
          %v1750 = vtanh.pop %v1558
          %v1751 = vtanh.pop %v1562
          %v1752 = vtanh.pop %v1564
          %v1753 = vtanh.pop %v1566
          %v1754 = vtanh.pop %v1568
          %v1755 = vxor.u32 %v1605, 2147483648
          %v1756 = vxor.u32 %v1607, 2147483648
          %v1757 = vxor.u32 %v1609, 2147483648
          %v1758 = vxor.u32 %v1611, 2147483648
          %v1759 = vxor.u32 %v1615, 2147483648
          %v1760 = vxor.u32 %v1617, 2147483648
          %v1761 = vxor.u32 %v1619, 2147483648
          %v1762 = vxor.u32 %v1621, 2147483648
          %v1763 = vxor.u32 %v1625, 2147483648
          %v1764 = vxor.u32 %v1627, 2147483648
          %v1765 = vxor.u32 %v1629, 2147483648
          %v1766 = vxor.u32 %v1631, 2147483648
          %v1767 = vxor.u32 %v1635, 2147483648
          %v1768 = vxor.u32 %v1637, 2147483648
          %v1769 = vxor.u32 %v1639, 2147483648
          %v1770 = vxor.u32 %v1641, 2147483648
          %v1771 = vmul.f32 %v1755, 1.442695
          %v1772 = vpow.pop %v1771
          %v1773 = vmul.f32 %v1756, 1.442695
          %v1774 = vpow.pop %v1773
          %v1775 = vmul.f32 %v1757, 1.442695
          %v1776 = vpow.pop %v1775
          %v1777 = vmul.f32 %v1758, 1.442695
          %v1778 = vpow.pop %v1777
          %v1779 = vmul.f32 %v1759, 1.442695
          %v1780 = vpow.pop %v1779
          %v1781 = vmul.f32 %v1760, 1.442695
          %v1782 = vpow.pop %v1781
          %v1783 = vmul.f32 %v1761, 1.442695
          %v1784 = vpow.pop %v1783
          %v1785 = vmul.f32 %v1762, 1.442695
          %v1786 = vpow.pop %v1785
          %v1787 = vmul.f32 %v1763, 1.442695
          %v1788 = vpow.pop %v1787
          %v1789 = vmul.f32 %v1764, 1.442695
          %v1790 = vpow.pop %v1789
          %v1791 = vmul.f32 %v1765, 1.442695
          %v1792 = vpow.pop %v1791
          %v1793 = vmul.f32 %v1766, 1.442695
          %v1794 = vpow.pop %v1793
          %v1795 = vmul.f32 %v1767, 1.442695
          %v1796 = vpow.pop %v1795
          %v1797 = vmul.f32 %v1768, 1.442695
          %v1798 = vpow.pop %v1797
          %v1799 = vmul.f32 %v1769, 1.442695
          %v1800 = vpow.pop %v1799
          %v1801 = vmul.f32 %v1770, 1.442695
          %v1802 = vpow.pop %v1801
          %v1803 = vadd.f32 %v1772, 1.0
          %v1804 = vadd.f32 %v1774, 1.0
          %v1805 = vadd.f32 %v1776, 1.0
          %v1806 = vadd.f32 %v1778, 1.0
          %v1807 = vadd.f32 %v1780, 1.0
          %v1808 = vadd.f32 %v1782, 1.0
          %v1809 = vadd.f32 %v1784, 1.0
          %v1810 = vadd.f32 %v1786, 1.0
          %v1811 = vadd.f32 %v1788, 1.0
          %v1812 = vadd.f32 %v1790, 1.0
          %v1813 = vadd.f32 %v1792, 1.0
          %v1814 = vadd.f32 %v1794, 1.0
          %v1815 = vadd.f32 %v1796, 1.0
          %v1816 = vadd.f32 %v1798, 1.0
          %v1817 = vadd.f32 %v1800, 1.0
          %v1818 = vadd.f32 %v1802, 1.0
          %v1819 = vrcp.pop %v1803
          %v1820 = vmul.f32 1.0, %v1819
          %v1821 = vrcp.pop %v1804
          %v1822 = vmul.f32 1.0, %v1821
          %v1823 = vrcp.pop %v1805
          %v1824 = vmul.f32 1.0, %v1823
          %v1825 = vrcp.pop %v1806
          %v1826 = vmul.f32 1.0, %v1825
          %v1827 = vrcp.pop %v1807
          %v1828 = vmul.f32 1.0, %v1827
          %v1829 = vrcp.pop %v1808
          %v1830 = vmul.f32 1.0, %v1829
          %v1831 = vrcp.pop %v1809
          %v1832 = vmul.f32 1.0, %v1831
          %v1833 = vrcp.pop %v1810
          %v1834 = vmul.f32 1.0, %v1833
          %v1835 = vrcp.pop %v1811
          %v1836 = vmul.f32 1.0, %v1835
          %v1837 = vrcp.pop %v1812
          %v1838 = vmul.f32 1.0, %v1837
          %v1839 = vrcp.pop %v1813
          %v1840 = vmul.f32 1.0, %v1839
          %v1841 = vrcp.pop %v1814
          %v1842 = vmul.f32 1.0, %v1841
          %v1843 = vrcp.pop %v1815
          %v1844 = vmul.f32 1.0, %v1843
          %v1845 = vrcp.pop %v1816
          %v1846 = vmul.f32 1.0, %v1845
          %v1847 = vrcp.pop %v1817
          %v1848 = vmul.f32 1.0, %v1847
          %v1849 = vrcp.pop %v1818
          %v1850 = vmul.f32 1.0, %v1849
          %v1851 = vmul.f32 %v1708, %v1739
          %v1852 = vmul.f32 %v1710, %v1740
          %v1853 = vmul.f32 %v1712, %v1741
          %v1854 = vmul.f32 %v1714, %v1742
          %v1855 = vmul.f32 %v1716, %v1743
          %v1856 = vmul.f32 %v1718, %v1744
          %v1857 = vmul.f32 %v1720, %v1745
          %v1858 = vmul.f32 %v1722, %v1746
          %v1859 = vmul.f32 %v1724, %v1747
          %v1860 = vmul.f32 %v1726, %v1748
          %v1861 = vmul.f32 %v1728, %v1749
          %v1862 = vmul.f32 %v1730, %v1750
          %v1863 = vmul.f32 %v1732, %v1751
          %v1864 = vmul.f32 %v1734, %v1752
          %v1865 = vmul.f32 %v1736, %v1753
          %v1866 = vmul.f32 %v1738, %v1754
          %v1867 = vtanh.pop %v1851
          %v1868 = vtanh.pop %v1852
          %v1869 = vtanh.pop %v1853
          %v1870 = vtanh.pop %v1854
          %v1871 = vtanh.pop %v1855
          %v1872 = vtanh.pop %v1856
          %v1873 = vtanh.pop %v1857
          %v1874 = vtanh.pop %v1858
          %v1875 = vtanh.pop %v1859
          %v1876 = vtanh.pop %v1860
          %v1877 = vtanh.pop %v1861
          %v1878 = vtanh.pop %v1862
          %v1879 = vtanh.pop %v1863
          %v1880 = vtanh.pop %v1864
          %v1881 = vtanh.pop %v1865
          %v1882 = vtanh.pop %v1866
          %v1883 = vmul.f32 %v1820, %v1867
          %v1884 = vmul.f32 %v1822, %v1868
          %v1885 = vmul.f32 %v1824, %v1869
          %v1886 = vmul.f32 %v1826, %v1870
          %v1887 = vmul.f32 %v1828, %v1871
          %v1888 = vmul.f32 %v1830, %v1872
          %v1889 = vmul.f32 %v1832, %v1873
          %v1890 = vmul.f32 %v1834, %v1874
          %v1891 = vmul.f32 %v1836, %v1875
          %v1892 = vmul.f32 %v1838, %v1876
          %v1893 = vmul.f32 %v1840, %v1877
          %v1894 = vmul.f32 %v1842, %v1878
          %v1895 = vmul.f32 %v1844, %v1879
          %v1896 = vmul.f32 %v1846, %v1880
          %v1897 = vmul.f32 %v1848, %v1881
          %v1898 = vmul.f32 %v1850, %v1882
          %v1899 = vpack.c.bf16 %v1885, %v1883
          %v1900 = vpack.c.bf16 %v1886, %v1884
          %v1901 = vpack.c.bf16 %v1889, %v1887
          %v1902 = vpack.c.bf16 %v1890, %v1888
          %v1903 = vpack.c.bf16 %v1893, %v1891
          %v1904 = vpack.c.bf16 %v1894, %v1892
          %v1905 = vpack.c.bf16 %v1897, %v1895
          %v1906 = vpack.c.bf16 %v1898, %v1896
          %v1907 = vld [vmem:[#allocation9] sm:$0xff]
          %v1908 = vld [vmem:[#allocation9 + $0x8] sm:$0xff]
          %v1909 = vld [vmem:[#allocation9 + $0x10] sm:$0xff]
          %v1910 = vld [vmem:[#allocation9 + $0x18] sm:$0xff]
          %v1911 = vld [vmem:[#allocation9 + $0x20] sm:$0xff]
          %v1912 = vld [vmem:[#allocation9 + $0x28] sm:$0xff]
          %v1913 = vld [vmem:[#allocation9 + $0x30] sm:$0xff]
          %v1914 = vld [vmem:[#allocation9 + $0x38] sm:$0xff]
          %v1915 = vld [vmem:[#allocation9 + $0x40] sm:$0xff]
          %v1916 = vld [vmem:[#allocation9 + $0x48] sm:$0xff]
          %v1917 = vld [vmem:[#allocation9 + $0x50] sm:$0xff]
          %v1918 = vld [vmem:[#allocation9 + $0x58] sm:$0xff]
          %v1919 = vld [vmem:[#allocation9 + $0x60] sm:$0xff]
          %v1920 = vld [vmem:[#allocation9 + $0x68] sm:$0xff]
          %v1921 = vld [vmem:[#allocation9 + $0x70] sm:$0xff]
          %v1922 = vld [vmem:[#allocation9 + $0x78] sm:$0xff]
          %v1923 = vld [vmem:[#allocation9 + $0x80] sm:$0xff]
          %v1924 = vld [vmem:[#allocation9 + $0x88] sm:$0xff]
          %v1925 = vld [vmem:[#allocation9 + $0x90] sm:$0xff]
          %v1926 = vld [vmem:[#allocation9 + $0x98] sm:$0xff]
          %v1927 = vld [vmem:[#allocation9 + $0xa0] sm:$0xff]
          %v1928 = vld [vmem:[#allocation9 + $0xa8] sm:$0xff]
          %v1929 = vld [vmem:[#allocation9 + $0xb0] sm:$0xff]
          %v1930 = vld [vmem:[#allocation9 + $0xb8] sm:$0xff]
          %v1931 = vld [vmem:[#allocation9 + $0xc0] sm:$0xff]
          %v1932 = vld [vmem:[#allocation9 + $0xc8] sm:$0xff]
          %v1933 = vld [vmem:[#allocation9 + $0xd0] sm:$0xff]
          %v1934 = vld [vmem:[#allocation9 + $0xd8] sm:$0xff]
          %v1935 = vld [vmem:[#allocation9 + $0xe0] sm:$0xff]
          %v1936 = vld [vmem:[#allocation9 + $0xe8] sm:$0xff]
          %v1937 = vld [vmem:[#allocation9 + $0xf0] sm:$0xff]
          %v1938 = vld [vmem:[#allocation9 + $0xf8] sm:$0xff]
          %v1939 = vld [vmem:[#allocation9 + $0x100] sm:$0xff]
          %v1940 = vld [vmem:[#allocation9 + $0x108] sm:$0xff]
          %v1941 = vld [vmem:[#allocation9 + $0x110] sm:$0xff]
          %v1942 = vld [vmem:[#allocation9 + $0x118] sm:$0xff]
          %v1943 = vld [vmem:[#allocation9 + $0x120] sm:$0xff]
          %v1944 = vld [vmem:[#allocation9 + $0x128] sm:$0xff]
          %v1945 = vld [vmem:[#allocation9 + $0x130] sm:$0xff]
          %v1946 = vld [vmem:[#allocation9 + $0x138] sm:$0xff]
          %v1947 = vld [vmem:[#allocation9 + $0x140] sm:$0xff]
          %v1948 = vld [vmem:[#allocation9 + $0x148] sm:$0xff]
          %v1949 = vld [vmem:[#allocation9 + $0x150] sm:$0xff]
          %v1950 = vld [vmem:[#allocation9 + $0x158] sm:$0xff]
          %v1951 = vld [vmem:[#allocation9 + $0x160] sm:$0xff]
          %v1952 = vld [vmem:[#allocation9 + $0x168] sm:$0xff]
          %v1953 = vld [vmem:[#allocation9 + $0x170] sm:$0xff]
          %v1954 = vld [vmem:[#allocation9 + $0x178] sm:$0xff]
          %v1955 = vld [vmem:[#allocation9 + $0x180] sm:$0xff]
          %v1956 = vld [vmem:[#allocation9 + $0x188] sm:$0xff]
          %v1957 = vld [vmem:[#allocation9 + $0x190] sm:$0xff]
          %v1958 = vld [vmem:[#allocation9 + $0x198] sm:$0xff]
          %v1959 = vld [vmem:[#allocation9 + $0x1a0] sm:$0xff]
          %v1960 = vld [vmem:[#allocation9 + $0x1a8] sm:$0xff]
          %v1961 = vld [vmem:[#allocation9 + $0x1b0] sm:$0xff]
          %v1962 = vld [vmem:[#allocation9 + $0x1b8] sm:$0xff]
          %v1963 = vld [vmem:[#allocation9 + $0x1c0] sm:$0xff]
          %v1964 = vld [vmem:[#allocation9 + $0x1c8] sm:$0xff]
          %v1965 = vld [vmem:[#allocation9 + $0x1d0] sm:$0xff]
          %v1966 = vld [vmem:[#allocation9 + $0x1d8] sm:$0xff]
          %v1967 = vld [vmem:[#allocation9 + $0x1e0] sm:$0xff]
          %v1968 = vld [vmem:[#allocation9 + $0x1e8] sm:$0xff]
          %v1969 = vld [vmem:[#allocation9 + $0x1f0] sm:$0xff]
          %v1970 = vld [vmem:[#allocation9 + $0x1f8] sm:$0xff]
          %v1971 = vld [vmem:[#allocation9 + $0x200] sm:$0xff]
          %v1972 = vld [vmem:[#allocation9 + $0x208] sm:$0xff]
          %v1973 = vld [vmem:[#allocation9 + $0x210] sm:$0xff]
          %v1974 = vld [vmem:[#allocation9 + $0x218] sm:$0xff]
          %v1975 = vld [vmem:[#allocation9 + $0x220] sm:$0xff]
          %v1976 = vld [vmem:[#allocation9 + $0x228] sm:$0xff]
          %v1977 = vld [vmem:[#allocation9 + $0x230] sm:$0xff]
          %v1978 = vld [vmem:[#allocation9 + $0x238] sm:$0xff]
          %v1979 = vld [vmem:[#allocation9 + $0x240] sm:$0xff]
          %v1980 = vld [vmem:[#allocation9 + $0x248] sm:$0xff]
          %v1981 = vld [vmem:[#allocation9 + $0x250] sm:$0xff]
          %v1982 = vld [vmem:[#allocation9 + $0x258] sm:$0xff]
          %v1983 = vld [vmem:[#allocation9 + $0x260] sm:$0xff]
          %v1984 = vld [vmem:[#allocation9 + $0x268] sm:$0xff]
          %v1985 = vld [vmem:[#allocation9 + $0x270] sm:$0xff]
          %v1986 = vld [vmem:[#allocation9 + $0x278] sm:$0xff]
          %v1987 = vld [vmem:[#allocation9 + $0x280] sm:$0xff]
          %v1988 = vld [vmem:[#allocation9 + $0x288] sm:$0xff]
          %v1989 = vld [vmem:[#allocation9 + $0x290] sm:$0xff]
          %v1990 = vld [vmem:[#allocation9 + $0x298] sm:$0xff]
          %v1991 = vld [vmem:[#allocation9 + $0x2a0] sm:$0xff]
          %v1992 = vld [vmem:[#allocation9 + $0x2a8] sm:$0xff]
          %v1993 = vld [vmem:[#allocation9 + $0x2b0] sm:$0xff]
          %v1994 = vld [vmem:[#allocation9 + $0x2b8] sm:$0xff]
          %v1995 = vld [vmem:[#allocation9 + $0x2c0] sm:$0xff]
          %v1996 = vld [vmem:[#allocation9 + $0x2c8] sm:$0xff]
          %v1997 = vld [vmem:[#allocation9 + $0x2d0] sm:$0xff]
          %v1998 = vld [vmem:[#allocation9 + $0x2d8] sm:$0xff]
          %v1999 = vld [vmem:[#allocation9 + $0x2e0] sm:$0xff]
          %v2000 = vld [vmem:[#allocation9 + $0x2e8] sm:$0xff]
          %v2001 = vld [vmem:[#allocation9 + $0x2f0] sm:$0xff]
          %v2002 = vld [vmem:[#allocation9 + $0x2f8] sm:$0xff]
          %v2003 = vld [vmem:[%s6] sm:$0x3f]
          %v2005 = vlaneseq
          %v2006 = vshrl.u32 %v2005, 7
          %v2007 = vsub.s32 0, %v2006
          %v2008 = vrot.slane %v2003, %v2007
          %v2009 = vlaneseq
          %v2010 = vshrl.u32 %v2009, 7
          %v2011 = vsub.s32 1, %v2010
          %v2012 = vrot.slane %v2003, %v2011
          %v2013 = vlaneseq
          %v2014 = vshrl.u32 %v2013, 7
          %v2015 = vsub.s32 2, %v2014
          %v2016 = vrot.slane %v2003, %v2015
          %v2017 = vlaneseq
          %v2018 = vshrl.u32 %v2017, 7
          %v2019 = vsub.s32 3, %v2018
          %v2020 = vrot.slane %v2003, %v2019
          %v2021 = vlaneseq
          %v2022 = vshrl.u32 %v2021, 7
          %v2023 = vsub.s32 4, %v2022
          %v2024 = vrot.slane %v2003, %v2023
          %v2025 = vlaneseq
          %v2026 = vshrl.u32 %v2025, 7
          %v2027 = vsub.s32 5, %v2026
          %v2028 = vrot.slane %v2003, %v2027
          %v2131 = vunpack.c.l.b16 %v1907
          %v2132 = vunpack.c.h.b16 %v1907
          %v2133 = vunpack.c.l.b16 %v1908
          %v2134 = vunpack.c.h.b16 %v1908
          %v2135 = vunpack.c.l.b16 %v1909
          %v2136 = vunpack.c.h.b16 %v1909
          %v2137 = vunpack.c.l.b16 %v1910
          %v2138 = vunpack.c.h.b16 %v1910
          %v2139 = vunpack.c.l.b16 %v1911
          %v2140 = vunpack.c.h.b16 %v1911
          %v2141 = vunpack.c.l.b16 %v1912
          %v2142 = vunpack.c.h.b16 %v1912
          %v2143 = vunpack.c.l.b16 %v1913
          %v2144 = vunpack.c.h.b16 %v1913
          %v2145 = vunpack.c.l.b16 %v1914
          %v2146 = vunpack.c.h.b16 %v1914
          %v2147 = vunpack.c.l.b16 %v1915
          %v2148 = vunpack.c.h.b16 %v1915
          %v2149 = vunpack.c.l.b16 %v1916
          %v2150 = vunpack.c.h.b16 %v1916
          %v2151 = vunpack.c.l.b16 %v1917
          %v2152 = vunpack.c.h.b16 %v1917
          %v2153 = vunpack.c.l.b16 %v1918
          %v2154 = vunpack.c.h.b16 %v1918
          %v2155 = vunpack.c.l.b16 %v1919
          %v2156 = vunpack.c.h.b16 %v1919
          %v2157 = vunpack.c.l.b16 %v1920
          %v2158 = vunpack.c.h.b16 %v1920
          %v2159 = vunpack.c.l.b16 %v1921
          %v2160 = vunpack.c.h.b16 %v1921
          %v2161 = vunpack.c.l.b16 %v1922
          %v2162 = vunpack.c.h.b16 %v1922
          %v2163 = vunpack.c.l.b16 %v1923
          %v2164 = vunpack.c.h.b16 %v1923
          %v2165 = vunpack.c.l.b16 %v1924
          %v2166 = vunpack.c.h.b16 %v1924
          %v2167 = vunpack.c.l.b16 %v1925
          %v2168 = vunpack.c.h.b16 %v1925
          %v2169 = vunpack.c.l.b16 %v1926
          %v2170 = vunpack.c.h.b16 %v1926
          %v2171 = vunpack.c.l.b16 %v1927
          %v2172 = vunpack.c.h.b16 %v1927
          %v2173 = vunpack.c.l.b16 %v1928
          %v2174 = vunpack.c.h.b16 %v1928
          %v2175 = vunpack.c.l.b16 %v1929
          %v2176 = vunpack.c.h.b16 %v1929
          %v2177 = vunpack.c.l.b16 %v1930
          %v2178 = vunpack.c.h.b16 %v1930
          %v2179 = vunpack.c.l.b16 %v1931
          %v2180 = vunpack.c.h.b16 %v1931
          %v2181 = vunpack.c.l.b16 %v1932
          %v2182 = vunpack.c.h.b16 %v1932
          %v2183 = vunpack.c.l.b16 %v1933
          %v2184 = vunpack.c.h.b16 %v1933
          %v2185 = vunpack.c.l.b16 %v1934
          %v2186 = vunpack.c.h.b16 %v1934
          %v2187 = vunpack.c.l.b16 %v1935
          %v2188 = vunpack.c.h.b16 %v1935
          %v2189 = vunpack.c.l.b16 %v1936
          %v2190 = vunpack.c.h.b16 %v1936
          %v2191 = vunpack.c.l.b16 %v1937
          %v2192 = vunpack.c.h.b16 %v1937
          %v2193 = vunpack.c.l.b16 %v1938
          %v2194 = vunpack.c.h.b16 %v1938
          %v2195 = vunpack.c.l.b16 %v1939
          %v2196 = vunpack.c.h.b16 %v1939
          %v2197 = vunpack.c.l.b16 %v1940
          %v2198 = vunpack.c.h.b16 %v1940
          %v2199 = vunpack.c.l.b16 %v1941
          %v2200 = vunpack.c.h.b16 %v1941
          %v2201 = vunpack.c.l.b16 %v1942
          %v2202 = vunpack.c.h.b16 %v1942
          %v2203 = vunpack.c.l.b16 %v1943
          %v2204 = vunpack.c.h.b16 %v1943
          %v2205 = vunpack.c.l.b16 %v1944
          %v2206 = vunpack.c.h.b16 %v1944
          %v2207 = vunpack.c.l.b16 %v1945
          %v2208 = vunpack.c.h.b16 %v1945
          %v2209 = vunpack.c.l.b16 %v1946
          %v2210 = vunpack.c.h.b16 %v1946
          %v2211 = vunpack.c.l.b16 %v1947
          %v2212 = vunpack.c.h.b16 %v1947
          %v2213 = vunpack.c.l.b16 %v1948
          %v2214 = vunpack.c.h.b16 %v1948
          %v2215 = vunpack.c.l.b16 %v1949
          %v2216 = vunpack.c.h.b16 %v1949
          %v2217 = vunpack.c.l.b16 %v1950
          %v2218 = vunpack.c.h.b16 %v1950
          %v2219 = vunpack.c.l.b16 %v1951
          %v2220 = vunpack.c.h.b16 %v1951
          %v2221 = vunpack.c.l.b16 %v1952
          %v2222 = vunpack.c.h.b16 %v1952
          %v2223 = vunpack.c.l.b16 %v1953
          %v2224 = vunpack.c.h.b16 %v1953
          %v2225 = vunpack.c.l.b16 %v1954
          %v2226 = vunpack.c.h.b16 %v1954
          %v2227 = vunpack.c.l.b16 %v1955
          %v2228 = vunpack.c.h.b16 %v1955
          %v2229 = vunpack.c.l.b16 %v1956
          %v2230 = vunpack.c.h.b16 %v1956
          %v2231 = vunpack.c.l.b16 %v1957
          %v2232 = vunpack.c.h.b16 %v1957
          %v2233 = vunpack.c.l.b16 %v1958
          %v2234 = vunpack.c.h.b16 %v1958
          %v2235 = vunpack.c.l.b16 %v1959
          %v2236 = vunpack.c.h.b16 %v1959
          %v2237 = vunpack.c.l.b16 %v1960
          %v2238 = vunpack.c.h.b16 %v1960
          %v2239 = vunpack.c.l.b16 %v1961
          %v2240 = vunpack.c.h.b16 %v1961
          %v2241 = vunpack.c.l.b16 %v1962
          %v2242 = vunpack.c.h.b16 %v1962
          %v2243 = vunpack.c.l.b16 %v1963
          %v2244 = vunpack.c.h.b16 %v1963
          %v2245 = vunpack.c.l.b16 %v1964
          %v2246 = vunpack.c.h.b16 %v1964
          %v2247 = vunpack.c.l.b16 %v1965
          %v2248 = vunpack.c.h.b16 %v1965
          %v2249 = vunpack.c.l.b16 %v1966
          %v2250 = vunpack.c.h.b16 %v1966
          %v2251 = vunpack.c.l.b16 %v1967
          %v2252 = vunpack.c.h.b16 %v1967
          %v2253 = vunpack.c.l.b16 %v1968
          %v2254 = vunpack.c.h.b16 %v1968
          %v2255 = vunpack.c.l.b16 %v1969
          %v2256 = vunpack.c.h.b16 %v1969
          %v2257 = vunpack.c.l.b16 %v1970
          %v2258 = vunpack.c.h.b16 %v1970
          %v2259 = vunpack.c.l.b16 %v1971
          %v2260 = vunpack.c.h.b16 %v1971
          %v2261 = vunpack.c.l.b16 %v1972
          %v2262 = vunpack.c.h.b16 %v1972
          %v2263 = vunpack.c.l.b16 %v1973
          %v2264 = vunpack.c.h.b16 %v1973
          %v2265 = vunpack.c.l.b16 %v1974
          %v2266 = vunpack.c.h.b16 %v1974
          %v2267 = vunpack.c.l.b16 %v1975
          %v2268 = vunpack.c.h.b16 %v1975
          %v2269 = vunpack.c.l.b16 %v1976
          %v2270 = vunpack.c.h.b16 %v1976
          %v2271 = vunpack.c.l.b16 %v1977
          %v2272 = vunpack.c.h.b16 %v1977
          %v2273 = vunpack.c.l.b16 %v1978
          %v2274 = vunpack.c.h.b16 %v1978
          %v2275 = vunpack.c.l.b16 %v1979
          %v2276 = vunpack.c.h.b16 %v1979
          %v2277 = vunpack.c.l.b16 %v1980
          %v2278 = vunpack.c.h.b16 %v1980
          %v2279 = vunpack.c.l.b16 %v1981
          %v2280 = vunpack.c.h.b16 %v1981
          %v2281 = vunpack.c.l.b16 %v1982
          %v2282 = vunpack.c.h.b16 %v1982
          %v2283 = vunpack.c.l.b16 %v1983
          %v2284 = vunpack.c.h.b16 %v1983
          %v2285 = vunpack.c.l.b16 %v1984
          %v2286 = vunpack.c.h.b16 %v1984
          %v2287 = vunpack.c.l.b16 %v1985
          %v2288 = vunpack.c.h.b16 %v1985
          %v2289 = vunpack.c.l.b16 %v1986
          %v2290 = vunpack.c.h.b16 %v1986
          %v2291 = vunpack.c.l.b16 %v1987
          %v2292 = vunpack.c.h.b16 %v1987
          %v2293 = vunpack.c.l.b16 %v1988
          %v2294 = vunpack.c.h.b16 %v1988
          %v2295 = vunpack.c.l.b16 %v1989
          %v2296 = vunpack.c.h.b16 %v1989
          %v2297 = vunpack.c.l.b16 %v1990
          %v2298 = vunpack.c.h.b16 %v1990
          %v2299 = vunpack.c.l.b16 %v1991
          %v2300 = vunpack.c.h.b16 %v1991
          %v2301 = vunpack.c.l.b16 %v1992
          %v2302 = vunpack.c.h.b16 %v1992
          %v2303 = vunpack.c.l.b16 %v1993
          %v2304 = vunpack.c.h.b16 %v1993
          %v2305 = vunpack.c.l.b16 %v1994
          %v2306 = vunpack.c.h.b16 %v1994
          %v2307 = vunpack.c.l.b16 %v1995
          %v2308 = vunpack.c.h.b16 %v1995
          %v2309 = vunpack.c.l.b16 %v1996
          %v2310 = vunpack.c.h.b16 %v1996
          %v2311 = vunpack.c.l.b16 %v1997
          %v2312 = vunpack.c.h.b16 %v1997
          %v2313 = vunpack.c.l.b16 %v1998
          %v2314 = vunpack.c.h.b16 %v1998
          %v2315 = vunpack.c.l.b16 %v1999
          %v2316 = vunpack.c.h.b16 %v1999
          %v2317 = vunpack.c.l.b16 %v2000
          %v2318 = vunpack.c.h.b16 %v2000
          %v2319 = vunpack.c.l.b16 %v2001
          %v2320 = vunpack.c.h.b16 %v2001
          %v2321 = vunpack.c.l.b16 %v2002
          %v2322 = vunpack.c.h.b16 %v2002
          %v2323 = vpack.c.b16 %v2137, %v2131
          %v2324 = vpack.c.b16 %v2138, %v2132
          %v2325 = vpack.c.b16 %v2139, %v2133
          %v2326 = vpack.c.b16 %v2140, %v2134
          %v2327 = vpack.c.b16 %v2141, %v2135
          %v2328 = vpack.c.b16 %v2142, %v2136
          %v2329 = vpack.c.b16 %v2149, %v2143
          %v2330 = vpack.c.b16 %v2150, %v2144
          %v2331 = vpack.c.b16 %v2151, %v2145
          %v2332 = vpack.c.b16 %v2152, %v2146
          %v2333 = vpack.c.b16 %v2153, %v2147
          %v2334 = vpack.c.b16 %v2154, %v2148
          %v2335 = vpack.c.b16 %v2161, %v2155
          %v2336 = vpack.c.b16 %v2162, %v2156
          %v2337 = vpack.c.b16 %v2163, %v2157
          %v2338 = vpack.c.b16 %v2164, %v2158
          %v2339 = vpack.c.b16 %v2165, %v2159
          %v2340 = vpack.c.b16 %v2166, %v2160
          %v2341 = vpack.c.b16 %v2173, %v2167
          %v2342 = vpack.c.b16 %v2174, %v2168
          %v2343 = vpack.c.b16 %v2175, %v2169
          %v2344 = vpack.c.b16 %v2176, %v2170
          %v2345 = vpack.c.b16 %v2177, %v2171
          %v2346 = vpack.c.b16 %v2178, %v2172
          %v2347 = vpack.c.b16 %v2185, %v2179
          %v2348 = vpack.c.b16 %v2186, %v2180
          %v2349 = vpack.c.b16 %v2187, %v2181
          %v2350 = vpack.c.b16 %v2188, %v2182
          %v2351 = vpack.c.b16 %v2189, %v2183
          %v2352 = vpack.c.b16 %v2190, %v2184
          %v2353 = vpack.c.b16 %v2197, %v2191
          %v2354 = vpack.c.b16 %v2198, %v2192
          %v2355 = vpack.c.b16 %v2199, %v2193
          %v2356 = vpack.c.b16 %v2200, %v2194
          %v2357 = vpack.c.b16 %v2201, %v2195
          %v2358 = vpack.c.b16 %v2202, %v2196
          %v2359 = vpack.c.b16 %v2209, %v2203
          %v2360 = vpack.c.b16 %v2210, %v2204
          %v2361 = vpack.c.b16 %v2211, %v2205
          %v2362 = vpack.c.b16 %v2212, %v2206
          %v2363 = vpack.c.b16 %v2213, %v2207
          %v2364 = vpack.c.b16 %v2214, %v2208
          %v2365 = vpack.c.b16 %v2221, %v2215
          %v2366 = vpack.c.b16 %v2222, %v2216
          %v2367 = vpack.c.b16 %v2223, %v2217
          %v2368 = vpack.c.b16 %v2224, %v2218
          %v2369 = vpack.c.b16 %v2225, %v2219
          %v2370 = vpack.c.b16 %v2226, %v2220
          %v2371 = vpack.c.b16 %v2233, %v2227
          %v2372 = vpack.c.b16 %v2234, %v2228
          %v2373 = vpack.c.b16 %v2235, %v2229
          %v2374 = vpack.c.b16 %v2236, %v2230
          %v2375 = vpack.c.b16 %v2237, %v2231
          %v2376 = vpack.c.b16 %v2238, %v2232
          %v2377 = vpack.c.b16 %v2245, %v2239
          %v2378 = vpack.c.b16 %v2246, %v2240
          %v2379 = vpack.c.b16 %v2247, %v2241
          %v2380 = vpack.c.b16 %v2248, %v2242
          %v2381 = vpack.c.b16 %v2249, %v2243
          %v2382 = vpack.c.b16 %v2250, %v2244
          %v2383 = vpack.c.b16 %v2257, %v2251
          %v2384 = vpack.c.b16 %v2258, %v2252
          %v2385 = vpack.c.b16 %v2259, %v2253
          %v2386 = vpack.c.b16 %v2260, %v2254
          %v2387 = vpack.c.b16 %v2261, %v2255
          %v2388 = vpack.c.b16 %v2262, %v2256
          %v2389 = vpack.c.b16 %v2269, %v2263
          %v2390 = vpack.c.b16 %v2270, %v2264
          %v2391 = vpack.c.b16 %v2271, %v2265
          %v2392 = vpack.c.b16 %v2272, %v2266
          %v2393 = vpack.c.b16 %v2273, %v2267
          %v2394 = vpack.c.b16 %v2274, %v2268
          %v2395 = vpack.c.b16 %v2281, %v2275
          %v2396 = vpack.c.b16 %v2282, %v2276
          %v2397 = vpack.c.b16 %v2283, %v2277
          %v2398 = vpack.c.b16 %v2284, %v2278
          %v2399 = vpack.c.b16 %v2285, %v2279
          %v2400 = vpack.c.b16 %v2286, %v2280
          %v2401 = vpack.c.b16 %v2293, %v2287
          %v2402 = vpack.c.b16 %v2294, %v2288
          %v2403 = vpack.c.b16 %v2295, %v2289
          %v2404 = vpack.c.b16 %v2296, %v2290
          %v2405 = vpack.c.b16 %v2297, %v2291
          %v2406 = vpack.c.b16 %v2298, %v2292
          %v2407 = vpack.c.b16 %v2305, %v2299
          %v2408 = vpack.c.b16 %v2306, %v2300
          %v2409 = vpack.c.b16 %v2307, %v2301
          %v2410 = vpack.c.b16 %v2308, %v2302
          %v2411 = vpack.c.b16 %v2309, %v2303
          %v2412 = vpack.c.b16 %v2310, %v2304
          %v2413 = vpack.c.b16 %v2317, %v2311
          %v2414 = vpack.c.b16 %v2318, %v2312
          %v2415 = vpack.c.b16 %v2319, %v2313
          %v2416 = vpack.c.b16 %v2320, %v2314
          %v2417 = vpack.c.b16 %v2321, %v2315
          %v2418 = vpack.c.b16 %v2322, %v2316
          %2515 = vmatprep.subr.bf16.mxu0 %v2324
          %2516 = vmatpush1.bf16.msra.mxu0 %v2323
          %2517 = vmatprep.subr.bf16.mxu0 %v2330
          %2518 = vmatpush1.bf16.msra.mxu0 %v2329
          %2519 = vmatprep.subr.bf16.mxu0 %v2336
          %2520 = vmatpush1.bf16.msra.mxu0 %v2335
          %2521 = vmatprep.subr.bf16.mxu0 %v2342
          %2522 = vmatpush1.bf16.msra.mxu0 %v2341
          %2523 = vmatprep.subr.bf16.mxu0 %v2348
          %2524 = vmatpush1.bf16.msra.mxu0 %v2347
          %2525 = vmatprep.subr.bf16.mxu0 %v2354
          %2526 = vmatpush1.bf16.msra.mxu0 %v2353
          %2527 = vmatprep.subr.bf16.mxu0 %v2360
          %2528 = vmatpush1.bf16.msra.mxu0 %v2359
          %2529 = vmatprep.subr.bf16.mxu0 %v2366
          %2530 = vmatpush1.bf16.msra.mxu0 %v2365
          %2531 = vmatprep.subr.bf16.mxu0 %v2372
          %2532 = vmatpush1.bf16.msra.mxu0 %v2371
          %2533 = vmatprep.subr.bf16.mxu0 %v2378
          %2534 = vmatpush1.bf16.msra.mxu0 %v2377
          %2535 = vmatprep.subr.bf16.mxu0 %v2384
          %2536 = vmatpush1.bf16.msra.mxu0 %v2383
          %2537 = vmatprep.subr.bf16.mxu0 %v2390
          %2538 = vmatpush1.bf16.msra.mxu0 %v2389
          %2539 = vmatprep.subr.bf16.mxu0 %v2396
          %2540 = vmatpush1.bf16.msra.mxu0 %v2395
          %2541 = vmatprep.subr.bf16.mxu0 %v2402
          %2542 = vmatpush1.bf16.msra.mxu0 %v2401
          %2543 = vmatprep.subr.bf16.mxu0 %v2408
          %2544 = vmatpush1.bf16.msra.mxu0 %v2407
          %2545 = vmatprep.subr.bf16.mxu0 %v2414
          %2546 = vmatpush1.bf16.msra.mxu0 %v2413
          %2547 = vmatprep.mubr.bf16.mxu0 %v1900
          %2548 = vmatmul.mubr.bf16.gmra.mrb[0].mxu0 %v1899
          %v2549 = vpop.f32.mrb[0].mxu0
          %v2550 = vadd.f32 %v2008, %v2549
          %v2551 = vpop.f32.mrb[0].mxu0
          %v2552 = vadd.f32 %v2012, %v2551
          %v2553 = vpop.f32.mrb[0].mxu0
          %v2554 = vadd.f32 %v2008, %v2553
          %v2555 = vpop.f32.mrb[0].mxu0
          %v2556 = vadd.f32 %v2012, %v2555
          %2557 = vmatprep.mubr.bf16.mxu0 %v1902
          %2558 = vmatmul.mubr.bf16.gmra.mrb[0].mxu0 %v1901
          %v2559 = vpop.f32.mrb[0].mxu0
          %v2560 = vadd.f32 %v2008, %v2559
          %v2561 = vpop.f32.mrb[0].mxu0
          %v2562 = vadd.f32 %v2012, %v2561
          %v2563 = vpop.f32.mrb[0].mxu0
          %v2564 = vadd.f32 %v2008, %v2563
          %v2565 = vpop.f32.mrb[0].mxu0
          %v2566 = vadd.f32 %v2012, %v2565
          %2567 = vmatprep.mubr.bf16.mxu0 %v1904
          %2568 = vmatmul.mubr.bf16.gmra.mrb[0].mxu0 %v1903
          %v2569 = vpop.f32.mrb[0].mxu0
          %v2570 = vadd.f32 %v2008, %v2569
          %v2571 = vpop.f32.mrb[0].mxu0
          %v2572 = vadd.f32 %v2012, %v2571
          %v2573 = vpop.f32.mrb[0].mxu0
          %v2574 = vadd.f32 %v2008, %v2573
          %v2575 = vpop.f32.mrb[0].mxu0
          %v2576 = vadd.f32 %v2012, %v2575
          %2577 = vmatprep.mubr.bf16.mxu0 %v1906
          %2578 = vmatmul.mubr.bf16.gmra.mrb[0].mxu0 %v1905
          %v2579 = vpop.f32.mrb[0].mxu0
          %v2580 = vadd.f32 %v2008, %v2579
          %v2581 = vpop.f32.mrb[0].mxu0
          %v2582 = vadd.f32 %v2012, %v2581
          %v2583 = vpop.f32.mrb[0].mxu0
          %v2584 = vadd.f32 %v2008, %v2583
          %v2585 = vpop.f32.mrb[0].mxu0
          %v2586 = vadd.f32 %v2012, %v2585
          %2587 = vdwg.mxu0
          %2588 = vmatprep.subr.bf16.mxu0 %v2326
          %2589 = vmatpush1.bf16.msra.mxu0 %v2325
          %2590 = vmatprep.subr.bf16.mxu0 %v2332
          %2591 = vmatpush1.bf16.msra.mxu0 %v2331
          %2592 = vmatprep.subr.bf16.mxu0 %v2338
          %2593 = vmatpush1.bf16.msra.mxu0 %v2337
          %2594 = vmatprep.subr.bf16.mxu0 %v2344
          %2595 = vmatpush1.bf16.msra.mxu0 %v2343
          %2596 = vmatprep.subr.bf16.mxu0 %v2350
          %2597 = vmatpush1.bf16.msra.mxu0 %v2349
          %2598 = vmatprep.subr.bf16.mxu0 %v2356
          %2599 = vmatpush1.bf16.msra.mxu0 %v2355
          %2600 = vmatprep.subr.bf16.mxu0 %v2362
          %2601 = vmatpush1.bf16.msra.mxu0 %v2361
          %2602 = vmatprep.subr.bf16.mxu0 %v2368
          %2603 = vmatpush1.bf16.msra.mxu0 %v2367
          %2604 = vmatprep.subr.bf16.mxu0 %v2374
          %2605 = vmatpush1.bf16.msra.mxu0 %v2373
          %2606 = vmatprep.subr.bf16.mxu0 %v2380
          %2607 = vmatpush1.bf16.msra.mxu0 %v2379
          %2608 = vmatprep.subr.bf16.mxu0 %v2386
          %2609 = vmatpush1.bf16.msra.mxu0 %v2385
          %2610 = vmatprep.subr.bf16.mxu0 %v2392
          %2611 = vmatpush1.bf16.msra.mxu0 %v2391
          %2612 = vmatprep.subr.bf16.mxu0 %v2398
          %2613 = vmatpush1.bf16.msra.mxu0 %v2397
          %2614 = vmatprep.subr.bf16.mxu0 %v2404
          %2615 = vmatpush1.bf16.msra.mxu0 %v2403
          %2616 = vmatprep.subr.bf16.mxu0 %v2410
          %2617 = vmatpush1.bf16.msra.mxu0 %v2409
          %2618 = vmatprep.subr.bf16.mxu0 %v2416
          %2619 = vmatpush1.bf16.msra.mxu0 %v2415
          %2620 = vmatprep.mubr.bf16.mxu0 %v1900
          %2621 = vmatmul.mubr.bf16.gmra.mrb[0].mxu0 %v1899
          %v2622 = vpop.f32.mrb[0].mxu0
          %v2623 = vadd.f32 %v2016, %v2622
          %v2624 = vpop.f32.mrb[0].mxu0
          %v2625 = vadd.f32 %v2020, %v2624
          %v2626 = vpop.f32.mrb[0].mxu0
          %v2627 = vadd.f32 %v2016, %v2626
          %v2628 = vpop.f32.mrb[0].mxu0
          %v2629 = vadd.f32 %v2020, %v2628
          %2630 = vmatprep.mubr.bf16.mxu0 %v1902
          %2631 = vmatmul.mubr.bf16.gmra.mrb[0].mxu0 %v1901
          %v2632 = vpop.f32.mrb[0].mxu0
          %v2633 = vadd.f32 %v2016, %v2632
          %v2634 = vpop.f32.mrb[0].mxu0
          %v2635 = vadd.f32 %v2020, %v2634
          %v2636 = vpop.f32.mrb[0].mxu0
          %v2637 = vadd.f32 %v2016, %v2636
          %v2638 = vpop.f32.mrb[0].mxu0
          %v2639 = vadd.f32 %v2020, %v2638
          %2640 = vmatprep.mubr.bf16.mxu0 %v1904
          %2641 = vmatmul.mubr.bf16.gmra.mrb[0].mxu0 %v1903
          %v2642 = vpop.f32.mrb[0].mxu0
          %v2643 = vadd.f32 %v2016, %v2642
          %v2644 = vpop.f32.mrb[0].mxu0
          %v2645 = vadd.f32 %v2020, %v2644
          %v2646 = vpop.f32.mrb[0].mxu0
          %v2647 = vadd.f32 %v2016, %v2646
          %v2648 = vpop.f32.mrb[0].mxu0
          %v2649 = vadd.f32 %v2020, %v2648
          %2650 = vmatprep.mubr.bf16.mxu0 %v1906
          %2651 = vmatmul.mubr.bf16.gmra.mrb[0].mxu0 %v1905
          %v2652 = vpop.f32.mrb[0].mxu0
          %v2653 = vadd.f32 %v2016, %v2652
          %v2654 = vpop.f32.mrb[0].mxu0
          %v2655 = vadd.f32 %v2020, %v2654
          %v2656 = vpop.f32.mrb[0].mxu0
          %v2657 = vadd.f32 %v2016, %v2656
          %v2658 = vpop.f32.mrb[0].mxu0
          %v2659 = vadd.f32 %v2020, %v2658
          %2660 = vdwg.mxu0
          %2661 = vmatprep.subr.bf16.mxu0 %v2328
          %2662 = vmatpush1.bf16.msra.mxu0 %v2327
          %2663 = vmatprep.subr.bf16.mxu0 %v2334
          %2664 = vmatpush1.bf16.msra.mxu0 %v2333
          %2665 = vmatprep.subr.bf16.mxu0 %v2340
          %2666 = vmatpush1.bf16.msra.mxu0 %v2339
          %2667 = vmatprep.subr.bf16.mxu0 %v2346
          %2668 = vmatpush1.bf16.msra.mxu0 %v2345
          %2669 = vmatprep.subr.bf16.mxu0 %v2352
          %2670 = vmatpush1.bf16.msra.mxu0 %v2351
          %2671 = vmatprep.subr.bf16.mxu0 %v2358
          %2672 = vmatpush1.bf16.msra.mxu0 %v2357
          %2673 = vmatprep.subr.bf16.mxu0 %v2364
          %2674 = vmatpush1.bf16.msra.mxu0 %v2363
          %2675 = vmatprep.subr.bf16.mxu0 %v2370
          %2676 = vmatpush1.bf16.msra.mxu0 %v2369
          %2677 = vmatprep.subr.bf16.mxu0 %v2376
          %2678 = vmatpush1.bf16.msra.mxu0 %v2375
          %2679 = vmatprep.subr.bf16.mxu0 %v2382
          %2680 = vmatpush1.bf16.msra.mxu0 %v2381
          %2681 = vmatprep.subr.bf16.mxu0 %v2388
          %2682 = vmatpush1.bf16.msra.mxu0 %v2387
          %2683 = vmatprep.subr.bf16.mxu0 %v2394
          %2684 = vmatpush1.bf16.msra.mxu0 %v2393
          %2685 = vmatprep.subr.bf16.mxu0 %v2400
          %2686 = vmatpush1.bf16.msra.mxu0 %v2399
          %2687 = vmatprep.subr.bf16.mxu0 %v2406
          %2688 = vmatpush1.bf16.msra.mxu0 %v2405
          %2689 = vmatprep.subr.bf16.mxu0 %v2412
          %2690 = vmatpush1.bf16.msra.mxu0 %v2411
          %2691 = vmatprep.subr.bf16.mxu0 %v2418
          %2692 = vmatpush1.bf16.msra.mxu0 %v2417
          %2693 = vmatprep.mubr.bf16.mxu0 %v1900
          %2694 = vmatmul.mubr.bf16.gmra.mrb[0].mxu0 %v1899
          %v2695 = vpop.f32.mrb[0].mxu0
          %v2696 = vadd.f32 %v2024, %v2695
          %v2697 = vpop.f32.mrb[0].mxu0
          %v2698 = vadd.f32 %v2028, %v2697
          %v2699 = vpop.f32.mrb[0].mxu0
          %v2700 = vadd.f32 %v2024, %v2699
          %v2701 = vpop.f32.mrb[0].mxu0
          %v2702 = vadd.f32 %v2028, %v2701
          %2703 = vmatprep.mubr.bf16.mxu0 %v1902
          %2704 = vmatmul.mubr.bf16.gmra.mrb[0].mxu0 %v1901
          %v2705 = vpop.f32.mrb[0].mxu0
          %v2706 = vadd.f32 %v2024, %v2705
          %v2707 = vpop.f32.mrb[0].mxu0
          %v2708 = vadd.f32 %v2028, %v2707
          %v2709 = vpop.f32.mrb[0].mxu0
          %v2710 = vadd.f32 %v2024, %v2709
          %v2711 = vpop.f32.mrb[0].mxu0
          %v2712 = vadd.f32 %v2028, %v2711
          %2713 = vmatprep.mubr.bf16.mxu0 %v1904
          %2714 = vmatmul.mubr.bf16.gmra.mrb[0].mxu0 %v1903
          %v2715 = vpop.f32.mrb[0].mxu0
          %v2716 = vadd.f32 %v2024, %v2715
          %v2717 = vpop.f32.mrb[0].mxu0
          %v2718 = vadd.f32 %v2028, %v2717
          %v2719 = vpop.f32.mrb[0].mxu0
          %v2720 = vadd.f32 %v2024, %v2719
          %v2721 = vpop.f32.mrb[0].mxu0
          %v2722 = vadd.f32 %v2028, %v2721
          %2723 = vmatprep.mubr.bf16.mxu0 %v1906
          %2724 = vmatmul.mubr.bf16.gmra.mrb[0].mxu0 %v1905
          %v2725 = vpop.f32.mrb[0].mxu0
          %v2726 = vadd.f32 %v2024, %v2725
          %v2727 = vpop.f32.mrb[0].mxu0
          %v2728 = vadd.f32 %v2028, %v2727
          %v2729 = vpop.f32.mrb[0].mxu0
          %v2730 = vadd.f32 %v2024, %v2729
          %v2731 = vpop.f32.mrb[0].mxu0
          %v2732 = vadd.f32 %v2028, %v2731
          %2733 = vdwg.mxu0
          %v2734 = vxor.u32 %v2550, 2147483648
          %v2735 = vxor.u32 %v2552, 2147483648
          %v2736 = vxor.u32 %v2554, 2147483648
          %v2737 = vxor.u32 %v2556, 2147483648
          %v2738 = vxor.u32 %v2560, 2147483648
          %v2739 = vxor.u32 %v2562, 2147483648
          %v2740 = vxor.u32 %v2564, 2147483648
          %v2741 = vxor.u32 %v2566, 2147483648
          %v2742 = vxor.u32 %v2570, 2147483648
          %v2743 = vxor.u32 %v2572, 2147483648
          %v2744 = vxor.u32 %v2574, 2147483648
          %v2745 = vxor.u32 %v2576, 2147483648
          %v2746 = vxor.u32 %v2580, 2147483648
          %v2747 = vxor.u32 %v2582, 2147483648
          %v2748 = vxor.u32 %v2584, 2147483648
          %v2749 = vxor.u32 %v2586, 2147483648
          %v2750 = vmul.f32 %v2734, 1.442695
          %v2751 = vpow.pop %v2750
          %v2752 = vmul.f32 %v2735, 1.442695
          %v2753 = vpow.pop %v2752
          %v2754 = vmul.f32 %v2736, 1.442695
          %v2755 = vpow.pop %v2754
          %v2756 = vmul.f32 %v2737, 1.442695
          %v2757 = vpow.pop %v2756
          %v2758 = vmul.f32 %v2738, 1.442695
          %v2759 = vpow.pop %v2758
          %v2760 = vmul.f32 %v2739, 1.442695
          %v2761 = vpow.pop %v2760
          %v2762 = vmul.f32 %v2740, 1.442695
          %v2763 = vpow.pop %v2762
          %v2764 = vmul.f32 %v2741, 1.442695
          %v2765 = vpow.pop %v2764
          %v2766 = vmul.f32 %v2742, 1.442695
          %v2767 = vpow.pop %v2766
          %v2768 = vmul.f32 %v2743, 1.442695
          %v2769 = vpow.pop %v2768
          %v2770 = vmul.f32 %v2744, 1.442695
          %v2771 = vpow.pop %v2770
          %v2772 = vmul.f32 %v2745, 1.442695
          %v2773 = vpow.pop %v2772
          %v2774 = vmul.f32 %v2746, 1.442695
          %v2775 = vpow.pop %v2774
          %v2776 = vmul.f32 %v2747, 1.442695
          %v2777 = vpow.pop %v2776
          %v2778 = vmul.f32 %v2748, 1.442695
          %v2779 = vpow.pop %v2778
          %v2780 = vmul.f32 %v2749, 1.442695
          %v2781 = vpow.pop %v2780
          %v2782 = vadd.f32 %v2751, 1.0
          %v2783 = vadd.f32 %v2753, 1.0
          %v2784 = vadd.f32 %v2755, 1.0
          %v2785 = vadd.f32 %v2757, 1.0
          %v2786 = vadd.f32 %v2759, 1.0
          %v2787 = vadd.f32 %v2761, 1.0
          %v2788 = vadd.f32 %v2763, 1.0
          %v2789 = vadd.f32 %v2765, 1.0
          %v2790 = vadd.f32 %v2767, 1.0
          %v2791 = vadd.f32 %v2769, 1.0
          %v2792 = vadd.f32 %v2771, 1.0
          %v2793 = vadd.f32 %v2773, 1.0
          %v2794 = vadd.f32 %v2775, 1.0
          %v2795 = vadd.f32 %v2777, 1.0
          %v2796 = vadd.f32 %v2779, 1.0
          %v2797 = vadd.f32 %v2781, 1.0
          %v2798 = vrcp.pop %v2782
          %v2799 = vmul.f32 1.0, %v2798
          %v2800 = vrcp.pop %v2783
          %v2801 = vmul.f32 1.0, %v2800
          %v2802 = vrcp.pop %v2784
          %v2803 = vmul.f32 1.0, %v2802
          %v2804 = vrcp.pop %v2785
          %v2805 = vmul.f32 1.0, %v2804
          %v2806 = vrcp.pop %v2786
          %v2807 = vmul.f32 1.0, %v2806
          %v2808 = vrcp.pop %v2787
          %v2809 = vmul.f32 1.0, %v2808
          %v2810 = vrcp.pop %v2788
          %v2811 = vmul.f32 1.0, %v2810
          %v2812 = vrcp.pop %v2789
          %v2813 = vmul.f32 1.0, %v2812
          %v2814 = vrcp.pop %v2790
          %v2815 = vmul.f32 1.0, %v2814
          %v2816 = vrcp.pop %v2791
          %v2817 = vmul.f32 1.0, %v2816
          %v2818 = vrcp.pop %v2792
          %v2819 = vmul.f32 1.0, %v2818
          %v2820 = vrcp.pop %v2793
          %v2821 = vmul.f32 1.0, %v2820
          %v2822 = vrcp.pop %v2794
          %v2823 = vmul.f32 1.0, %v2822
          %v2824 = vrcp.pop %v2795
          %v2825 = vmul.f32 1.0, %v2824
          %v2826 = vrcp.pop %v2796
          %v2827 = vmul.f32 1.0, %v2826
          %v2828 = vrcp.pop %v2797
          %v2829 = vmul.f32 1.0, %v2828
          %v2830 = vtanh.pop %v2623
          %v2831 = vtanh.pop %v2625
          %v2832 = vtanh.pop %v2627
          %v2833 = vtanh.pop %v2629
          %v2834 = vtanh.pop %v2633
          %v2835 = vtanh.pop %v2635
          %v2836 = vtanh.pop %v2637
          %v2837 = vtanh.pop %v2639
          %v2838 = vtanh.pop %v2643
          %v2839 = vtanh.pop %v2645
          %v2840 = vtanh.pop %v2647
          %v2841 = vtanh.pop %v2649
          %v2842 = vtanh.pop %v2653
          %v2843 = vtanh.pop %v2655
          %v2844 = vtanh.pop %v2657
          %v2845 = vtanh.pop %v2659
          %v2846 = vxor.u32 %v2696, 2147483648
          %v2847 = vxor.u32 %v2698, 2147483648
          %v2848 = vxor.u32 %v2700, 2147483648
          %v2849 = vxor.u32 %v2702, 2147483648
          %v2850 = vxor.u32 %v2706, 2147483648
          %v2851 = vxor.u32 %v2708, 2147483648
          %v2852 = vxor.u32 %v2710, 2147483648
          %v2853 = vxor.u32 %v2712, 2147483648
          %v2854 = vxor.u32 %v2716, 2147483648
          %v2855 = vxor.u32 %v2718, 2147483648
          %v2856 = vxor.u32 %v2720, 2147483648
          %v2857 = vxor.u32 %v2722, 2147483648
          %v2858 = vxor.u32 %v2726, 2147483648
          %v2859 = vxor.u32 %v2728, 2147483648
          %v2860 = vxor.u32 %v2730, 2147483648
          %v2861 = vxor.u32 %v2732, 2147483648
          %v2862 = vmul.f32 %v2846, 1.442695
          %v2863 = vpow.pop %v2862
          %v2864 = vmul.f32 %v2847, 1.442695
          %v2865 = vpow.pop %v2864
          %v2866 = vmul.f32 %v2848, 1.442695
          %v2867 = vpow.pop %v2866
          %v2868 = vmul.f32 %v2849, 1.442695
          %v2869 = vpow.pop %v2868
          %v2870 = vmul.f32 %v2850, 1.442695
          %v2871 = vpow.pop %v2870
          %v2872 = vmul.f32 %v2851, 1.442695
          %v2873 = vpow.pop %v2872
          %v2874 = vmul.f32 %v2852, 1.442695
          %v2875 = vpow.pop %v2874
          %v2876 = vmul.f32 %v2853, 1.442695
          %v2877 = vpow.pop %v2876
          %v2878 = vmul.f32 %v2854, 1.442695
          %v2879 = vpow.pop %v2878
          %v2880 = vmul.f32 %v2855, 1.442695
          %v2881 = vpow.pop %v2880
          %v2882 = vmul.f32 %v2856, 1.442695
          %v2883 = vpow.pop %v2882
          %v2884 = vmul.f32 %v2857, 1.442695
          %v2885 = vpow.pop %v2884
          %v2886 = vmul.f32 %v2858, 1.442695
          %v2887 = vpow.pop %v2886
          %v2888 = vmul.f32 %v2859, 1.442695
          %v2889 = vpow.pop %v2888
          %v2890 = vmul.f32 %v2860, 1.442695
          %v2891 = vpow.pop %v2890
          %v2892 = vmul.f32 %v2861, 1.442695
          %v2893 = vpow.pop %v2892
          %v2894 = vadd.f32 %v2863, 1.0
          %v2895 = vadd.f32 %v2865, 1.0
          %v2896 = vadd.f32 %v2867, 1.0
          %v2897 = vadd.f32 %v2869, 1.0
          %v2898 = vadd.f32 %v2871, 1.0
          %v2899 = vadd.f32 %v2873, 1.0
          %v2900 = vadd.f32 %v2875, 1.0
          %v2901 = vadd.f32 %v2877, 1.0
          %v2902 = vadd.f32 %v2879, 1.0
          %v2903 = vadd.f32 %v2881, 1.0
          %v2904 = vadd.f32 %v2883, 1.0
          %v2905 = vadd.f32 %v2885, 1.0
          %v2906 = vadd.f32 %v2887, 1.0
          %v2907 = vadd.f32 %v2889, 1.0
          %v2908 = vadd.f32 %v2891, 1.0
          %v2909 = vadd.f32 %v2893, 1.0
          %v2910 = vrcp.pop %v2894
          %v2911 = vmul.f32 1.0, %v2910
          %v2912 = vrcp.pop %v2895
          %v2913 = vmul.f32 1.0, %v2912
          %v2914 = vrcp.pop %v2896
          %v2915 = vmul.f32 1.0, %v2914
          %v2916 = vrcp.pop %v2897
          %v2917 = vmul.f32 1.0, %v2916
          %v2918 = vrcp.pop %v2898
          %v2919 = vmul.f32 1.0, %v2918
          %v2920 = vrcp.pop %v2899
          %v2921 = vmul.f32 1.0, %v2920
          %v2922 = vrcp.pop %v2900
          %v2923 = vmul.f32 1.0, %v2922
          %v2924 = vrcp.pop %v2901
          %v2925 = vmul.f32 1.0, %v2924
          %v2926 = vrcp.pop %v2902
          %v2927 = vmul.f32 1.0, %v2926
          %v2928 = vrcp.pop %v2903
          %v2929 = vmul.f32 1.0, %v2928
          %v2930 = vrcp.pop %v2904
          %v2931 = vmul.f32 1.0, %v2930
          %v2932 = vrcp.pop %v2905
          %v2933 = vmul.f32 1.0, %v2932
          %v2934 = vrcp.pop %v2906
          %v2935 = vmul.f32 1.0, %v2934
          %v2936 = vrcp.pop %v2907
          %v2937 = vmul.f32 1.0, %v2936
          %v2938 = vrcp.pop %v2908
          %v2939 = vmul.f32 1.0, %v2938
          %v2940 = vrcp.pop %v2909
          %v2941 = vmul.f32 1.0, %v2940
          %v2942 = vmul.f32 %v2799, %v2830
          %v2943 = vmul.f32 %v2801, %v2831
          %v2944 = vmul.f32 %v2803, %v2832
          %v2945 = vmul.f32 %v2805, %v2833
          %v2946 = vmul.f32 %v2807, %v2834
          %v2947 = vmul.f32 %v2809, %v2835
          %v2948 = vmul.f32 %v2811, %v2836
          %v2949 = vmul.f32 %v2813, %v2837
          %v2950 = vmul.f32 %v2815, %v2838
          %v2951 = vmul.f32 %v2817, %v2839
          %v2952 = vmul.f32 %v2819, %v2840
          %v2953 = vmul.f32 %v2821, %v2841
          %v2954 = vmul.f32 %v2823, %v2842
          %v2955 = vmul.f32 %v2825, %v2843
          %v2956 = vmul.f32 %v2827, %v2844
          %v2957 = vmul.f32 %v2829, %v2845
          %v2958 = vtanh.pop %v2942
          %v2959 = vtanh.pop %v2943
          %v2960 = vtanh.pop %v2944
          %v2961 = vtanh.pop %v2945
          %v2962 = vtanh.pop %v2946
          %v2963 = vtanh.pop %v2947
          %v2964 = vtanh.pop %v2948
          %v2965 = vtanh.pop %v2949
          %v2966 = vtanh.pop %v2950
          %v2967 = vtanh.pop %v2951
          %v2968 = vtanh.pop %v2952
          %v2969 = vtanh.pop %v2953
          %v2970 = vtanh.pop %v2954
          %v2971 = vtanh.pop %v2955
          %v2972 = vtanh.pop %v2956
          %v2973 = vtanh.pop %v2957
          %v2974 = vmul.f32 %v2911, %v2958
          %v2975 = vmul.f32 %v2913, %v2959
          %v2976 = vmul.f32 %v2915, %v2960
          %v2977 = vmul.f32 %v2917, %v2961
          %v2978 = vmul.f32 %v2919, %v2962
          %v2979 = vmul.f32 %v2921, %v2963
          %v2980 = vmul.f32 %v2923, %v2964
          %v2981 = vmul.f32 %v2925, %v2965
          %v2982 = vmul.f32 %v2927, %v2966
          %v2983 = vmul.f32 %v2929, %v2967
          %v2984 = vmul.f32 %v2931, %v2968
          %v2985 = vmul.f32 %v2933, %v2969
          %v2986 = vmul.f32 %v2935, %v2970
          %v2987 = vmul.f32 %v2937, %v2971
          %v2988 = vmul.f32 %v2939, %v2972
          %v2989 = vmul.f32 %v2941, %v2973
          %2990 = vst [vmem:[#allocation2] sm:$0xff] %v2974
          %2991 = vst [vmem:[#allocation2 + $0x8] sm:$0xff] %v2975
          %2992 = vst [vmem:[#allocation2 + $0x10] sm:$0xff] %v2976
          %2993 = vst [vmem:[#allocation2 + $0x18] sm:$0xff] %v2977
          %2994 = vst [vmem:[#allocation2 + $0x20] sm:$0xff] %v2978
          %2995 = vst [vmem:[#allocation2 + $0x28] sm:$0xff] %v2979
          %2996 = vst [vmem:[#allocation2 + $0x30] sm:$0xff] %v2980
          %2997 = vst [vmem:[#allocation2 + $0x38] sm:$0xff] %v2981
          %2998 = vst [vmem:[#allocation2 + $0x40] sm:$0xff] %v2982
          %2999 = vst [vmem:[#allocation2 + $0x48] sm:$0xff] %v2983
          %3000 = vst [vmem:[#allocation2 + $0x50] sm:$0xff] %v2984
          %3001 = vst [vmem:[#allocation2 + $0x58] sm:$0xff] %v2985
          %3002 = vst [vmem:[#allocation2 + $0x60] sm:$0xff] %v2986
          %3003 = vst [vmem:[#allocation2 + $0x68] sm:$0xff] %v2987
          %3004 = vst [vmem:[#allocation2 + $0x70] sm:$0xff] %v2988
          %3005 = vst [vmem:[#allocation2 + $0x78] sm:$0xff] %v2989
        $region80: #{tpu_custom_call.1} parent=55 // pred_fallthru
          _
        %v3006 = vld [vmem:[#allocation2] sm:$0xff]
        %v3007 = vld [vmem:[#allocation2 + $0x8] sm:$0xff]
        %v3008 = vld [vmem:[#allocation2 + $0x10] sm:$0xff]
        %v3009 = vld [vmem:[#allocation2 + $0x18] sm:$0xff]
        %v3010 = vld [vmem:[#allocation2 + $0x20] sm:$0xff]
        %v3011 = vld [vmem:[#allocation2 + $0x28] sm:$0xff]
        %v3012 = vld [vmem:[#allocation2 + $0x30] sm:$0xff]
        %v3013 = vld [vmem:[#allocation2 + $0x38] sm:$0xff]
        %v3014 = vld [vmem:[#allocation2 + $0x40] sm:$0xff]
        %v3015 = vld [vmem:[#allocation2 + $0x48] sm:$0xff]
        %v3016 = vld [vmem:[#allocation2 + $0x50] sm:$0xff]
        %v3017 = vld [vmem:[#allocation2 + $0x58] sm:$0xff]
        %v3018 = vld [vmem:[#allocation2 + $0x60] sm:$0xff]
        %v3019 = vld [vmem:[#allocation2 + $0x68] sm:$0xff]
        %v3020 = vld [vmem:[#allocation2 + $0x70] sm:$0xff]
        %v3021 = vld [vmem:[#allocation2 + $0x78] sm:$0xff]
        %v3022 = vpack.c.bf16 %v3008, %v3006
        %v3023 = vpack.c.bf16 %v3009, %v3007
        %v3024 = vpack.c.bf16 %v3012, %v3010
        %v3025 = vpack.c.bf16 %v3013, %v3011
        %v3026 = vpack.c.bf16 %v3016, %v3014
        %v3027 = vpack.c.bf16 %v3017, %v3015
        %v3028 = vpack.c.bf16 %v3020, %v3018
        %v3029 = vpack.c.bf16 %v3021, %v3019
        %v3030 = vld [vmem:[%s414] sm:$0xf]
        %v3031 = vld [vmem:[%s414 + $0x4] sm:$0xf]
        %v3032 = vld [vmem:[%s414 + $0x8] sm:$0xf]
        %v3033 = vld [vmem:[%s414 + $0xc] sm:$0xf]
        %v3034 = vld [vmem:[%s414 + $0x10] sm:$0xf]
        %v3035 = vld [vmem:[%s414 + $0x14] sm:$0xf]
        %v3036 = vld [vmem:[%s414 + $0x18] sm:$0xf]
        %v3037 = vld [vmem:[%s414 + $0x1c] sm:$0xf]
        %v3038 = vld [vmem:[%s414 + $0x20] sm:$0xf]
        %v3039 = vld [vmem:[%s414 + $0x24] sm:$0xf]
        %v3040 = vld [vmem:[%s414 + $0x28] sm:$0xf]
        %v3041 = vld [vmem:[%s414 + $0x2c] sm:$0xf]
        %v3042 = vld [vmem:[%s414 + $0x30] sm:$0xf]
        %v3043 = vld [vmem:[%s414 + $0x34] sm:$0xf]
        %v3044 = vld [vmem:[%s414 + $0x38] sm:$0xf]
        %v3045 = vld [vmem:[%s414 + $0x3c] sm:$0xf]
        %v3046 = vld [vmem:[%s414 + $0x40] sm:$0xf]
        %v3047 = vld [vmem:[%s414 + $0x44] sm:$0xf]
        %v3048 = vld [vmem:[%s414 + $0x48] sm:$0xf]
        %v3049 = vld [vmem:[%s414 + $0x4c] sm:$0xf]
        %v3050 = vld [vmem:[%s414 + $0x50] sm:$0xf]
        %v3051 = vld [vmem:[%s414 + $0x54] sm:$0xf]
        %v3052 = vld [vmem:[%s414 + $0x58] sm:$0xf]
        %v3053 = vld [vmem:[%s414 + $0x5c] sm:$0xf]
        %v3054 = vld [vmem:[%s414 + $0x60] sm:$0xf]
        %v3055 = vld [vmem:[%s414 + $0x64] sm:$0xf]
        %v3056 = vld [vmem:[%s414 + $0x68] sm:$0xf]
        %v3057 = vld [vmem:[%s414 + $0x6c] sm:$0xf]
        %v3058 = vld [vmem:[%s414 + $0x70] sm:$0xf]
        %v3059 = vld [vmem:[%s414 + $0x74] sm:$0xf]
        %v3060 = vld [vmem:[%s414 + $0x78] sm:$0xf]
        %v3061 = vld [vmem:[%s414 + $0x7c] sm:$0xf]
        %v3062 = vld [vmem:[%s460] sm:$0x1]
        %v3064 = vlaneseq
        %v3065 = vshrl.u32 %v3064, 7
        %v3066 = vsub.s32 0, %v3065
        %v3067 = vrot.slane %v3062, %v3066
        %v3101 = vunpack.c.l.b16 %v3030
        %v3102 = vunpack.c.l.b16 %v3031
        %v3103 = vunpack.c.l.b16 %v3032
        %v3104 = vunpack.c.l.b16 %v3033
        %v3105 = vunpack.c.l.b16 %v3034
        %v3106 = vunpack.c.l.b16 %v3035
        %v3107 = vunpack.c.l.b16 %v3036
        %v3108 = vunpack.c.l.b16 %v3037
        %v3109 = vunpack.c.l.b16 %v3038
        %v3110 = vunpack.c.l.b16 %v3039
        %v3111 = vunpack.c.l.b16 %v3040
        %v3112 = vunpack.c.l.b16 %v3041
        %v3113 = vunpack.c.l.b16 %v3042
        %v3114 = vunpack.c.l.b16 %v3043
        %v3115 = vunpack.c.l.b16 %v3044
        %v3116 = vunpack.c.l.b16 %v3045
        %v3117 = vunpack.c.l.b16 %v3046
        %v3118 = vunpack.c.l.b16 %v3047
        %v3119 = vunpack.c.l.b16 %v3048
        %v3120 = vunpack.c.l.b16 %v3049
        %v3121 = vunpack.c.l.b16 %v3050
        %v3122 = vunpack.c.l.b16 %v3051
        %v3123 = vunpack.c.l.b16 %v3052
        %v3124 = vunpack.c.l.b16 %v3053
        %v3125 = vunpack.c.l.b16 %v3054
        %v3126 = vunpack.c.l.b16 %v3055
        %v3127 = vunpack.c.l.b16 %v3056
        %v3128 = vunpack.c.l.b16 %v3057
        %v3129 = vunpack.c.l.b16 %v3058
        %v3130 = vunpack.c.l.b16 %v3059
        %v3131 = vunpack.c.l.b16 %v3060
        %v3132 = vunpack.c.l.b16 %v3061
        %v3133 = vpack.c.b16 %v3102, %v3101
        %v3134 = vpack.c.b16 %v3104, %v3103
        %v3135 = vpack.c.b16 %v3106, %v3105
        %v3136 = vpack.c.b16 %v3108, %v3107
        %v3137 = vpack.c.b16 %v3110, %v3109
        %v3138 = vpack.c.b16 %v3112, %v3111
        %v3139 = vpack.c.b16 %v3114, %v3113
        %v3140 = vpack.c.b16 %v3116, %v3115
        %v3141 = vpack.c.b16 %v3118, %v3117
        %v3142 = vpack.c.b16 %v3120, %v3119
        %v3143 = vpack.c.b16 %v3122, %v3121
        %v3144 = vpack.c.b16 %v3124, %v3123
        %v3145 = vpack.c.b16 %v3126, %v3125
        %v3146 = vpack.c.b16 %v3128, %v3127
        %v3147 = vpack.c.b16 %v3130, %v3129
        %v3148 = vpack.c.b16 %v3132, %v3131
        %3165 = vmatprep.subr.bf16.mxu0 0
        %3166 = vmatpush1.bf16.msra.mxu0 %v3133
        %3167 = vmatprep.subr.bf16.mxu0 0
        %3168 = vmatpush1.bf16.msra.mxu0 %v3134
        %3169 = vmatprep.subr.bf16.mxu0 0
        %3170 = vmatpush1.bf16.msra.mxu0 %v3135
        %3171 = vmatprep.subr.bf16.mxu0 0
        %3172 = vmatpush1.bf16.msra.mxu0 %v3136
        %3173 = vmatprep.subr.bf16.mxu0 0
        %3174 = vmatpush1.bf16.msra.mxu0 %v3137
        %3175 = vmatprep.subr.bf16.mxu0 0
        %3176 = vmatpush1.bf16.msra.mxu0 %v3138
        %3177 = vmatprep.subr.bf16.mxu0 0
        %3178 = vmatpush1.bf16.msra.mxu0 %v3139
        %3179 = vmatprep.subr.bf16.mxu0 0
        %3180 = vmatpush1.bf16.msra.mxu0 %v3140
        %3181 = vmatprep.subr.bf16.mxu0 0
        %3182 = vmatpush1.bf16.msra.mxu0 %v3141
        %3183 = vmatprep.subr.bf16.mxu0 0
        %3184 = vmatpush1.bf16.msra.mxu0 %v3142
        %3185 = vmatprep.subr.bf16.mxu0 0
        %3186 = vmatpush1.bf16.msra.mxu0 %v3143
        %3187 = vmatprep.subr.bf16.mxu0 0
        %3188 = vmatpush1.bf16.msra.mxu0 %v3144
        %3189 = vmatprep.subr.bf16.mxu0 0
        %3190 = vmatpush1.bf16.msra.mxu0 %v3145
        %3191 = vmatprep.subr.bf16.mxu0 0
        %3192 = vmatpush1.bf16.msra.mxu0 %v3146
        %3193 = vmatprep.subr.bf16.mxu0 0
        %3194 = vmatpush1.bf16.msra.mxu0 %v3147
        %3195 = vmatprep.subr.bf16.mxu0 0
        %3196 = vmatpush1.bf16.msra.mxu0 %v3148
        %3197 = vmatprep.mubr.bf16.mxu0 %v3023
        %3198 = vmatmul.mubr.bf16.gmra.mrb[0].mxu0 %v3022
        %v3199 = vpop.f32.mrb[0].mxu0
        %v3200 = vadd.f32 %v3067, %v3199
        %v3201 = vpop.f32.mrb[0].mxu0
        %v3202 = vpop.f32.mrb[0].mxu0
        %v3203 = vadd.f32 %v3067, %v3202
        %v3204 = vpop.f32.mrb[0].mxu0
        %3205 = vmatprep.mubr.bf16.mxu0 %v3025
        %3206 = vmatmul.mubr.bf16.gmra.mrb[0].mxu0 %v3024
        %v3207 = vpop.f32.mrb[0].mxu0
        %v3208 = vadd.f32 %v3067, %v3207
        %v3209 = vpop.f32.mrb[0].mxu0
        %v3210 = vpop.f32.mrb[0].mxu0
        %v3211 = vadd.f32 %v3067, %v3210
        %v3212 = vpop.f32.mrb[0].mxu0
        %3213 = vmatprep.mubr.bf16.mxu0 %v3027
        %3214 = vmatmul.mubr.bf16.gmra.mrb[0].mxu0 %v3026
        %v3215 = vpop.f32.mrb[0].mxu0
        %v3216 = vadd.f32 %v3067, %v3215
        %v3217 = vpop.f32.mrb[0].mxu0
        %v3218 = vpop.f32.mrb[0].mxu0
        %v3219 = vadd.f32 %v3067, %v3218
        %v3220 = vpop.f32.mrb[0].mxu0
        %3221 = vmatprep.mubr.bf16.mxu0 %v3029
        %3222 = vmatmul.mubr.bf16.gmra.mrb[0].mxu0 %v3028
        %v3223 = vpop.f32.mrb[0].mxu0
        %v3224 = vadd.f32 %v3067, %v3223
        %v3225 = vpop.f32.mrb[0].mxu0
        %v3226 = vpop.f32.mrb[0].mxu0
        %v3227 = vadd.f32 %v3067, %v3226
        %v3228 = vpop.f32.mrb[0].mxu0
        %3229 = vdwg.mxu0
        %v3230 = vmul.f32 %v3200, 0.5
        %v3231 = vmul.f32 %v3203, 0.5
        %v3232 = vmul.f32 %v3208, 0.5
        %v3233 = vmul.f32 %v3211, 0.5
        %v3234 = vmul.f32 %v3216, 0.5
        %v3235 = vmul.f32 %v3219, 0.5
        %v3236 = vmul.f32 %v3224, 0.5
        %v3237 = vmul.f32 %v3227, 0.5
        %v3238 = vtanh.pop %v3230
        %v3239 = vtanh.pop %v3231
        %v3240 = vtanh.pop %v3232
        %v3241 = vtanh.pop %v3233
        %v3242 = vtanh.pop %v3234
        %v3243 = vtanh.pop %v3235
        %v3244 = vtanh.pop %v3236
        %v3245 = vtanh.pop %v3237
        %v3246 = vpack.c.bf16 %v3239, %v3238
        %v3247 = vpack.c.bf16 %v3241, %v3240
        %v3248 = vpack.c.bf16 %v3243, %v3242
        %v3249 = vpack.c.bf16 %v3245, %v3244
        %v3254 = vunpack.c.l.b16 %v3246
        %v3255 = vunpack.c.h.b16 %v3246
        %v3256 = vunpack.c.l.b16 %v3247
        %v3257 = vunpack.c.h.b16 %v3247
        %v3258 = vunpack.c.l.b16 %v3248
        %v3259 = vunpack.c.h.b16 %v3248
        %v3260 = vunpack.c.l.b16 %v3249
        %v3261 = vunpack.c.h.b16 %v3249
        %v3262 = vpack.c.b16 %v3254, %v3254
        %v3263 = vpack.c.b16 %v3255, %v3255
        %v3264 = vpack.c.b16 %v3256, %v3256
        %v3265 = vpack.c.b16 %v3257, %v3257
        %v3266 = vpack.c.b16 %v3258, %v3258
        %v3267 = vpack.c.b16 %v3259, %v3259
        %v3268 = vpack.c.b16 %v3260, %v3260
        %v3269 = vpack.c.b16 %v3261, %v3261
        %3278 = vst [vmem:[%s456] sm:$0xf] %v3262
        %3279 = vst [vmem:[%s456 + $0x4] sm:$0xf] %v3263
        %3280 = vst [vmem:[%s456 + $0x8] sm:$0xf] %v3264
        %3281 = vst [vmem:[%s456 + $0xc] sm:$0xf] %v3265
        %3282 = vst [vmem:[%s456 + $0x10] sm:$0xf] %v3266
        %3283 = vst [vmem:[%s456 + $0x14] sm:$0xf] %v3267
        %3284 = vst [vmem:[%s456 + $0x18] sm:$0xf] %v3268
        %3285 = vst [vmem:[%s456 + $0x1c] sm:$0xf] %v3269
        %s3286 = sand.u32 %s254, 1
        %s3287 = scalar_lea.sflag [#allocation5], %s3286
        %s3288 = sand.u32 %s254, 1
        %s3289 = smul.addr %s3288, 32
        %s3290 = scalar_lea.vmem [#allocation12], %s3289
        // Predicated region
        $region81: #{tpu_custom_call.1} parent=55 // pred_check
          %p3291 = pneg %p264
        $region82: #{tpu_custom_call.1} parent=55 // pred_check_branch
          %3293 = sbr.rel (%p3291) target = $region84
        $region83: #{tpu_custom_call.1} parent=55 // pred_region
          %s3294 = smul.u32 8, %s32
          %s3296 = ssub.s32 512, 512
          %3297 = vsyncadd %s3287, %s3296
          %s3298 = smul.addr %s3294, 2
          %s3299 = sadd.s32 %s33, %s3298
          %s3300 = smul.addr %s3299, 64
          %s3301 = scalar_lea.hbm %s9, %s3300
          %s3302 = sshll.u32 %s3290, 4
          %s3303 = int_to_ptr.vmem [resolvable:$true] %s3302
          %3308 = dma.vmem_to_hbm [thread:$0]  %s3303, 512, %s3301, %s3287, 64, 128, 4
        $region84: #{tpu_custom_call.1} parent=55 // pred_fallthru
          _
      $region56: #{tpu_custom_call.1} parent=5 // pred_fallthru
        _
      %p3309 = scmp.le.s32.totalorder 2, %s23
      // Predicated region
      $region85: #{tpu_custom_call.1} parent=5 // pred_check
        %p3310 = pneg %p3309
      $region86: #{tpu_custom_call.1} parent=5 // pred_check_branch
        %3312 = sbr.rel (%p3310) target = $region88
      $region87: #{tpu_custom_call.1} parent=5 // pred_region
        %s3313 = ssub.s32 %s23, 2
        // Predicated region
        $region89: #{tpu_custom_call.1} parent=87 // pred_check
          %p3314 = pneg %p270
        $region90: #{tpu_custom_call.1} parent=87 // pred_check_branch
          %3316 = sbr.rel (%p3314) target = $region92
        $region91: #{tpu_custom_call.1} parent=87 // pred_region
          %s3317 = sand.u32 %s255, 1
          %s3318 = scalar_lea.sflag [#allocation5], %s3317
          %s3319 = sand.u32 %s255, 1
          %s3320 = smul.addr %s3319, 32
          %s3321 = scalar_lea.vmem [#allocation12], %s3320
          %3322 = dma.done %s3318, 512
        $region92: #{tpu_custom_call.1} parent=87 // pred_fallthru
          _
      $region88: #{tpu_custom_call.1} parent=5 // pred_fallthru
        _
    $region6: #{tpu_custom_call.1} parent=1 // loop_footer
      %s27 = sadd.s32 1, %s23
    $region7: #{tpu_custom_call.1} parent=1 // loop_footer_branch
      %22 = sbr.rel target = $region3
    $region8: #{tpu_custom_call.1} parent=1 // loop_exit
      _
    %3323 = vsyncpa [#allocation4], 1
    %s3324 = scalar_lea.sflag [#allocation4], 1
    %3325 = vsyncpa %s3324, 1
    %3326 = vsyncpa [#allocation7], 1
    %3327 = vsyncpa [#allocation10], 1
    %3328 = vsyncpa [#allocation5], 1
    %s3329 = scalar_lea.sflag [#allocation5], 1
    %3330 = vsyncpa %s3329, 1

// kernel: tpu_custom_call.1
$region0: #{tpu_custom_call.1}
  #allocation0 [shape = 'u32[]', space=smem, size = 0x4, offset = 0x4, fixed_abs, tag = 'smem constant byte address 0x4 - core index']
  #allocation1 [shape = 'u32[144,128]{1,0:T(1,128)}', space=vmem, size = 0x12000, scoped, tag = 'internal scratch']
  #allocation2 [shape = 'f32[64,256]{1,0:T(8,128)}', space=vmem, size = 0x10000, scoped, tag = 'scratch operand']
  %s0 = inlined_call_operand.hbm [shape: bf16[256,256], index: 0, kind: input, shape index: {}]
  %s1 = inlined_call_operand.hbm [shape: bf16[256,256], index: 1, kind: input, shape index: {}]
  %s2 = inlined_call_operand.vmem [shape: f32[1,256], index: 2, kind: input, shape index: {}]
  %s3 = inlined_call_operand.hbm [shape: bf16[256,768], index: 3, kind: input, shape index: {}]
  %s4 = inlined_call_operand.vmem [shape: f32[1,768], index: 4, kind: input, shape index: {}]
  %s5 = inlined_call_operand.hbm [shape: bf16[256,768], index: 5, kind: input, shape index: {}]
  %s6 = inlined_call_operand.vmem [shape: f32[1,768], index: 6, kind: input, shape index: {}]
  %s7 = inlined_call_operand.hbm [shape: bf16[256,256], index: 7, kind: input, shape index: {}]
  %s8 = inlined_call_operand.vmem [shape: f32[1,256], index: 8, kind: input, shape index: {}]
  %s9 = inlined_call_operand.hbm [shape: bf16[256,256], index: 9, kind: output, shape index: {}]
  %s10 = sld [smem:[#allocation0]]
  $region93: #{tpu_custom_call.1} parent=0
    _
  %s12 = ssub.s32 1, %s10
  %s13 = scalar_select 0, %s12, %s10
  $region1: #{tpu_custom_call.1} parent=0
    #allocation3 [shape = 'u8[65536]{0}', space=vmem, size = 0x10000, scoped, tag = 'input window, operand 0']
    #allocation4 [shape = 's32[2]{0}', space=sflag, size = 0x8, scoped, tag = 'scoped memory for tpu_custom_call.1']
    #allocation5 [shape = 's32[2]{0}', space=sflag, size = 0x8, scoped, tag = 'scoped memory for tpu_custom_call.1']
    #allocation6 [shape = 'u8[131072]{0}', space=vmem, size = 0x20000, scoped, tag = 'input window, operand 1, single buffered']
    #allocation7 [shape = 's32[1]{0}', space=sflag, size = 0x4, scoped, tag = 'scoped memory for tpu_custom_call.1']
    #allocation8 [shape = 'u8[393216]{0}', space=vmem, size = 0x60000, scoped, tag = 'input window, operand 3, single buffered']
    #allocation9 [shape = 'u8[393216]{0}', space=vmem, size = 0x60000, scoped, tag = 'input window, operand 5, single buffered']
    #allocation10 [shape = 's32[1]{0}', space=sflag, size = 0x4, scoped, tag = 'scoped memory for tpu_custom_call.1']
    #allocation11 [shape = 'u8[131072]{0}', space=vmem, size = 0x20000, scoped, tag = 'input window, operand 7']
    #allocation12 [shape = 'u8[32768]{0}', space=vmem, size = 0x8000, scoped, tag = 'output window, operand 0']
    %14 = vsyncpa [#allocation4], 0
    %s15 = scalar_lea.sflag [#allocation4], 1
    %16 = vsyncpa %s15, 0
    %17 = vsyncpa [#allocation7], 0
    %18 = vsyncpa [#allocation10], 0
    %19 = vsyncpa [#allocation5], 0
    %s20 = scalar_lea.sflag [#allocation5], 1
    %21 = vsyncpa %s20, 0
    loop: start=0, step=1, limit=10
    $region2: #{tpu_custom_call.1} parent=1 // loop_pre_header
      _
    $region3: #{tpu_custom_call.1} parent=1 // loop_header
      %s23 = sphi 0, %s27
      %p24 = scmp.ge.s32.totalorder %s23, 10
      %s30 = sphi 0, %s42
      %s31 = sphi 0, %s38
      %s32 = sphi 0, %s30
      %s33 = sphi 0, %s31
      %s34 = sphi 0, %s32
      %s35 = sphi 0, %s33
      %s45 = sphi 0, %s47
      %s48 = sphi 0, %s45
      %s49 = sphi 0, %s48
      %s65 = sphi 0, %s49
      %s69 = sphi 0, %s69
      %s71 = sphi 0, %s69
      %s72 = sphi 0, %s71
      %s86 = sphi 0, %s72
      %s90 = sphi 0, %s90
      %s92 = sphi 0, %s90
      %s93 = sphi 0, %s92
      %s107 = sphi 0, %s93
      %s111 = sphi 0, %s111
      %s113 = sphi 0, %s111
      %s114 = sphi 0, %s113
      %s128 = sphi 0, %s114
      %s132 = sphi 0, %s132
      %s134 = sphi 0, %s132
      %s135 = sphi 0, %s134
      %s149 = sphi 0, %s135
      %s153 = sphi 0, %s153
      %s155 = sphi 0, %s153
      %s156 = sphi 0, %s155
      %s170 = sphi 0, %s156
      %s174 = sphi 0, %s174
      %s176 = sphi 0, %s174
      %s177 = sphi 0, %s176
      %s191 = sphi 0, %s177
      %s197 = sphi 0, %s199
      %s200 = sphi 0, %s197
      %s201 = sphi 0, %s200
      %s217 = sphi 0, %s201
      %s223 = sphi 0, %s225
      %s226 = sphi 0, %s223
      %s227 = sphi 0, %s226
      %s243 = sphi 0, %s227
      %s251 = sphi 0, %s253
      %s254 = sphi 0, %s251
      %s255 = sphi 0, %s254
      %s271 = sphi 0, %s255
    $region4: #{tpu_custom_call.1} parent=1 // loop_header_branch
      %26 = sbr.rel (%p24) target = $region8
    $region5: #{tpu_custom_call.1} parent=1 // loop_body
      %s28 = ssub.s32 %s23, 1
      %s29 = ssub.s32 %s23, 2
      %s36 = sadd.s32 1, %s31
      %p37 = scmp.ge.s32.totalorder %s36, 2
      %s38 = scalar_select %p37, 0, %s36
      %s39 = sadd.s32 1, %s30
      %s40 = scalar_select %p37, %s39, %s30
      %p41 = scmp.ge.s32.totalorder %s40, 4
      %s42 = scalar_select %p41, 0, %s40
      %s43 = ssub.s32 %s30, %s42
      %p44 = scmp.eq.s32.totalorder %s43, 0
      %s46 = sadd.s32 %s45, 1
      %s47 = scalar_select %p44, %s45, %s46
      %p50 = pneg %p44
      %p51 = scmp.eq.s32.totalorder %s23, 7
      %p52 = por %p50, %p51
      %p53 = scmp.ne.s32.totalorder %s45, %s48
      %p54 = scmp.eq.s32.totalorder %s23, 0
      %p55 = por %p53, %p54
      %p56 = scmp.ne.s32.totalorder %s45, %s48
      %p57 = scmp.eq.s32.totalorder %s28, 7
      %p58 = por %p56, %p57
      %p59 = scmp.ne.s32.totalorder %s48, %s49
      %p60 = scmp.eq.s32.totalorder %s28, 0
      %p61 = por %p59, %p60
      %p62 = scmp.ne.s32.totalorder %s48, %s49
      %p63 = scmp.eq.s32.totalorder %s29, 7
      %p64 = por %p62, %p63
      %p66 = scmp.ne.s32.totalorder %s49, %s65
      %p67 = scmp.eq.s32.totalorder %s29, 0
      %p68 = por %p66, %p67
      %s70 = sadd.s32 %s69, 1
      %p73 = scmp.eq.s32.totalorder %s23, 7
      %p74 = scmp.ne.s32.totalorder %s69, %s71
      %p75 = scmp.eq.s32.totalorder %s23, 0
      %p76 = por %p74, %p75
      %p77 = scmp.ne.s32.totalorder %s69, %s71
      %p78 = scmp.eq.s32.totalorder %s28, 7
      %p79 = por %p77, %p78
      %p80 = scmp.ne.s32.totalorder %s71, %s72
      %p81 = scmp.eq.s32.totalorder %s28, 0
      %p82 = por %p80, %p81
      %p83 = scmp.ne.s32.totalorder %s71, %s72
      %p84 = scmp.eq.s32.totalorder %s29, 7
      %p85 = por %p83, %p84
      %p87 = scmp.ne.s32.totalorder %s72, %s86
      %p88 = scmp.eq.s32.totalorder %s29, 0
      %p89 = por %p87, %p88
      %s91 = sadd.s32 %s90, 1
      %p94 = scmp.eq.s32.totalorder %s23, 7
      %p95 = scmp.ne.s32.totalorder %s90, %s92
      %p96 = scmp.eq.s32.totalorder %s23, 0
      %p97 = por %p95, %p96
      %p98 = scmp.ne.s32.totalorder %s90, %s92
      %p99 = scmp.eq.s32.totalorder %s28, 7
      %p100 = por %p98, %p99
      %p101 = scmp.ne.s32.totalorder %s92, %s93
      %p102 = scmp.eq.s32.totalorder %s28, 0
      %p103 = por %p101, %p102
      %p104 = scmp.ne.s32.totalorder %s92, %s93
      %p105 = scmp.eq.s32.totalorder %s29, 7
      %p106 = por %p104, %p105
      %p108 = scmp.ne.s32.totalorder %s93, %s107
      %p109 = scmp.eq.s32.totalorder %s29, 0
      %p110 = por %p108, %p109
      %s112 = sadd.s32 %s111, 1
      %p115 = scmp.eq.s32.totalorder %s23, 7
      %p116 = scmp.ne.s32.totalorder %s111, %s113
      %p117 = scmp.eq.s32.totalorder %s23, 0
      %p118 = por %p116, %p117
      %p119 = scmp.ne.s32.totalorder %s111, %s113
      %p120 = scmp.eq.s32.totalorder %s28, 7
      %p121 = por %p119, %p120
      %p122 = scmp.ne.s32.totalorder %s113, %s114
      %p123 = scmp.eq.s32.totalorder %s28, 0
      %p124 = por %p122, %p123
      %p125 = scmp.ne.s32.totalorder %s113, %s114
      %p126 = scmp.eq.s32.totalorder %s29, 7
      %p127 = por %p125, %p126
      %p129 = scmp.ne.s32.totalorder %s114, %s128
      %p130 = scmp.eq.s32.totalorder %s29, 0
      %p131 = por %p129, %p130
      %s133 = sadd.s32 %s132, 1
      %p136 = scmp.eq.s32.totalorder %s23, 7
      %p137 = scmp.ne.s32.totalorder %s132, %s134
      %p138 = scmp.eq.s32.totalorder %s23, 0
      %p139 = por %p137, %p138
      %p140 = scmp.ne.s32.totalorder %s132, %s134
      %p141 = scmp.eq.s32.totalorder %s28, 7
      %p142 = por %p140, %p141
      %p143 = scmp.ne.s32.totalorder %s134, %s135
      %p144 = scmp.eq.s32.totalorder %s28, 0
      %p145 = por %p143, %p144
      %p146 = scmp.ne.s32.totalorder %s134, %s135
      %p147 = scmp.eq.s32.totalorder %s29, 7
      %p148 = por %p146, %p147
      %p150 = scmp.ne.s32.totalorder %s135, %s149
      %p151 = scmp.eq.s32.totalorder %s29, 0
      %p152 = por %p150, %p151
      %s154 = sadd.s32 %s153, 1
      %p157 = scmp.eq.s32.totalorder %s23, 7
      %p158 = scmp.ne.s32.totalorder %s153, %s155
      %p159 = scmp.eq.s32.totalorder %s23, 0
      %p160 = por %p158, %p159
      %p161 = scmp.ne.s32.totalorder %s153, %s155
      %p162 = scmp.eq.s32.totalorder %s28, 7
      %p163 = por %p161, %p162
      %p164 = scmp.ne.s32.totalorder %s155, %s156
      %p165 = scmp.eq.s32.totalorder %s28, 0
      %p166 = por %p164, %p165
      %p167 = scmp.ne.s32.totalorder %s155, %s156
      %p168 = scmp.eq.s32.totalorder %s29, 7
      %p169 = por %p167, %p168
      %p171 = scmp.ne.s32.totalorder %s156, %s170
      %p172 = scmp.eq.s32.totalorder %s29, 0
      %p173 = por %p171, %p172
      %s175 = sadd.s32 %s174, 1
      %p178 = scmp.eq.s32.totalorder %s23, 7
      %p179 = scmp.ne.s32.totalorder %s174, %s176
      %p180 = scmp.eq.s32.totalorder %s23, 0
      %p181 = por %p179, %p180
      %p182 = scmp.ne.s32.totalorder %s174, %s176
      %p183 = scmp.eq.s32.totalorder %s28, 7
      %p184 = por %p182, %p183
      %p185 = scmp.ne.s32.totalorder %s176, %s177
      %p186 = scmp.eq.s32.totalorder %s28, 0
      %p187 = por %p185, %p186
      %p188 = scmp.ne.s32.totalorder %s176, %s177
      %p189 = scmp.eq.s32.totalorder %s29, 7
      %p190 = por %p188, %p189
      %p192 = scmp.ne.s32.totalorder %s177, %s191
      %p193 = scmp.eq.s32.totalorder %s29, 0
      %p194 = por %p192, %p193
      %s195 = ssub.s32 %s31, %s38
      %p196 = scmp.eq.s32.totalorder %s195, 0
      %s198 = sadd.s32 %s197, 1
      %s199 = scalar_select %p196, %s197, %s198
      %p202 = pneg %p196
      %p203 = scmp.eq.s32.totalorder %s23, 7
      %p204 = por %p202, %p203
      %p205 = scmp.ne.s32.totalorder %s197, %s200
      %p206 = scmp.eq.s32.totalorder %s23, 0
      %p207 = por %p205, %p206
      %p208 = scmp.ne.s32.totalorder %s197, %s200
      %p209 = scmp.eq.s32.totalorder %s28, 7
      %p210 = por %p208, %p209
      %p211 = scmp.ne.s32.totalorder %s200, %s201
      %p212 = scmp.eq.s32.totalorder %s28, 0
      %p213 = por %p211, %p212
      %p214 = scmp.ne.s32.totalorder %s200, %s201
      %p215 = scmp.eq.s32.totalorder %s29, 7
      %p216 = por %p214, %p215
      %p218 = scmp.ne.s32.totalorder %s201, %s217
      %p219 = scmp.eq.s32.totalorder %s29, 0
      %p220 = por %p218, %p219
      %s221 = ssub.s32 %s31, %s38
      %p222 = scmp.eq.s32.totalorder %s221, 0
      %s224 = sadd.s32 %s223, 1
      %s225 = scalar_select %p222, %s223, %s224
      %p228 = pneg %p222
      %p229 = scmp.eq.s32.totalorder %s23, 7
      %p230 = por %p228, %p229
      %p231 = scmp.ne.s32.totalorder %s223, %s226
      %p232 = scmp.eq.s32.totalorder %s23, 0
      %p233 = por %p231, %p232
      %p234 = scmp.ne.s32.totalorder %s223, %s226
      %p235 = scmp.eq.s32.totalorder %s28, 7
      %p236 = por %p234, %p235
      %p237 = scmp.ne.s32.totalorder %s226, %s227
      %p238 = scmp.eq.s32.totalorder %s28, 0
      %p239 = por %p237, %p238
      %p240 = scmp.ne.s32.totalorder %s226, %s227
      %p241 = scmp.eq.s32.totalorder %s29, 7
      %p242 = por %p240, %p241
      %p244 = scmp.ne.s32.totalorder %s227, %s243
      %p245 = scmp.eq.s32.totalorder %s29, 0
      %p246 = por %p244, %p245
      %s247 = ssub.s32 %s30, %s42
      %s248 = ssub.s32 %s31, %s38
      %s249 = sor.u32 %s247, %s248
      %p250 = scmp.eq.s32.totalorder %s249, 0
      %s252 = sadd.s32 %s251, 1
      %s253 = scalar_select %p250, %s251, %s252
      %p256 = pneg %p250
      %p257 = scmp.eq.s32.totalorder %s23, 7
      %p258 = por %p256, %p257
      %p259 = scmp.ne.s32.totalorder %s251, %s254
      %p260 = scmp.eq.s32.totalorder %s23, 0
      %p261 = por %p259, %p260
      %p262 = scmp.ne.s32.totalorder %s251, %s254
      %p263 = scmp.eq.s32.totalorder %s28, 7
      %p264 = por %p262, %p263
      %p265 = scmp.ne.s32.totalorder %s254, %s255
      %p266 = scmp.eq.s32.totalorder %s28, 0
      %p267 = por %p265, %p266
      %p268 = scmp.ne.s32.totalorder %s254, %s255
      %p269 = scmp.eq.s32.totalorder %s29, 7
      %p270 = por %p268, %p269
      %p272 = scmp.ne.s32.totalorder %s255, %s271
      %p273 = scmp.eq.s32.totalorder %s29, 0
      %p274 = por %p272, %p273
      %p275 = scmp.le.s32.totalorder 1, %s23
      %p276 = scmp.lt.s32.totalorder %s23, 9
      %p277 = pnand %p275, %p276
      %p278 = pneg %p277
      // Predicated region
      $region9: #{tpu_custom_call.1} parent=5 // pred_check
        _
      $region10: #{tpu_custom_call.1} parent=5 // pred_check_branch
        %280 = sbr.rel (%p277) target = $region12
      $region11: #{tpu_custom_call.1} parent=5 // pred_region
        %s281 = ssub.s32 %s23, 1
        // Predicated region
        $region13: #{tpu_custom_call.1} parent=11 // pred_check
          %p282 = pneg %p82
        $region14: #{tpu_custom_call.1} parent=11 // pred_check_branch
          %284 = sbr.rel (%p282) target = $region16
        $region15: #{tpu_custom_call.1} parent=11 // pred_region
          %s286 = ssub.s32 4096, 4096
          %287 = vsyncadd [#allocation7], %s286
          %s288 = sshll.u32 [#allocation6], 4
          %s289 = int_to_ptr.vmem [resolvable:$true] %s288
          %294 = dma.hbm_to_vmem [thread:$0]  %s1, 4096, %s289, [#allocation7], 128, 128, 8
        $region16: #{tpu_custom_call.1} parent=11 // pred_fallthru
          _
        // Predicated region
        $region17: #{tpu_custom_call.1} parent=11 // pred_check
          %p295 = pneg %p103
        $region18: #{tpu_custom_call.1} parent=11 // pred_check_branch
          %297 = sbr.rel (%p295) target = $region20
        $region19: #{tpu_custom_call.1} parent=11 // pred_region
          _
        $region20: #{tpu_custom_call.1} parent=11 // pred_fallthru
          _
        // Predicated region
        $region21: #{tpu_custom_call.1} parent=11 // pred_check
          %p298 = pneg %p124
        $region22: #{tpu_custom_call.1} parent=11 // pred_check_branch
          %300 = sbr.rel (%p298) target = $region24
        $region23: #{tpu_custom_call.1} parent=11 // pred_region
          %s302 = ssub.s32 12288, 12288
          %303 = vsyncadd [#allocation7], %s302
          %s304 = sshll.u32 [#allocation8], 4
          %s305 = int_to_ptr.vmem [resolvable:$true] %s304
          %310 = dma.hbm_to_vmem [thread:$0]  %s3, 12288, %s305, [#allocation7], 384, 384, 24
        $region24: #{tpu_custom_call.1} parent=11 // pred_fallthru
          _
        // Predicated region
        $region25: #{tpu_custom_call.1} parent=11 // pred_check
          %p311 = pneg %p145
        $region26: #{tpu_custom_call.1} parent=11 // pred_check_branch
          %313 = sbr.rel (%p311) target = $region28
        $region27: #{tpu_custom_call.1} parent=11 // pred_region
          _
        $region28: #{tpu_custom_call.1} parent=11 // pred_fallthru
          _
        // Predicated region
        $region29: #{tpu_custom_call.1} parent=11 // pred_check
          %p314 = pneg %p166
        $region30: #{tpu_custom_call.1} parent=11 // pred_check_branch
          %316 = sbr.rel (%p314) target = $region32
        $region31: #{tpu_custom_call.1} parent=11 // pred_region
          %s318 = ssub.s32 12288, 12288
          %319 = vsyncadd [#allocation10], %s318
          %s320 = sshll.u32 [#allocation9], 4
          %s321 = int_to_ptr.vmem [resolvable:$true] %s320
          %326 = dma.hbm_to_vmem [thread:$0]  %s5, 12288, %s321, [#allocation10], 384, 384, 24
        $region32: #{tpu_custom_call.1} parent=11 // pred_fallthru
          _
        // Predicated region
        $region33: #{tpu_custom_call.1} parent=11 // pred_check
          %p327 = pneg %p187
        $region34: #{tpu_custom_call.1} parent=11 // pred_check_branch
          %329 = sbr.rel (%p327) target = $region36
        $region35: #{tpu_custom_call.1} parent=11 // pred_region
          _
        $region36: #{tpu_custom_call.1} parent=11 // pred_fallthru
          _
      $region12: #{tpu_custom_call.1} parent=5 // pred_fallthru
        _
      %p330 = scmp.lt.s32.totalorder %s23, 8
      // Predicated region
      $region37: #{tpu_custom_call.1} parent=5 // pred_check
        %p331 = pneg %p330
      $region38: #{tpu_custom_call.1} parent=5 // pred_check_branch
        %333 = sbr.rel (%p331) target = $region40
      $region39: #{tpu_custom_call.1} parent=5 // pred_region
        // Predicated region
        $region41: #{tpu_custom_call.1} parent=39 // pred_check
          %p334 = pneg %p55
        $region42: #{tpu_custom_call.1} parent=39 // pred_check_branch
          %336 = sbr.rel (%p334) target = $region44
        $region43: #{tpu_custom_call.1} parent=39 // pred_region
          %s337 = sand.u32 %s23, 1
          %s338 = scalar_lea.sflag [#allocation4], %s337
          %s339 = sand.u32 %s45, 1
          %s340 = smul.addr %s339, 64
          %s341 = scalar_lea.vmem [#allocation3], %s340
          %s342 = smul.u32 8, %s30
          %s344 = ssub.s32 1024, 1024
          %345 = vsyncadd %s338, %s344
          %s346 = smul.addr %s342, 2
          %s347 = smul.addr %s346, 64
          %s348 = scalar_lea.hbm %s0, %s347
          %s349 = sshll.u32 %s341, 4
          %s350 = int_to_ptr.vmem [resolvable:$true] %s349
          %355 = dma.hbm_to_vmem [thread:$0]  %s348, 1024, %s350, %s338, 128, 128, 8
        $region44: #{tpu_custom_call.1} parent=39 // pred_fallthru
          _
        // Predicated region
        $region45: #{tpu_custom_call.1} parent=39 // pred_check
          %p356 = pneg %p207
        $region46: #{tpu_custom_call.1} parent=39 // pred_check_branch
          %358 = sbr.rel (%p356) target = $region48
        $region47: #{tpu_custom_call.1} parent=39 // pred_region
          %s359 = sand.u32 %s23, 1
          %s360 = scalar_lea.sflag [#allocation4], %s359
          %s361 = sand.u32 %s197, 1
          %s362 = smul.addr %s361, 128
          %s363 = scalar_lea.vmem [#allocation11], %s362
          %s365 = ssub.s32 2048, 2048
          %366 = vsyncadd %s360, %s365
          %s367 = smul.addr %s31, 64
          %s368 = scalar_lea.hbm %s7, %s367
          %s369 = sshll.u32 %s363, 4
          %s370 = int_to_ptr.vmem [resolvable:$true] %s369
          %375 = dma.hbm_to_vmem [thread:$0]  %s368, 2048, %s370, %s360, 128, 64, 4
        $region48: #{tpu_custom_call.1} parent=39 // pred_fallthru
          _
        // Predicated region
        $region49: #{tpu_custom_call.1} parent=39 // pred_check
          %p376 = pneg %p233
        $region50: #{tpu_custom_call.1} parent=39 // pred_check_branch
          %378 = sbr.rel (%p376) target = $region52
        $region51: #{tpu_custom_call.1} parent=39 // pred_region
          %p379 = scmp.lt.s32.totalorder %s31, 1
          %s380 = scalar_select %p379, %s31, 1
          %s381 = scalar_lea.vmem %s8, %s380
        $region52: #{tpu_custom_call.1} parent=39 // pred_fallthru
          _
      $region40: #{tpu_custom_call.1} parent=5 // pred_fallthru
        _
      %p382 = scmp.le.s32.totalorder 1, %s23
      %p383 = scmp.lt.s32.totalorder %s23, 9
      %p384 = pnand %p382, %p383
      %p385 = pneg %p384
      // Predicated region
      $region53: #{tpu_custom_call.1} parent=5 // pred_check
        _
      $region54: #{tpu_custom_call.1} parent=5 // pred_check_branch
        %387 = sbr.rel (%p384) target = $region56
      $region55: #{tpu_custom_call.1} parent=5 // pred_region
        %s388 = ssub.s32 %s23, 1
        %s389 = sand.u32 %s28, 1
        %s390 = scalar_lea.sflag [#allocation4], %s389
        %s391 = sand.u32 %s48, 1
        %s392 = smul.addr %s391, 64
        %s393 = scalar_lea.vmem [#allocation3], %s392
        // Predicated region
        $region57: #{tpu_custom_call.1} parent=55 // pred_check
          %p394 = pneg %p61
        $region58: #{tpu_custom_call.1} parent=55 // pred_check_branch
          %396 = sbr.rel (%p394) target = $region60
        $region59: #{tpu_custom_call.1} parent=55 // pred_region
          %397 = dma.done %s390, 1024
        $region60: #{tpu_custom_call.1} parent=55 // pred_fallthru
          _
        // Predicated region
        $region61: #{tpu_custom_call.1} parent=55 // pred_check
          %p398 = pneg %p82
        $region62: #{tpu_custom_call.1} parent=55 // pred_check_branch
          %400 = sbr.rel (%p398) target = $region64
        $region63: #{tpu_custom_call.1} parent=55 // pred_region
          %401 = dma.done [#allocation7], 4096
        $region64: #{tpu_custom_call.1} parent=55 // pred_fallthru
          _
        // Predicated region
        $region65: #{tpu_custom_call.1} parent=55 // pred_check
          %p402 = pneg %p124
        $region66: #{tpu_custom_call.1} parent=55 // pred_check_branch
          %404 = sbr.rel (%p402) target = $region68
        $region67: #{tpu_custom_call.1} parent=55 // pred_region
          %405 = dma.done [#allocation7], 12288
        $region68: #{tpu_custom_call.1} parent=55 // pred_fallthru
          _
        // Predicated region
        $region69: #{tpu_custom_call.1} parent=55 // pred_check
          %p406 = pneg %p166
        $region70: #{tpu_custom_call.1} parent=55 // pred_check_branch
          %408 = sbr.rel (%p406) target = $region72
        $region71: #{tpu_custom_call.1} parent=55 // pred_region
          %409 = dma.done [#allocation10], 12288
        $region72: #{tpu_custom_call.1} parent=55 // pred_fallthru
          _
        %s410 = sand.u32 %s28, 1
        %s411 = scalar_lea.sflag [#allocation4], %s410
        %s412 = sand.u32 %s200, 1
        %s413 = smul.addr %s412, 128
        %s414 = scalar_lea.vmem [#allocation11], %s413
        // Predicated region
        $region73: #{tpu_custom_call.1} parent=55 // pred_check
          %p415 = pneg %p213
        $region74: #{tpu_custom_call.1} parent=55 // pred_check_branch
          %417 = sbr.rel (%p415) target = $region76
        $region75: #{tpu_custom_call.1} parent=55 // pred_region
          %418 = dma.done %s411, 2048
        $region76: #{tpu_custom_call.1} parent=55 // pred_fallthru
          _
        %s419 = sand.u32 %s28, 1
        %s420 = scalar_lea.sflag [#allocation4], %s419
        %s421 = sand.u32 %s48, 1
        %s422 = smul.addr %s421, 64
        %s423 = scalar_lea.vmem [#allocation3], %s422
        %p424 = pneg %p61
        %p425 = pneg %p58
        %p426 = pneg %p82
        %p427 = pneg %p79
        %p428 = pneg %p103
        %p429 = pneg %p100
        %p430 = pneg %p124
        %p431 = pneg %p121
        %p432 = pneg %p145
        %p433 = pneg %p142
        %p434 = pneg %p166
        %p435 = pneg %p163
        %p436 = pneg %p187
        %p437 = pneg %p184
        %s438 = sand.u32 %s28, 1
        %s439 = scalar_lea.sflag [#allocation4], %s438
        %s440 = sand.u32 %s200, 1
        %s441 = smul.addr %s440, 128
        %s442 = scalar_lea.vmem [#allocation11], %s441
        %p443 = pneg %p213
        %p444 = pneg %p210
        %p445 = scmp.lt.s32.totalorder %s33, 1
        %s446 = scalar_select %p445, %s33, 1
        %s447 = scalar_lea.vmem %s8, %s446
        %p448 = pneg %p239
        %p449 = pneg %p236
        %p450 = pneg %p267
        %p451 = pneg %p264
        %s452 = sand.u32 %s254, 1
        %s453 = scalar_lea.sflag [#allocation5], %s452
        %s454 = sand.u32 %s254, 1
        %s455 = smul.addr %s454, 32
        %s456 = scalar_lea.vmem [#allocation12], %s455
        %s457 = smul.u32 8, %s32
        %p458 = scmp.lt.s32.totalorder %s33, 1
        %s459 = scalar_select %p458, %s33, 1
        %s460 = scalar_lea.vmem %s8, %s459
        %s461 = smul.u32 8, %s32
        %p463 = scmp.eq.s32.totalorder %s33, 0
        // Predicated region
        $region77: #{tpu_custom_call.1} parent=55 // pred_check
          %p464 = pneg %p463
        $region78: #{tpu_custom_call.1} parent=55 // pred_check_branch
          %466 = sbr.rel (%p464) target = $region80
        $region79: #{tpu_custom_call.1} parent=55 // pred_region
          %v467 = vld [vmem:[%s393] sm:$0xff]
          %v468 = vld [vmem:[%s393 + $0x8] sm:$0xff]
          %v469 = vld [vmem:[%s393 + $0x10] sm:$0xff]
          %v470 = vld [vmem:[%s393 + $0x18] sm:$0xff]
          %v471 = vld [vmem:[%s393 + $0x20] sm:$0xff]
          %v472 = vld [vmem:[%s393 + $0x28] sm:$0xff]
          %v473 = vld [vmem:[%s393 + $0x30] sm:$0xff]
          %v474 = vld [vmem:[%s393 + $0x38] sm:$0xff]
          %v475 = vld [vmem:[#allocation6] sm:$0xff]
          %v476 = vld [vmem:[#allocation6 + $0x8] sm:$0xff]
          %v477 = vld [vmem:[#allocation6 + $0x10] sm:$0xff]
          %v478 = vld [vmem:[#allocation6 + $0x18] sm:$0xff]
          %v479 = vld [vmem:[#allocation6 + $0x20] sm:$0xff]
          %v480 = vld [vmem:[#allocation6 + $0x28] sm:$0xff]
          %v481 = vld [vmem:[#allocation6 + $0x30] sm:$0xff]
          %v482 = vld [vmem:[#allocation6 + $0x38] sm:$0xff]
          %v483 = vld [vmem:[#allocation6 + $0x40] sm:$0xff]
          %v484 = vld [vmem:[#allocation6 + $0x48] sm:$0xff]
          %v485 = vld [vmem:[#allocation6 + $0x50] sm:$0xff]
          %v486 = vld [vmem:[#allocation6 + $0x58] sm:$0xff]
          %v487 = vld [vmem:[#allocation6 + $0x60] sm:$0xff]
          %v488 = vld [vmem:[#allocation6 + $0x68] sm:$0xff]
          %v489 = vld [vmem:[#allocation6 + $0x70] sm:$0xff]
          %v490 = vld [vmem:[#allocation6 + $0x78] sm:$0xff]
          %v491 = vld [vmem:[#allocation6 + $0x80] sm:$0xff]
          %v492 = vld [vmem:[#allocation6 + $0x88] sm:$0xff]
          %v493 = vld [vmem:[#allocation6 + $0x90] sm:$0xff]
          %v494 = vld [vmem:[#allocation6 + $0x98] sm:$0xff]
          %v495 = vld [vmem:[#allocation6 + $0xa0] sm:$0xff]
          %v496 = vld [vmem:[#allocation6 + $0xa8] sm:$0xff]
          %v497 = vld [vmem:[#allocation6 + $0xb0] sm:$0xff]
          %v498 = vld [vmem:[#allocation6 + $0xb8] sm:$0xff]
          %v499 = vld [vmem:[#allocation6 + $0xc0] sm:$0xff]
          %v500 = vld [vmem:[#allocation6 + $0xc8] sm:$0xff]
          %v501 = vld [vmem:[#allocation6 + $0xd0] sm:$0xff]
          %v502 = vld [vmem:[#allocation6 + $0xd8] sm:$0xff]
          %v503 = vld [vmem:[#allocation6 + $0xe0] sm:$0xff]
          %v504 = vld [vmem:[#allocation6 + $0xe8] sm:$0xff]
          %v505 = vld [vmem:[#allocation6 + $0xf0] sm:$0xff]
          %v506 = vld [vmem:[#allocation6 + $0xf8] sm:$0xff]
          %v507 = vld [vmem:[%s2] sm:$0x3]
          %v509 = vlaneseq
          %v510 = vshrl.u32 %v509, 7
          %v511 = vsub.s32 0, %v510
          %v512 = vrot.slane %v507, %v511
          %v513 = vlaneseq
          %v514 = vshrl.u32 %v513, 7
          %v515 = vsub.s32 1, %v514
          %v516 = vrot.slane %v507, %v515
          %v527 = vunpack.c.l.b16 %v467
          %v528 = vunpack.c.h.b16 %v467
          %v529 = vunpack.c.l.b16 %v468
          %v530 = vunpack.c.h.b16 %v468
          %v531 = vunpack.c.l.b16 %v469
          %v532 = vunpack.c.h.b16 %v469
          %v533 = vunpack.c.l.b16 %v470
          %v534 = vunpack.c.h.b16 %v470
          %v535 = vunpack.c.l.b16 %v471
          %v536 = vunpack.c.h.b16 %v471
          %v537 = vunpack.c.l.b16 %v472
          %v538 = vunpack.c.h.b16 %v472
          %v539 = vunpack.c.l.b16 %v473
          %v540 = vunpack.c.h.b16 %v473
          %v541 = vunpack.c.l.b16 %v474
          %v542 = vunpack.c.h.b16 %v474
          %v543 = vpack.c.b16 %v529, %v527
          %v544 = vpack.c.b16 %v530, %v528
          %v545 = vpack.c.b16 %v533, %v531
          %v546 = vpack.c.b16 %v534, %v532
          %v547 = vpack.c.b16 %v537, %v535
          %v548 = vpack.c.b16 %v538, %v536
          %v549 = vpack.c.b16 %v541, %v539
          %v550 = vpack.c.b16 %v542, %v540
          %v591 = vunpack.c.l.b16 %v475
          %v592 = vunpack.c.h.b16 %v475
          %v593 = vunpack.c.l.b16 %v476
          %v594 = vunpack.c.h.b16 %v476
          %v595 = vunpack.c.l.b16 %v477
          %v596 = vunpack.c.h.b16 %v477
          %v597 = vunpack.c.l.b16 %v478
          %v598 = vunpack.c.h.b16 %v478
          %v599 = vunpack.c.l.b16 %v479
          %v600 = vunpack.c.h.b16 %v479
          %v601 = vunpack.c.l.b16 %v480
          %v602 = vunpack.c.h.b16 %v480
          %v603 = vunpack.c.l.b16 %v481
          %v604 = vunpack.c.h.b16 %v481
          %v605 = vunpack.c.l.b16 %v482
          %v606 = vunpack.c.h.b16 %v482
          %v607 = vunpack.c.l.b16 %v483
          %v608 = vunpack.c.h.b16 %v483
          %v609 = vunpack.c.l.b16 %v484
          %v610 = vunpack.c.h.b16 %v484
          %v611 = vunpack.c.l.b16 %v485
          %v612 = vunpack.c.h.b16 %v485
          %v613 = vunpack.c.l.b16 %v486
          %v614 = vunpack.c.h.b16 %v486
          %v615 = vunpack.c.l.b16 %v487
          %v616 = vunpack.c.h.b16 %v487
          %v617 = vunpack.c.l.b16 %v488
          %v618 = vunpack.c.h.b16 %v488
          %v619 = vunpack.c.l.b16 %v489
          %v620 = vunpack.c.h.b16 %v489
          %v621 = vunpack.c.l.b16 %v490
          %v622 = vunpack.c.h.b16 %v490
          %v623 = vunpack.c.l.b16 %v491
          %v624 = vunpack.c.h.b16 %v491
          %v625 = vunpack.c.l.b16 %v492
          %v626 = vunpack.c.h.b16 %v492
          %v627 = vunpack.c.l.b16 %v493
          %v628 = vunpack.c.h.b16 %v493
          %v629 = vunpack.c.l.b16 %v494
          %v630 = vunpack.c.h.b16 %v494
          %v631 = vunpack.c.l.b16 %v495
          %v632 = vunpack.c.h.b16 %v495
          %v633 = vunpack.c.l.b16 %v496
          %v634 = vunpack.c.h.b16 %v496
          %v635 = vunpack.c.l.b16 %v497
          %v636 = vunpack.c.h.b16 %v497
          %v637 = vunpack.c.l.b16 %v498
          %v638 = vunpack.c.h.b16 %v498
          %v639 = vunpack.c.l.b16 %v499
          %v640 = vunpack.c.h.b16 %v499
          %v641 = vunpack.c.l.b16 %v500
          %v642 = vunpack.c.h.b16 %v500
          %v643 = vunpack.c.l.b16 %v501
          %v644 = vunpack.c.h.b16 %v501
          %v645 = vunpack.c.l.b16 %v502
          %v646 = vunpack.c.h.b16 %v502
          %v647 = vunpack.c.l.b16 %v503
          %v648 = vunpack.c.h.b16 %v503
          %v649 = vunpack.c.l.b16 %v504
          %v650 = vunpack.c.h.b16 %v504
          %v651 = vunpack.c.l.b16 %v505
          %v652 = vunpack.c.h.b16 %v505
          %v653 = vunpack.c.l.b16 %v506
          %v654 = vunpack.c.h.b16 %v506
          %v655 = vpack.c.b16 %v593, %v591
          %v656 = vpack.c.b16 %v594, %v592
          %v657 = vpack.c.b16 %v597, %v595
          %v658 = vpack.c.b16 %v598, %v596
          %v659 = vpack.c.b16 %v601, %v599
          %v660 = vpack.c.b16 %v602, %v600
          %v661 = vpack.c.b16 %v605, %v603
          %v662 = vpack.c.b16 %v606, %v604
          %v663 = vpack.c.b16 %v609, %v607
          %v664 = vpack.c.b16 %v610, %v608
          %v665 = vpack.c.b16 %v613, %v611
          %v666 = vpack.c.b16 %v614, %v612
          %v667 = vpack.c.b16 %v617, %v615
          %v668 = vpack.c.b16 %v618, %v616
          %v669 = vpack.c.b16 %v621, %v619
          %v670 = vpack.c.b16 %v622, %v620
          %v671 = vpack.c.b16 %v625, %v623
          %v672 = vpack.c.b16 %v626, %v624
          %v673 = vpack.c.b16 %v629, %v627
          %v674 = vpack.c.b16 %v630, %v628
          %v675 = vpack.c.b16 %v633, %v631
          %v676 = vpack.c.b16 %v634, %v632
          %v677 = vpack.c.b16 %v637, %v635
          %v678 = vpack.c.b16 %v638, %v636
          %v679 = vpack.c.b16 %v641, %v639
          %v680 = vpack.c.b16 %v642, %v640
          %v681 = vpack.c.b16 %v645, %v643
          %v682 = vpack.c.b16 %v646, %v644
          %v683 = vpack.c.b16 %v649, %v647
          %v684 = vpack.c.b16 %v650, %v648
          %v685 = vpack.c.b16 %v653, %v651
          %v686 = vpack.c.b16 %v654, %v652
          %719 = vmatprep.subr.bf16.mxu0 %v656
          %720 = vmatpush1.bf16.msra.mxu0 %v655
          %721 = vmatprep.subr.bf16.mxu0 %v658
          %722 = vmatpush1.bf16.msra.mxu0 %v657
          %723 = vmatprep.subr.bf16.mxu0 %v660
          %724 = vmatpush1.bf16.msra.mxu0 %v659
          %725 = vmatprep.subr.bf16.mxu0 %v662
          %726 = vmatpush1.bf16.msra.mxu0 %v661
          %727 = vmatprep.subr.bf16.mxu0 %v664
          %728 = vmatpush1.bf16.msra.mxu0 %v663
          %729 = vmatprep.subr.bf16.mxu0 %v666
          %730 = vmatpush1.bf16.msra.mxu0 %v665
          %731 = vmatprep.subr.bf16.mxu0 %v668
          %732 = vmatpush1.bf16.msra.mxu0 %v667
          %733 = vmatprep.subr.bf16.mxu0 %v670
          %734 = vmatpush1.bf16.msra.mxu0 %v669
          %735 = vmatprep.subr.bf16.mxu0 %v672
          %736 = vmatpush1.bf16.msra.mxu0 %v671
          %737 = vmatprep.subr.bf16.mxu0 %v674
          %738 = vmatpush1.bf16.msra.mxu0 %v673
          %739 = vmatprep.subr.bf16.mxu0 %v676
          %740 = vmatpush1.bf16.msra.mxu0 %v675
          %741 = vmatprep.subr.bf16.mxu0 %v678
          %742 = vmatpush1.bf16.msra.mxu0 %v677
          %743 = vmatprep.subr.bf16.mxu0 %v680
          %744 = vmatpush1.bf16.msra.mxu0 %v679
          %745 = vmatprep.subr.bf16.mxu0 %v682
          %746 = vmatpush1.bf16.msra.mxu0 %v681
          %747 = vmatprep.subr.bf16.mxu0 %v684
          %748 = vmatpush1.bf16.msra.mxu0 %v683
          %749 = vmatprep.subr.bf16.mxu0 %v686
          %750 = vmatpush1.bf16.msra.mxu0 %v685
          %751 = vmatprep.mubr.bf16.mxu0 %v544
          %752 = vmatmul.mubr.bf16.gmra.mrb[0].mxu0 %v543
          %v753 = vpop.f32.mrb[0].mxu0
          %v754 = vadd.f32 %v512, %v753
          %v755 = vpop.f32.mrb[0].mxu0
          %v756 = vadd.f32 %v516, %v755
          %v757 = vpop.f32.mrb[0].mxu0
          %v758 = vadd.f32 %v512, %v757
          %v759 = vpop.f32.mrb[0].mxu0
          %v760 = vadd.f32 %v516, %v759
          %761 = vmatprep.mubr.bf16.mxu0 %v546
          %762 = vmatmul.mubr.bf16.gmra.mrb[0].mxu0 %v545
          %v763 = vpop.f32.mrb[0].mxu0
          %v764 = vadd.f32 %v512, %v763
          %v765 = vpop.f32.mrb[0].mxu0
          %v766 = vadd.f32 %v516, %v765
          %v767 = vpop.f32.mrb[0].mxu0
          %v768 = vadd.f32 %v512, %v767
          %v769 = vpop.f32.mrb[0].mxu0
          %v770 = vadd.f32 %v516, %v769
          %771 = vmatprep.mubr.bf16.mxu0 %v548
          %772 = vmatmul.mubr.bf16.gmra.mrb[0].mxu0 %v547
          %v773 = vpop.f32.mrb[0].mxu0
          %v774 = vadd.f32 %v512, %v773
          %v775 = vpop.f32.mrb[0].mxu0
          %v776 = vadd.f32 %v516, %v775
          %v777 = vpop.f32.mrb[0].mxu0
          %v778 = vadd.f32 %v512, %v777
          %v779 = vpop.f32.mrb[0].mxu0
          %v780 = vadd.f32 %v516, %v779
          %781 = vmatprep.mubr.bf16.mxu0 %v550
          %782 = vmatmul.mubr.bf16.gmra.mrb[0].mxu0 %v549
          %v783 = vpop.f32.mrb[0].mxu0
          %v784 = vadd.f32 %v512, %v783
          %v785 = vpop.f32.mrb[0].mxu0
          %v786 = vadd.f32 %v516, %v785
          %v787 = vpop.f32.mrb[0].mxu0
          %v788 = vadd.f32 %v512, %v787
          %v789 = vpop.f32.mrb[0].mxu0
          %v790 = vadd.f32 %v516, %v789
          %791 = vdwg.mxu0
          %v792 = vmax.f32 %v754, 0.0
          %v793 = vmax.f32 %v756, 0.0
          %v794 = vmax.f32 %v758, 0.0
          %v795 = vmax.f32 %v760, 0.0
          %v796 = vmax.f32 %v764, 0.0
          %v797 = vmax.f32 %v766, 0.0
          %v798 = vmax.f32 %v768, 0.0
          %v799 = vmax.f32 %v770, 0.0
          %v800 = vmax.f32 %v774, 0.0
          %v801 = vmax.f32 %v776, 0.0
          %v802 = vmax.f32 %v778, 0.0
          %v803 = vmax.f32 %v780, 0.0
          %v804 = vmax.f32 %v784, 0.0
          %v805 = vmax.f32 %v786, 0.0
          %v806 = vmax.f32 %v788, 0.0
          %v807 = vmax.f32 %v790, 0.0
          %v808 = vpack.c.bf16 %v794, %v792
          %v809 = vpack.c.bf16 %v795, %v793
          %v810 = vpack.c.bf16 %v798, %v796
          %v811 = vpack.c.bf16 %v799, %v797
          %v812 = vpack.c.bf16 %v802, %v800
          %v813 = vpack.c.bf16 %v803, %v801
          %v814 = vpack.c.bf16 %v806, %v804
          %v815 = vpack.c.bf16 %v807, %v805
          %v816 = vld [vmem:[#allocation8] sm:$0xff]
          %v817 = vld [vmem:[#allocation8 + $0x8] sm:$0xff]
          %v818 = vld [vmem:[#allocation8 + $0x10] sm:$0xff]
          %v819 = vld [vmem:[#allocation8 + $0x18] sm:$0xff]
          %v820 = vld [vmem:[#allocation8 + $0x20] sm:$0xff]
          %v821 = vld [vmem:[#allocation8 + $0x28] sm:$0xff]
          %v822 = vld [vmem:[#allocation8 + $0x30] sm:$0xff]
          %v823 = vld [vmem:[#allocation8 + $0x38] sm:$0xff]
          %v824 = vld [vmem:[#allocation8 + $0x40] sm:$0xff]
          %v825 = vld [vmem:[#allocation8 + $0x48] sm:$0xff]
          %v826 = vld [vmem:[#allocation8 + $0x50] sm:$0xff]
          %v827 = vld [vmem:[#allocation8 + $0x58] sm:$0xff]
          %v828 = vld [vmem:[#allocation8 + $0x60] sm:$0xff]
          %v829 = vld [vmem:[#allocation8 + $0x68] sm:$0xff]
          %v830 = vld [vmem:[#allocation8 + $0x70] sm:$0xff]
          %v831 = vld [vmem:[#allocation8 + $0x78] sm:$0xff]
          %v832 = vld [vmem:[#allocation8 + $0x80] sm:$0xff]
          %v833 = vld [vmem:[#allocation8 + $0x88] sm:$0xff]
          %v834 = vld [vmem:[#allocation8 + $0x90] sm:$0xff]
          %v835 = vld [vmem:[#allocation8 + $0x98] sm:$0xff]
          %v836 = vld [vmem:[#allocation8 + $0xa0] sm:$0xff]
          %v837 = vld [vmem:[#allocation8 + $0xa8] sm:$0xff]
          %v838 = vld [vmem:[#allocation8 + $0xb0] sm:$0xff]
          %v839 = vld [vmem:[#allocation8 + $0xb8] sm:$0xff]
          %v840 = vld [vmem:[#allocation8 + $0xc0] sm:$0xff]
          %v841 = vld [vmem:[#allocation8 + $0xc8] sm:$0xff]
          %v842 = vld [vmem:[#allocation8 + $0xd0] sm:$0xff]
          %v843 = vld [vmem:[#allocation8 + $0xd8] sm:$0xff]
          %v844 = vld [vmem:[#allocation8 + $0xe0] sm:$0xff]
          %v845 = vld [vmem:[#allocation8 + $0xe8] sm:$0xff]
          %v846 = vld [vmem:[#allocation8 + $0xf0] sm:$0xff]
          %v847 = vld [vmem:[#allocation8 + $0xf8] sm:$0xff]
          %v848 = vld [vmem:[#allocation8 + $0x100] sm:$0xff]
          %v849 = vld [vmem:[#allocation8 + $0x108] sm:$0xff]
          %v850 = vld [vmem:[#allocation8 + $0x110] sm:$0xff]
          %v851 = vld [vmem:[#allocation8 + $0x118] sm:$0xff]
          %v852 = vld [vmem:[#allocation8 + $0x120] sm:$0xff]
          %v853 = vld [vmem:[#allocation8 + $0x128] sm:$0xff]
          %v854 = vld [vmem:[#allocation8 + $0x130] sm:$0xff]
          %v855 = vld [vmem:[#allocation8 + $0x138] sm:$0xff]
          %v856 = vld [vmem:[#allocation8 + $0x140] sm:$0xff]
          %v857 = vld [vmem:[#allocation8 + $0x148] sm:$0xff]
          %v858 = vld [vmem:[#allocation8 + $0x150] sm:$0xff]
          %v859 = vld [vmem:[#allocation8 + $0x158] sm:$0xff]
          %v860 = vld [vmem:[#allocation8 + $0x160] sm:$0xff]
          %v861 = vld [vmem:[#allocation8 + $0x168] sm:$0xff]
          %v862 = vld [vmem:[#allocation8 + $0x170] sm:$0xff]
          %v863 = vld [vmem:[#allocation8 + $0x178] sm:$0xff]
          %v864 = vld [vmem:[#allocation8 + $0x180] sm:$0xff]
          %v865 = vld [vmem:[#allocation8 + $0x188] sm:$0xff]
          %v866 = vld [vmem:[#allocation8 + $0x190] sm:$0xff]
          %v867 = vld [vmem:[#allocation8 + $0x198] sm:$0xff]
          %v868 = vld [vmem:[#allocation8 + $0x1a0] sm:$0xff]
          %v869 = vld [vmem:[#allocation8 + $0x1a8] sm:$0xff]
          %v870 = vld [vmem:[#allocation8 + $0x1b0] sm:$0xff]
          %v871 = vld [vmem:[#allocation8 + $0x1b8] sm:$0xff]
          %v872 = vld [vmem:[#allocation8 + $0x1c0] sm:$0xff]
          %v873 = vld [vmem:[#allocation8 + $0x1c8] sm:$0xff]
          %v874 = vld [vmem:[#allocation8 + $0x1d0] sm:$0xff]
          %v875 = vld [vmem:[#allocation8 + $0x1d8] sm:$0xff]
          %v876 = vld [vmem:[#allocation8 + $0x1e0] sm:$0xff]
          %v877 = vld [vmem:[#allocation8 + $0x1e8] sm:$0xff]
          %v878 = vld [vmem:[#allocation8 + $0x1f0] sm:$0xff]
          %v879 = vld [vmem:[#allocation8 + $0x1f8] sm:$0xff]
          %v880 = vld [vmem:[#allocation8 + $0x200] sm:$0xff]
          %v881 = vld [vmem:[#allocation8 + $0x208] sm:$0xff]
          %v882 = vld [vmem:[#allocation8 + $0x210] sm:$0xff]
          %v883 = vld [vmem:[#allocation8 + $0x218] sm:$0xff]
          %v884 = vld [vmem:[#allocation8 + $0x220] sm:$0xff]
          %v885 = vld [vmem:[#allocation8 + $0x228] sm:$0xff]
          %v886 = vld [vmem:[#allocation8 + $0x230] sm:$0xff]
          %v887 = vld [vmem:[#allocation8 + $0x238] sm:$0xff]
          %v888 = vld [vmem:[#allocation8 + $0x240] sm:$0xff]
          %v889 = vld [vmem:[#allocation8 + $0x248] sm:$0xff]
          %v890 = vld [vmem:[#allocation8 + $0x250] sm:$0xff]
          %v891 = vld [vmem:[#allocation8 + $0x258] sm:$0xff]
          %v892 = vld [vmem:[#allocation8 + $0x260] sm:$0xff]
          %v893 = vld [vmem:[#allocation8 + $0x268] sm:$0xff]
          %v894 = vld [vmem:[#allocation8 + $0x270] sm:$0xff]
          %v895 = vld [vmem:[#allocation8 + $0x278] sm:$0xff]
          %v896 = vld [vmem:[#allocation8 + $0x280] sm:$0xff]
          %v897 = vld [vmem:[#allocation8 + $0x288] sm:$0xff]
          %v898 = vld [vmem:[#allocation8 + $0x290] sm:$0xff]
          %v899 = vld [vmem:[#allocation8 + $0x298] sm:$0xff]
          %v900 = vld [vmem:[#allocation8 + $0x2a0] sm:$0xff]
          %v901 = vld [vmem:[#allocation8 + $0x2a8] sm:$0xff]
          %v902 = vld [vmem:[#allocation8 + $0x2b0] sm:$0xff]
          %v903 = vld [vmem:[#allocation8 + $0x2b8] sm:$0xff]
          %v904 = vld [vmem:[#allocation8 + $0x2c0] sm:$0xff]
          %v905 = vld [vmem:[#allocation8 + $0x2c8] sm:$0xff]
          %v906 = vld [vmem:[#allocation8 + $0x2d0] sm:$0xff]
          %v907 = vld [vmem:[#allocation8 + $0x2d8] sm:$0xff]
          %v908 = vld [vmem:[#allocation8 + $0x2e0] sm:$0xff]
          %v909 = vld [vmem:[#allocation8 + $0x2e8] sm:$0xff]
          %v910 = vld [vmem:[#allocation8 + $0x2f0] sm:$0xff]
          %v911 = vld [vmem:[#allocation8 + $0x2f8] sm:$0xff]
          %v912 = vld [vmem:[%s4] sm:$0x3f]
          %v914 = vlaneseq
          %v915 = vshrl.u32 %v914, 7
          %v916 = vsub.s32 0, %v915
          %v917 = vrot.slane %v912, %v916
          %v918 = vlaneseq
          %v919 = vshrl.u32 %v918, 7
          %v920 = vsub.s32 1, %v919
          %v921 = vrot.slane %v912, %v920
          %v922 = vlaneseq
          %v923 = vshrl.u32 %v922, 7
          %v924 = vsub.s32 2, %v923
          %v925 = vrot.slane %v912, %v924
          %v926 = vlaneseq
          %v927 = vshrl.u32 %v926, 7
          %v928 = vsub.s32 3, %v927
          %v929 = vrot.slane %v912, %v928
          %v930 = vlaneseq
          %v931 = vshrl.u32 %v930, 7
          %v932 = vsub.s32 4, %v931
          %v933 = vrot.slane %v912, %v932
          %v934 = vlaneseq
          %v935 = vshrl.u32 %v934, 7
          %v936 = vsub.s32 5, %v935
          %v937 = vrot.slane %v912, %v936
          %v1040 = vunpack.c.l.b16 %v816
          %v1041 = vunpack.c.h.b16 %v816
          %v1042 = vunpack.c.l.b16 %v817
          %v1043 = vunpack.c.h.b16 %v817
          %v1044 = vunpack.c.l.b16 %v818
          %v1045 = vunpack.c.h.b16 %v818
          %v1046 = vunpack.c.l.b16 %v819
          %v1047 = vunpack.c.h.b16 %v819
          %v1048 = vunpack.c.l.b16 %v820
          %v1049 = vunpack.c.h.b16 %v820
          %v1050 = vunpack.c.l.b16 %v821
          %v1051 = vunpack.c.h.b16 %v821
          %v1052 = vunpack.c.l.b16 %v822
          %v1053 = vunpack.c.h.b16 %v822
          %v1054 = vunpack.c.l.b16 %v823
          %v1055 = vunpack.c.h.b16 %v823
          %v1056 = vunpack.c.l.b16 %v824
          %v1057 = vunpack.c.h.b16 %v824
          %v1058 = vunpack.c.l.b16 %v825
          %v1059 = vunpack.c.h.b16 %v825
          %v1060 = vunpack.c.l.b16 %v826
          %v1061 = vunpack.c.h.b16 %v826
          %v1062 = vunpack.c.l.b16 %v827
          %v1063 = vunpack.c.h.b16 %v827
          %v1064 = vunpack.c.l.b16 %v828
          %v1065 = vunpack.c.h.b16 %v828
          %v1066 = vunpack.c.l.b16 %v829
          %v1067 = vunpack.c.h.b16 %v829
          %v1068 = vunpack.c.l.b16 %v830
          %v1069 = vunpack.c.h.b16 %v830
          %v1070 = vunpack.c.l.b16 %v831
          %v1071 = vunpack.c.h.b16 %v831
          %v1072 = vunpack.c.l.b16 %v832
          %v1073 = vunpack.c.h.b16 %v832
          %v1074 = vunpack.c.l.b16 %v833
          %v1075 = vunpack.c.h.b16 %v833
          %v1076 = vunpack.c.l.b16 %v834
          %v1077 = vunpack.c.h.b16 %v834
          %v1078 = vunpack.c.l.b16 %v835
          %v1079 = vunpack.c.h.b16 %v835
          %v1080 = vunpack.c.l.b16 %v836
          %v1081 = vunpack.c.h.b16 %v836
          %v1082 = vunpack.c.l.b16 %v837
          %v1083 = vunpack.c.h.b16 %v837
          %v1084 = vunpack.c.l.b16 %v838
          %v1085 = vunpack.c.h.b16 %v838
          %v1086 = vunpack.c.l.b16 %v839
          %v1087 = vunpack.c.h.b16 %v839
          %v1088 = vunpack.c.l.b16 %v840
          %v1089 = vunpack.c.h.b16 %v840
          %v1090 = vunpack.c.l.b16 %v841
          %v1091 = vunpack.c.h.b16 %v841
          %v1092 = vunpack.c.l.b16 %v842
          %v1093 = vunpack.c.h.b16 %v842
          %v1094 = vunpack.c.l.b16 %v843
          %v1095 = vunpack.c.h.b16 %v843
          %v1096 = vunpack.c.l.b16 %v844
          %v1097 = vunpack.c.h.b16 %v844
          %v1098 = vunpack.c.l.b16 %v845
          %v1099 = vunpack.c.h.b16 %v845
          %v1100 = vunpack.c.l.b16 %v846
          %v1101 = vunpack.c.h.b16 %v846
          %v1102 = vunpack.c.l.b16 %v847
          %v1103 = vunpack.c.h.b16 %v847
          %v1104 = vunpack.c.l.b16 %v848
          %v1105 = vunpack.c.h.b16 %v848
          %v1106 = vunpack.c.l.b16 %v849
          %v1107 = vunpack.c.h.b16 %v849
          %v1108 = vunpack.c.l.b16 %v850
          %v1109 = vunpack.c.h.b16 %v850
          %v1110 = vunpack.c.l.b16 %v851
          %v1111 = vunpack.c.h.b16 %v851
          %v1112 = vunpack.c.l.b16 %v852
          %v1113 = vunpack.c.h.b16 %v852
          %v1114 = vunpack.c.l.b16 %v853
          %v1115 = vunpack.c.h.b16 %v853
          %v1116 = vunpack.c.l.b16 %v854
          %v1117 = vunpack.c.h.b16 %v854
          %v1118 = vunpack.c.l.b16 %v855
          %v1119 = vunpack.c.h.b16 %v855
          %v1120 = vunpack.c.l.b16 %v856
          %v1121 = vunpack.c.h.b16 %v856
          %v1122 = vunpack.c.l.b16 %v857
          %v1123 = vunpack.c.h.b16 %v857
          %v1124 = vunpack.c.l.b16 %v858
          %v1125 = vunpack.c.h.b16 %v858
          %v1126 = vunpack.c.l.b16 %v859
          %v1127 = vunpack.c.h.b16 %v859
          %v1128 = vunpack.c.l.b16 %v860
          %v1129 = vunpack.c.h.b16 %v860
          %v1130 = vunpack.c.l.b16 %v861
          %v1131 = vunpack.c.h.b16 %v861
          %v1132 = vunpack.c.l.b16 %v862
          %v1133 = vunpack.c.h.b16 %v862
          %v1134 = vunpack.c.l.b16 %v863
          %v1135 = vunpack.c.h.b16 %v863
          %v1136 = vunpack.c.l.b16 %v864
          %v1137 = vunpack.c.h.b16 %v864
          %v1138 = vunpack.c.l.b16 %v865
          %v1139 = vunpack.c.h.b16 %v865
          %v1140 = vunpack.c.l.b16 %v866
          %v1141 = vunpack.c.h.b16 %v866
          %v1142 = vunpack.c.l.b16 %v867
          %v1143 = vunpack.c.h.b16 %v867
          %v1144 = vunpack.c.l.b16 %v868
          %v1145 = vunpack.c.h.b16 %v868
          %v1146 = vunpack.c.l.b16 %v869
          %v1147 = vunpack.c.h.b16 %v869
          %v1148 = vunpack.c.l.b16 %v870
          %v1149 = vunpack.c.h.b16 %v870
          %v1150 = vunpack.c.l.b16 %v871
          %v1151 = vunpack.c.h.b16 %v871
          %v1152 = vunpack.c.l.b16 %v872
          %v1153 = vunpack.c.h.b16 %v872
          %v1154 = vunpack.c.l.b16 %v873
          %v1155 = vunpack.c.h.b16 %v873
          %v1156 = vunpack.c.l.b16 %v874
          %v1157 = vunpack.c.h.b16 %v874
          %v1158 = vunpack.c.l.b16 %v875
          %v1159 = vunpack.c.h.b16 %v875
          %v1160 = vunpack.c.l.b16 %v876
          %v1161 = vunpack.c.h.b16 %v876
          %v1162 = vunpack.c.l.b16 %v877
          %v1163 = vunpack.c.h.b16 %v877
          %v1164 = vunpack.c.l.b16 %v878
          %v1165 = vunpack.c.h.b16 %v878
          %v1166 = vunpack.c.l.b16 %v879
          %v1167 = vunpack.c.h.b16 %v879
          %v1168 = vunpack.c.l.b16 %v880
          %v1169 = vunpack.c.h.b16 %v880
          %v1170 = vunpack.c.l.b16 %v881
          %v1171 = vunpack.c.h.b16 %v881
          %v1172 = vunpack.c.l.b16 %v882
          %v1173 = vunpack.c.h.b16 %v882
          %v1174 = vunpack.c.l.b16 %v883
          %v1175 = vunpack.c.h.b16 %v883
          %v1176 = vunpack.c.l.b16 %v884
          %v1177 = vunpack.c.h.b16 %v884
          %v1178 = vunpack.c.l.b16 %v885
          %v1179 = vunpack.c.h.b16 %v885
          %v1180 = vunpack.c.l.b16 %v886
          %v1181 = vunpack.c.h.b16 %v886
          %v1182 = vunpack.c.l.b16 %v887
          %v1183 = vunpack.c.h.b16 %v887
          %v1184 = vunpack.c.l.b16 %v888
          %v1185 = vunpack.c.h.b16 %v888
          %v1186 = vunpack.c.l.b16 %v889
          %v1187 = vunpack.c.h.b16 %v889
          %v1188 = vunpack.c.l.b16 %v890
          %v1189 = vunpack.c.h.b16 %v890
          %v1190 = vunpack.c.l.b16 %v891
          %v1191 = vunpack.c.h.b16 %v891
          %v1192 = vunpack.c.l.b16 %v892
          %v1193 = vunpack.c.h.b16 %v892
          %v1194 = vunpack.c.l.b16 %v893
          %v1195 = vunpack.c.h.b16 %v893
          %v1196 = vunpack.c.l.b16 %v894
          %v1197 = vunpack.c.h.b16 %v894
          %v1198 = vunpack.c.l.b16 %v895
          %v1199 = vunpack.c.h.b16 %v895
          %v1200 = vunpack.c.l.b16 %v896
          %v1201 = vunpack.c.h.b16 %v896
          %v1202 = vunpack.c.l.b16 %v897
          %v1203 = vunpack.c.h.b16 %v897
          %v1204 = vunpack.c.l.b16 %v898
          %v1205 = vunpack.c.h.b16 %v898
          %v1206 = vunpack.c.l.b16 %v899
          %v1207 = vunpack.c.h.b16 %v899
          %v1208 = vunpack.c.l.b16 %v900
          %v1209 = vunpack.c.h.b16 %v900
          %v1210 = vunpack.c.l.b16 %v901
          %v1211 = vunpack.c.h.b16 %v901
          %v1212 = vunpack.c.l.b16 %v902
          %v1213 = vunpack.c.h.b16 %v902
          %v1214 = vunpack.c.l.b16 %v903
          %v1215 = vunpack.c.h.b16 %v903
          %v1216 = vunpack.c.l.b16 %v904
          %v1217 = vunpack.c.h.b16 %v904
          %v1218 = vunpack.c.l.b16 %v905
          %v1219 = vunpack.c.h.b16 %v905
          %v1220 = vunpack.c.l.b16 %v906
          %v1221 = vunpack.c.h.b16 %v906
          %v1222 = vunpack.c.l.b16 %v907
          %v1223 = vunpack.c.h.b16 %v907
          %v1224 = vunpack.c.l.b16 %v908
          %v1225 = vunpack.c.h.b16 %v908
          %v1226 = vunpack.c.l.b16 %v909
          %v1227 = vunpack.c.h.b16 %v909
          %v1228 = vunpack.c.l.b16 %v910
          %v1229 = vunpack.c.h.b16 %v910
          %v1230 = vunpack.c.l.b16 %v911
          %v1231 = vunpack.c.h.b16 %v911
          %v1232 = vpack.c.b16 %v1046, %v1040
          %v1233 = vpack.c.b16 %v1047, %v1041
          %v1234 = vpack.c.b16 %v1048, %v1042
          %v1235 = vpack.c.b16 %v1049, %v1043
          %v1236 = vpack.c.b16 %v1050, %v1044
          %v1237 = vpack.c.b16 %v1051, %v1045
          %v1238 = vpack.c.b16 %v1058, %v1052
          %v1239 = vpack.c.b16 %v1059, %v1053
          %v1240 = vpack.c.b16 %v1060, %v1054
          %v1241 = vpack.c.b16 %v1061, %v1055
          %v1242 = vpack.c.b16 %v1062, %v1056
          %v1243 = vpack.c.b16 %v1063, %v1057
          %v1244 = vpack.c.b16 %v1070, %v1064
          %v1245 = vpack.c.b16 %v1071, %v1065
          %v1246 = vpack.c.b16 %v1072, %v1066
          %v1247 = vpack.c.b16 %v1073, %v1067
          %v1248 = vpack.c.b16 %v1074, %v1068
          %v1249 = vpack.c.b16 %v1075, %v1069
          %v1250 = vpack.c.b16 %v1082, %v1076
          %v1251 = vpack.c.b16 %v1083, %v1077
          %v1252 = vpack.c.b16 %v1084, %v1078
          %v1253 = vpack.c.b16 %v1085, %v1079
          %v1254 = vpack.c.b16 %v1086, %v1080
          %v1255 = vpack.c.b16 %v1087, %v1081
          %v1256 = vpack.c.b16 %v1094, %v1088
          %v1257 = vpack.c.b16 %v1095, %v1089
          %v1258 = vpack.c.b16 %v1096, %v1090
          %v1259 = vpack.c.b16 %v1097, %v1091
          %v1260 = vpack.c.b16 %v1098, %v1092
          %v1261 = vpack.c.b16 %v1099, %v1093
          %v1262 = vpack.c.b16 %v1106, %v1100
          %v1263 = vpack.c.b16 %v1107, %v1101
          %v1264 = vpack.c.b16 %v1108, %v1102
          %v1265 = vpack.c.b16 %v1109, %v1103
          %v1266 = vpack.c.b16 %v1110, %v1104
          %v1267 = vpack.c.b16 %v1111, %v1105
          %v1268 = vpack.c.b16 %v1118, %v1112
          %v1269 = vpack.c.b16 %v1119, %v1113
          %v1270 = vpack.c.b16 %v1120, %v1114
          %v1271 = vpack.c.b16 %v1121, %v1115
          %v1272 = vpack.c.b16 %v1122, %v1116
          %v1273 = vpack.c.b16 %v1123, %v1117
          %v1274 = vpack.c.b16 %v1130, %v1124
          %v1275 = vpack.c.b16 %v1131, %v1125
          %v1276 = vpack.c.b16 %v1132, %v1126
          %v1277 = vpack.c.b16 %v1133, %v1127
          %v1278 = vpack.c.b16 %v1134, %v1128
          %v1279 = vpack.c.b16 %v1135, %v1129
          %v1280 = vpack.c.b16 %v1142, %v1136
          %v1281 = vpack.c.b16 %v1143, %v1137
          %v1282 = vpack.c.b16 %v1144, %v1138
          %v1283 = vpack.c.b16 %v1145, %v1139
          %v1284 = vpack.c.b16 %v1146, %v1140
          %v1285 = vpack.c.b16 %v1147, %v1141
          %v1286 = vpack.c.b16 %v1154, %v1148
          %v1287 = vpack.c.b16 %v1155, %v1149
          %v1288 = vpack.c.b16 %v1156, %v1150
          %v1289 = vpack.c.b16 %v1157, %v1151
          %v1290 = vpack.c.b16 %v1158, %v1152
          %v1291 = vpack.c.b16 %v1159, %v1153
          %v1292 = vpack.c.b16 %v1166, %v1160
          %v1293 = vpack.c.b16 %v1167, %v1161
          %v1294 = vpack.c.b16 %v1168, %v1162
          %v1295 = vpack.c.b16 %v1169, %v1163
          %v1296 = vpack.c.b16 %v1170, %v1164
          %v1297 = vpack.c.b16 %v1171, %v1165
          %v1298 = vpack.c.b16 %v1178, %v1172
          %v1299 = vpack.c.b16 %v1179, %v1173
          %v1300 = vpack.c.b16 %v1180, %v1174
          %v1301 = vpack.c.b16 %v1181, %v1175
          %v1302 = vpack.c.b16 %v1182, %v1176
          %v1303 = vpack.c.b16 %v1183, %v1177
          %v1304 = vpack.c.b16 %v1190, %v1184
          %v1305 = vpack.c.b16 %v1191, %v1185
          %v1306 = vpack.c.b16 %v1192, %v1186
          %v1307 = vpack.c.b16 %v1193, %v1187
          %v1308 = vpack.c.b16 %v1194, %v1188
          %v1309 = vpack.c.b16 %v1195, %v1189
          %v1310 = vpack.c.b16 %v1202, %v1196
          %v1311 = vpack.c.b16 %v1203, %v1197
          %v1312 = vpack.c.b16 %v1204, %v1198
          %v1313 = vpack.c.b16 %v1205, %v1199
          %v1314 = vpack.c.b16 %v1206, %v1200
          %v1315 = vpack.c.b16 %v1207, %v1201
          %v1316 = vpack.c.b16 %v1214, %v1208
          %v1317 = vpack.c.b16 %v1215, %v1209
          %v1318 = vpack.c.b16 %v1216, %v1210
          %v1319 = vpack.c.b16 %v1217, %v1211
          %v1320 = vpack.c.b16 %v1218, %v1212
          %v1321 = vpack.c.b16 %v1219, %v1213
          %v1322 = vpack.c.b16 %v1226, %v1220
          %v1323 = vpack.c.b16 %v1227, %v1221
          %v1324 = vpack.c.b16 %v1228, %v1222
          %v1325 = vpack.c.b16 %v1229, %v1223
          %v1326 = vpack.c.b16 %v1230, %v1224
          %v1327 = vpack.c.b16 %v1231, %v1225
          %1424 = vmatprep.subr.bf16.mxu0 %v1233
          %1425 = vmatpush1.bf16.msra.mxu0 %v1232
          %1426 = vmatprep.subr.bf16.mxu0 %v1239
          %1427 = vmatpush1.bf16.msra.mxu0 %v1238
          %1428 = vmatprep.subr.bf16.mxu0 %v1245
          %1429 = vmatpush1.bf16.msra.mxu0 %v1244
          %1430 = vmatprep.subr.bf16.mxu0 %v1251
          %1431 = vmatpush1.bf16.msra.mxu0 %v1250
          %1432 = vmatprep.subr.bf16.mxu0 %v1257
          %1433 = vmatpush1.bf16.msra.mxu0 %v1256
          %1434 = vmatprep.subr.bf16.mxu0 %v1263
          %1435 = vmatpush1.bf16.msra.mxu0 %v1262
          %1436 = vmatprep.subr.bf16.mxu0 %v1269
          %1437 = vmatpush1.bf16.msra.mxu0 %v1268
          %1438 = vmatprep.subr.bf16.mxu0 %v1275
          %1439 = vmatpush1.bf16.msra.mxu0 %v1274
          %1440 = vmatprep.subr.bf16.mxu0 %v1281
          %1441 = vmatpush1.bf16.msra.mxu0 %v1280
          %1442 = vmatprep.subr.bf16.mxu0 %v1287
          %1443 = vmatpush1.bf16.msra.mxu0 %v1286
          %1444 = vmatprep.subr.bf16.mxu0 %v1293
          %1445 = vmatpush1.bf16.msra.mxu0 %v1292
          %1446 = vmatprep.subr.bf16.mxu0 %v1299
          %1447 = vmatpush1.bf16.msra.mxu0 %v1298
          %1448 = vmatprep.subr.bf16.mxu0 %v1305
          %1449 = vmatpush1.bf16.msra.mxu0 %v1304
          %1450 = vmatprep.subr.bf16.mxu0 %v1311
          %1451 = vmatpush1.bf16.msra.mxu0 %v1310
          %1452 = vmatprep.subr.bf16.mxu0 %v1317
          %1453 = vmatpush1.bf16.msra.mxu0 %v1316
          %1454 = vmatprep.subr.bf16.mxu0 %v1323
          %1455 = vmatpush1.bf16.msra.mxu0 %v1322
          %1456 = vmatprep.mubr.bf16.mxu0 %v809
          %1457 = vmatmul.mubr.bf16.gmra.mrb[0].mxu0 %v808
          %v1458 = vpop.f32.mrb[0].mxu0
          %v1459 = vadd.f32 %v917, %v1458
          %v1460 = vpop.f32.mrb[0].mxu0
          %v1461 = vadd.f32 %v921, %v1460
          %v1462 = vpop.f32.mrb[0].mxu0
          %v1463 = vadd.f32 %v917, %v1462
          %v1464 = vpop.f32.mrb[0].mxu0
          %v1465 = vadd.f32 %v921, %v1464
          %1466 = vmatprep.mubr.bf16.mxu0 %v811
          %1467 = vmatmul.mubr.bf16.gmra.mrb[0].mxu0 %v810
          %v1468 = vpop.f32.mrb[0].mxu0
          %v1469 = vadd.f32 %v917, %v1468
          %v1470 = vpop.f32.mrb[0].mxu0
          %v1471 = vadd.f32 %v921, %v1470
          %v1472 = vpop.f32.mrb[0].mxu0
          %v1473 = vadd.f32 %v917, %v1472
          %v1474 = vpop.f32.mrb[0].mxu0
          %v1475 = vadd.f32 %v921, %v1474
          %1476 = vmatprep.mubr.bf16.mxu0 %v813
          %1477 = vmatmul.mubr.bf16.gmra.mrb[0].mxu0 %v812
          %v1478 = vpop.f32.mrb[0].mxu0
          %v1479 = vadd.f32 %v917, %v1478
          %v1480 = vpop.f32.mrb[0].mxu0
          %v1481 = vadd.f32 %v921, %v1480
          %v1482 = vpop.f32.mrb[0].mxu0
          %v1483 = vadd.f32 %v917, %v1482
          %v1484 = vpop.f32.mrb[0].mxu0
          %v1485 = vadd.f32 %v921, %v1484
          %1486 = vmatprep.mubr.bf16.mxu0 %v815
          %1487 = vmatmul.mubr.bf16.gmra.mrb[0].mxu0 %v814
          %v1488 = vpop.f32.mrb[0].mxu0
          %v1489 = vadd.f32 %v917, %v1488
          %v1490 = vpop.f32.mrb[0].mxu0
          %v1491 = vadd.f32 %v921, %v1490
          %v1492 = vpop.f32.mrb[0].mxu0
          %v1493 = vadd.f32 %v917, %v1492
          %v1494 = vpop.f32.mrb[0].mxu0
          %v1495 = vadd.f32 %v921, %v1494
          %1496 = vdwg.mxu0
          %1497 = vmatprep.subr.bf16.mxu0 %v1235
          %1498 = vmatpush1.bf16.msra.mxu0 %v1234
          %1499 = vmatprep.subr.bf16.mxu0 %v1241
          %1500 = vmatpush1.bf16.msra.mxu0 %v1240
          %1501 = vmatprep.subr.bf16.mxu0 %v1247
          %1502 = vmatpush1.bf16.msra.mxu0 %v1246
          %1503 = vmatprep.subr.bf16.mxu0 %v1253
          %1504 = vmatpush1.bf16.msra.mxu0 %v1252
          %1505 = vmatprep.subr.bf16.mxu0 %v1259
          %1506 = vmatpush1.bf16.msra.mxu0 %v1258
          %1507 = vmatprep.subr.bf16.mxu0 %v1265
          %1508 = vmatpush1.bf16.msra.mxu0 %v1264
          %1509 = vmatprep.subr.bf16.mxu0 %v1271
          %1510 = vmatpush1.bf16.msra.mxu0 %v1270
          %1511 = vmatprep.subr.bf16.mxu0 %v1277
          %1512 = vmatpush1.bf16.msra.mxu0 %v1276
          %1513 = vmatprep.subr.bf16.mxu0 %v1283
          %1514 = vmatpush1.bf16.msra.mxu0 %v1282
          %1515 = vmatprep.subr.bf16.mxu0 %v1289
          %1516 = vmatpush1.bf16.msra.mxu0 %v1288
          %1517 = vmatprep.subr.bf16.mxu0 %v1295
          %1518 = vmatpush1.bf16.msra.mxu0 %v1294
          %1519 = vmatprep.subr.bf16.mxu0 %v1301
          %1520 = vmatpush1.bf16.msra.mxu0 %v1300
          %1521 = vmatprep.subr.bf16.mxu0 %v1307
          %1522 = vmatpush1.bf16.msra.mxu0 %v1306
          %1523 = vmatprep.subr.bf16.mxu0 %v1313
          %1524 = vmatpush1.bf16.msra.mxu0 %v1312
          %1525 = vmatprep.subr.bf16.mxu0 %v1319
          %1526 = vmatpush1.bf16.msra.mxu0 %v1318
          %1527 = vmatprep.subr.bf16.mxu0 %v1325
          %1528 = vmatpush1.bf16.msra.mxu0 %v1324
          %1529 = vmatprep.mubr.bf16.mxu0 %v809
          %1530 = vmatmul.mubr.bf16.gmra.mrb[0].mxu0 %v808
          %v1531 = vpop.f32.mrb[0].mxu0
          %v1532 = vadd.f32 %v925, %v1531
          %v1533 = vpop.f32.mrb[0].mxu0
          %v1534 = vadd.f32 %v929, %v1533
          %v1535 = vpop.f32.mrb[0].mxu0
          %v1536 = vadd.f32 %v925, %v1535
          %v1537 = vpop.f32.mrb[0].mxu0
          %v1538 = vadd.f32 %v929, %v1537
          %1539 = vmatprep.mubr.bf16.mxu0 %v811
          %1540 = vmatmul.mubr.bf16.gmra.mrb[0].mxu0 %v810
          %v1541 = vpop.f32.mrb[0].mxu0
          %v1542 = vadd.f32 %v925, %v1541
          %v1543 = vpop.f32.mrb[0].mxu0
          %v1544 = vadd.f32 %v929, %v1543
          %v1545 = vpop.f32.mrb[0].mxu0
          %v1546 = vadd.f32 %v925, %v1545
          %v1547 = vpop.f32.mrb[0].mxu0
          %v1548 = vadd.f32 %v929, %v1547
          %1549 = vmatprep.mubr.bf16.mxu0 %v813
          %1550 = vmatmul.mubr.bf16.gmra.mrb[0].mxu0 %v812
          %v1551 = vpop.f32.mrb[0].mxu0
          %v1552 = vadd.f32 %v925, %v1551
          %v1553 = vpop.f32.mrb[0].mxu0
          %v1554 = vadd.f32 %v929, %v1553
          %v1555 = vpop.f32.mrb[0].mxu0
          %v1556 = vadd.f32 %v925, %v1555
          %v1557 = vpop.f32.mrb[0].mxu0
          %v1558 = vadd.f32 %v929, %v1557
          %1559 = vmatprep.mubr.bf16.mxu0 %v815
          %1560 = vmatmul.mubr.bf16.gmra.mrb[0].mxu0 %v814
          %v1561 = vpop.f32.mrb[0].mxu0
          %v1562 = vadd.f32 %v925, %v1561
          %v1563 = vpop.f32.mrb[0].mxu0
          %v1564 = vadd.f32 %v929, %v1563
          %v1565 = vpop.f32.mrb[0].mxu0
          %v1566 = vadd.f32 %v925, %v1565
          %v1567 = vpop.f32.mrb[0].mxu0
          %v1568 = vadd.f32 %v929, %v1567
          %1569 = vdwg.mxu0
          %1570 = vmatprep.subr.bf16.mxu0 %v1237
          %1571 = vmatpush1.bf16.msra.mxu0 %v1236
          %1572 = vmatprep.subr.bf16.mxu0 %v1243
          %1573 = vmatpush1.bf16.msra.mxu0 %v1242
          %1574 = vmatprep.subr.bf16.mxu0 %v1249
          %1575 = vmatpush1.bf16.msra.mxu0 %v1248
          %1576 = vmatprep.subr.bf16.mxu0 %v1255
          %1577 = vmatpush1.bf16.msra.mxu0 %v1254
          %1578 = vmatprep.subr.bf16.mxu0 %v1261
          %1579 = vmatpush1.bf16.msra.mxu0 %v1260
          %1580 = vmatprep.subr.bf16.mxu0 %v1267
          %1581 = vmatpush1.bf16.msra.mxu0 %v1266
          %1582 = vmatprep.subr.bf16.mxu0 %v1273
          %1583 = vmatpush1.bf16.msra.mxu0 %v1272
          %1584 = vmatprep.subr.bf16.mxu0 %v1279
          %1585 = vmatpush1.bf16.msra.mxu0 %v1278
          %1586 = vmatprep.subr.bf16.mxu0 %v1285
          %1587 = vmatpush1.bf16.msra.mxu0 %v1284
          %1588 = vmatprep.subr.bf16.mxu0 %v1291
          %1589 = vmatpush1.bf16.msra.mxu0 %v1290
          %1590 = vmatprep.subr.bf16.mxu0 %v1297
          %1591 = vmatpush1.bf16.msra.mxu0 %v1296
          %1592 = vmatprep.subr.bf16.mxu0 %v1303
          %1593 = vmatpush1.bf16.msra.mxu0 %v1302
          %1594 = vmatprep.subr.bf16.mxu0 %v1309
          %1595 = vmatpush1.bf16.msra.mxu0 %v1308
          %1596 = vmatprep.subr.bf16.mxu0 %v1315
          %1597 = vmatpush1.bf16.msra.mxu0 %v1314
          %1598 = vmatprep.subr.bf16.mxu0 %v1321
          %1599 = vmatpush1.bf16.msra.mxu0 %v1320
          %1600 = vmatprep.subr.bf16.mxu0 %v1327
          %1601 = vmatpush1.bf16.msra.mxu0 %v1326
          %1602 = vmatprep.mubr.bf16.mxu0 %v809
          %1603 = vmatmul.mubr.bf16.gmra.mrb[0].mxu0 %v808
          %v1604 = vpop.f32.mrb[0].mxu0
          %v1605 = vadd.f32 %v933, %v1604
          %v1606 = vpop.f32.mrb[0].mxu0
          %v1607 = vadd.f32 %v937, %v1606
          %v1608 = vpop.f32.mrb[0].mxu0
          %v1609 = vadd.f32 %v933, %v1608
          %v1610 = vpop.f32.mrb[0].mxu0
          %v1611 = vadd.f32 %v937, %v1610
          %1612 = vmatprep.mubr.bf16.mxu0 %v811
          %1613 = vmatmul.mubr.bf16.gmra.mrb[0].mxu0 %v810
          %v1614 = vpop.f32.mrb[0].mxu0
          %v1615 = vadd.f32 %v933, %v1614
          %v1616 = vpop.f32.mrb[0].mxu0
          %v1617 = vadd.f32 %v937, %v1616
          %v1618 = vpop.f32.mrb[0].mxu0
          %v1619 = vadd.f32 %v933, %v1618
          %v1620 = vpop.f32.mrb[0].mxu0
          %v1621 = vadd.f32 %v937, %v1620
          %1622 = vmatprep.mubr.bf16.mxu0 %v813
          %1623 = vmatmul.mubr.bf16.gmra.mrb[0].mxu0 %v812
          %v1624 = vpop.f32.mrb[0].mxu0
          %v1625 = vadd.f32 %v933, %v1624
          %v1626 = vpop.f32.mrb[0].mxu0
          %v1627 = vadd.f32 %v937, %v1626
          %v1628 = vpop.f32.mrb[0].mxu0
          %v1629 = vadd.f32 %v933, %v1628
          %v1630 = vpop.f32.mrb[0].mxu0
          %v1631 = vadd.f32 %v937, %v1630
          %1632 = vmatprep.mubr.bf16.mxu0 %v815
          %1633 = vmatmul.mubr.bf16.gmra.mrb[0].mxu0 %v814
          %v1634 = vpop.f32.mrb[0].mxu0
          %v1635 = vadd.f32 %v933, %v1634
          %v1636 = vpop.f32.mrb[0].mxu0
          %v1637 = vadd.f32 %v937, %v1636
          %v1638 = vpop.f32.mrb[0].mxu0
          %v1639 = vadd.f32 %v933, %v1638
          %v1640 = vpop.f32.mrb[0].mxu0
          %v1641 = vadd.f32 %v937, %v1640
          %1642 = vdwg.mxu0
          %v1643 = vxor.u32 %v1459, 2147483648
          %v1644 = vxor.u32 %v1461, 2147483648
          %v1645 = vxor.u32 %v1463, 2147483648
          %v1646 = vxor.u32 %v1465, 2147483648
          %v1647 = vxor.u32 %v1469, 2147483648
          %v1648 = vxor.u32 %v1471, 2147483648
          %v1649 = vxor.u32 %v1473, 2147483648
          %v1650 = vxor.u32 %v1475, 2147483648
          %v1651 = vxor.u32 %v1479, 2147483648
          %v1652 = vxor.u32 %v1481, 2147483648
          %v1653 = vxor.u32 %v1483, 2147483648
          %v1654 = vxor.u32 %v1485, 2147483648
          %v1655 = vxor.u32 %v1489, 2147483648
          %v1656 = vxor.u32 %v1491, 2147483648
          %v1657 = vxor.u32 %v1493, 2147483648
          %v1658 = vxor.u32 %v1495, 2147483648
          %v1659 = vmul.f32 %v1643, 1.442695
          %v1660 = vpow.pop %v1659
          %v1661 = vmul.f32 %v1644, 1.442695
          %v1662 = vpow.pop %v1661
          %v1663 = vmul.f32 %v1645, 1.442695
          %v1664 = vpow.pop %v1663
          %v1665 = vmul.f32 %v1646, 1.442695
          %v1666 = vpow.pop %v1665
          %v1667 = vmul.f32 %v1647, 1.442695
          %v1668 = vpow.pop %v1667
          %v1669 = vmul.f32 %v1648, 1.442695
          %v1670 = vpow.pop %v1669
          %v1671 = vmul.f32 %v1649, 1.442695
          %v1672 = vpow.pop %v1671
          %v1673 = vmul.f32 %v1650, 1.442695
          %v1674 = vpow.pop %v1673
          %v1675 = vmul.f32 %v1651, 1.442695
          %v1676 = vpow.pop %v1675
          %v1677 = vmul.f32 %v1652, 1.442695
          %v1678 = vpow.pop %v1677
          %v1679 = vmul.f32 %v1653, 1.442695
          %v1680 = vpow.pop %v1679
          %v1681 = vmul.f32 %v1654, 1.442695
          %v1682 = vpow.pop %v1681
          %v1683 = vmul.f32 %v1655, 1.442695
          %v1684 = vpow.pop %v1683
          %v1685 = vmul.f32 %v1656, 1.442695
          %v1686 = vpow.pop %v1685
          %v1687 = vmul.f32 %v1657, 1.442695
          %v1688 = vpow.pop %v1687
          %v1689 = vmul.f32 %v1658, 1.442695
          %v1690 = vpow.pop %v1689
          %v1691 = vadd.f32 %v1660, 1.0
          %v1692 = vadd.f32 %v1662, 1.0
          %v1693 = vadd.f32 %v1664, 1.0
          %v1694 = vadd.f32 %v1666, 1.0
          %v1695 = vadd.f32 %v1668, 1.0
          %v1696 = vadd.f32 %v1670, 1.0
          %v1697 = vadd.f32 %v1672, 1.0
          %v1698 = vadd.f32 %v1674, 1.0
          %v1699 = vadd.f32 %v1676, 1.0
          %v1700 = vadd.f32 %v1678, 1.0
          %v1701 = vadd.f32 %v1680, 1.0
          %v1702 = vadd.f32 %v1682, 1.0
          %v1703 = vadd.f32 %v1684, 1.0
          %v1704 = vadd.f32 %v1686, 1.0
          %v1705 = vadd.f32 %v1688, 1.0
          %v1706 = vadd.f32 %v1690, 1.0
          %v1707 = vrcp.pop %v1691
          %v1708 = vmul.f32 1.0, %v1707
          %v1709 = vrcp.pop %v1692
          %v1710 = vmul.f32 1.0, %v1709
          %v1711 = vrcp.pop %v1693
          %v1712 = vmul.f32 1.0, %v1711
          %v1713 = vrcp.pop %v1694
          %v1714 = vmul.f32 1.0, %v1713
          %v1715 = vrcp.pop %v1695
          %v1716 = vmul.f32 1.0, %v1715
          %v1717 = vrcp.pop %v1696
          %v1718 = vmul.f32 1.0, %v1717
          %v1719 = vrcp.pop %v1697
          %v1720 = vmul.f32 1.0, %v1719
          %v1721 = vrcp.pop %v1698
          %v1722 = vmul.f32 1.0, %v1721
          %v1723 = vrcp.pop %v1699
          %v1724 = vmul.f32 1.0, %v1723
          %v1725 = vrcp.pop %v1700
          %v1726 = vmul.f32 1.0, %v1725
          %v1727 = vrcp.pop %v1701
          %v1728 = vmul.f32 1.0, %v1727
          %v1729 = vrcp.pop %v1702
          %v1730 = vmul.f32 1.0, %v1729
          %v1731 = vrcp.pop %v1703
          %v1732 = vmul.f32 1.0, %v1731
          %v1733 = vrcp.pop %v1704
          %v1734 = vmul.f32 1.0, %v1733
          %v1735 = vrcp.pop %v1705
          %v1736 = vmul.f32 1.0, %v1735
          %v1737 = vrcp.pop %v1706
          %v1738 = vmul.f32 1.0, %v1737
          %v1739 = vtanh.pop %v1532
          %v1740 = vtanh.pop %v1534
          %v1741 = vtanh.pop %v1536
          %v1742 = vtanh.pop %v1538
          %v1743 = vtanh.pop %v1542
          %v1744 = vtanh.pop %v1544
          %v1745 = vtanh.pop %v1546
          %v1746 = vtanh.pop %v1548
          %v1747 = vtanh.pop %v1552
          %v1748 = vtanh.pop %v1554
          %v1749 = vtanh.pop %v1556
          %v1750 = vtanh.pop %v1558
          %v1751 = vtanh.pop %v1562
          %v1752 = vtanh.pop %v1564
          %v1753 = vtanh.pop %v1566
          %v1754 = vtanh.pop %v1568
          %v1755 = vxor.u32 %v1605, 2147483648
          %v1756 = vxor.u32 %v1607, 2147483648
          %v1757 = vxor.u32 %v1609, 2147483648
          %v1758 = vxor.u32 %v1611, 2147483648
          %v1759 = vxor.u32 %v1615, 2147483648
          %v1760 = vxor.u32 %v1617, 2147483648
          %v1761 = vxor.u32 %v1619, 2147483648
          %v1762 = vxor.u32 %v1621, 2147483648
          %v1763 = vxor.u32 %v1625, 2147483648
          %v1764 = vxor.u32 %v1627, 2147483648
          %v1765 = vxor.u32 %v1629, 2147483648
          %v1766 = vxor.u32 %v1631, 2147483648
          %v1767 = vxor.u32 %v1635, 2147483648
          %v1768 = vxor.u32 %v1637, 2147483648
          %v1769 = vxor.u32 %v1639, 2147483648
          %v1770 = vxor.u32 %v1641, 2147483648
          %v1771 = vmul.f32 %v1755, 1.442695
          %v1772 = vpow.pop %v1771
          %v1773 = vmul.f32 %v1756, 1.442695
          %v1774 = vpow.pop %v1773
          %v1775 = vmul.f32 %v1757, 1.442695
          %v1776 = vpow.pop %v1775
          %v1777 = vmul.f32 %v1758, 1.442695
          %v1778 = vpow.pop %v1777
          %v1779 = vmul.f32 %v1759, 1.442695
          %v1780 = vpow.pop %v1779
          %v1781 = vmul.f32 %v1760, 1.442695
          %v1782 = vpow.pop %v1781
          %v1783 = vmul.f32 %v1761, 1.442695
          %v1784 = vpow.pop %v1783
          %v1785 = vmul.f32 %v1762, 1.442695
          %v1786 = vpow.pop %v1785
          %v1787 = vmul.f32 %v1763, 1.442695
          %v1788 = vpow.pop %v1787
          %v1789 = vmul.f32 %v1764, 1.442695
          %v1790 = vpow.pop %v1789
          %v1791 = vmul.f32 %v1765, 1.442695
          %v1792 = vpow.pop %v1791
          %v1793 = vmul.f32 %v1766, 1.442695
          %v1794 = vpow.pop %v1793
          %v1795 = vmul.f32 %v1767, 1.442695
          %v1796 = vpow.pop %v1795
          %v1797 = vmul.f32 %v1768, 1.442695
          %v1798 = vpow.pop %v1797
          %v1799 = vmul.f32 %v1769, 1.442695
          %v1800 = vpow.pop %v1799
          %v1801 = vmul.f32 %v1770, 1.442695
          %v1802 = vpow.pop %v1801
          %v1803 = vadd.f32 %v1772, 1.0
          %v1804 = vadd.f32 %v1774, 1.0
          %v1805 = vadd.f32 %v1776, 1.0
          %v1806 = vadd.f32 %v1778, 1.0
          %v1807 = vadd.f32 %v1780, 1.0
          %v1808 = vadd.f32 %v1782, 1.0
          %v1809 = vadd.f32 %v1784, 1.0
          %v1810 = vadd.f32 %v1786, 1.0
          %v1811 = vadd.f32 %v1788, 1.0
          %v1812 = vadd.f32 %v1790, 1.0
          %v1813 = vadd.f32 %v1792, 1.0
          %v1814 = vadd.f32 %v1794, 1.0
          %v1815 = vadd.f32 %v1796, 1.0
          %v1816 = vadd.f32 %v1798, 1.0
          %v1817 = vadd.f32 %v1800, 1.0
          %v1818 = vadd.f32 %v1802, 1.0
          %v1819 = vrcp.pop %v1803
          %v1820 = vmul.f32 1.0, %v1819
          %v1821 = vrcp.pop %v1804
          %v1822 = vmul.f32 1.0, %v1821
          %v1823 = vrcp.pop %v1805
          %v1824 = vmul.f32 1.0, %v1823
          %v1825 = vrcp.pop %v1806
          %v1826 = vmul.f32 1.0, %v1825
          %v1827 = vrcp.pop %v1807
          %v1828 = vmul.f32 1.0, %v1827
          %v1829 = vrcp.pop %v1808
          %v1830 = vmul.f32 1.0, %v1829
          %v1831 = vrcp.pop %v1809
          %v1832 = vmul.f32 1.0, %v1831
          %v1833 = vrcp.pop %v1810
          %v1834 = vmul.f32 1.0, %v1833
          %v1835 = vrcp.pop %v1811
          %v1836 = vmul.f32 1.0, %v1835
          %v1837 = vrcp.pop %v1812
          %v1838 = vmul.f32 1.0, %v1837
          %v1839 = vrcp.pop %v1813
          %v1840 = vmul.f32 1.0, %v1839
          %v1841 = vrcp.pop %v1814
          %v1842 = vmul.f32 1.0, %v1841
          %v1843 = vrcp.pop %v1815
          %v1844 = vmul.f32 1.0, %v1843
          %v1845 = vrcp.pop %v1816
          %v1846 = vmul.f32 1.0, %v1845
          %v1847 = vrcp.pop %v1817
          %v1848 = vmul.f32 1.0, %v1847
          %v1849 = vrcp.pop %v1818
          %v1850 = vmul.f32 1.0, %v1849
          %v1851 = vmul.f32 %v1708, %v1739
          %v1852 = vmul.f32 %v1710, %v1740
          %v1853 = vmul.f32 %v1712, %v1741
          %v1854 = vmul.f32 %v1714, %v1742
          %v1855 = vmul.f32 %v1716, %v1743
          %v1856 = vmul.f32 %v1718, %v1744
          %v1857 = vmul.f32 %v1720, %v1745
          %v1858 = vmul.f32 %v1722, %v1746
          %v1859 = vmul.f32 %v1724, %v1747
          %v1860 = vmul.f32 %v1726, %v1748
          %v1861 = vmul.f32 %v1728, %v1749
          %v1862 = vmul.f32 %v1730, %v1750
          %v1863 = vmul.f32 %v1732, %v1751
          %v1864 = vmul.f32 %v1734, %v1752
          %v1865 = vmul.f32 %v1736, %v1753
          %v1866 = vmul.f32 %v1738, %v1754
          %v1867 = vtanh.pop %v1851
          %v1868 = vtanh.pop %v1852
          %v1869 = vtanh.pop %v1853
          %v1870 = vtanh.pop %v1854
          %v1871 = vtanh.pop %v1855
          %v1872 = vtanh.pop %v1856
          %v1873 = vtanh.pop %v1857
          %v1874 = vtanh.pop %v1858
          %v1875 = vtanh.pop %v1859
          %v1876 = vtanh.pop %v1860
          %v1877 = vtanh.pop %v1861
          %v1878 = vtanh.pop %v1862
          %v1879 = vtanh.pop %v1863
          %v1880 = vtanh.pop %v1864
          %v1881 = vtanh.pop %v1865
          %v1882 = vtanh.pop %v1866
          %v1883 = vmul.f32 %v1820, %v1867
          %v1884 = vmul.f32 %v1822, %v1868
          %v1885 = vmul.f32 %v1824, %v1869
          %v1886 = vmul.f32 %v1826, %v1870
          %v1887 = vmul.f32 %v1828, %v1871
          %v1888 = vmul.f32 %v1830, %v1872
          %v1889 = vmul.f32 %v1832, %v1873
          %v1890 = vmul.f32 %v1834, %v1874
          %v1891 = vmul.f32 %v1836, %v1875
          %v1892 = vmul.f32 %v1838, %v1876
          %v1893 = vmul.f32 %v1840, %v1877
          %v1894 = vmul.f32 %v1842, %v1878
          %v1895 = vmul.f32 %v1844, %v1879
          %v1896 = vmul.f32 %v1846, %v1880
          %v1897 = vmul.f32 %v1848, %v1881
          %v1898 = vmul.f32 %v1850, %v1882
          %v1899 = vpack.c.bf16 %v1885, %v1883
          %v1900 = vpack.c.bf16 %v1886, %v1884
          %v1901 = vpack.c.bf16 %v1889, %v1887
          %v1902 = vpack.c.bf16 %v1890, %v1888
          %v1903 = vpack.c.bf16 %v1893, %v1891
          %v1904 = vpack.c.bf16 %v1894, %v1892
          %v1905 = vpack.c.bf16 %v1897, %v1895
          %v1906 = vpack.c.bf16 %v1898, %v1896
          %v1907 = vld [vmem:[#allocation9] sm:$0xff]
          %v1908 = vld [vmem:[#allocation9 + $0x8] sm:$0xff]
          %v1909 = vld [vmem:[#allocation9 + $0x10] sm:$0xff]
          %v1910 = vld [vmem:[#allocation9 + $0x18] sm:$0xff]
          %v1911 = vld [vmem:[#allocation9 + $0x20] sm:$0xff]
          %v1912 = vld [vmem:[#allocation9 + $0x28] sm:$0xff]
          %v1913 = vld [vmem:[#allocation9 + $0x30] sm:$0xff]
          %v1914 = vld [vmem:[#allocation9 + $0x38] sm:$0xff]
          %v1915 = vld [vmem:[#allocation9 + $0x40] sm:$0xff]
          %v1916 = vld [vmem:[#allocation9 + $0x48] sm:$0xff]
          %v1917 = vld [vmem:[#allocation9 + $0x50] sm:$0xff]
          %v1918 = vld [vmem:[#allocation9 + $0x58] sm:$0xff]
          %v1919 = vld [vmem:[#allocation9 + $0x60] sm:$0xff]
          %v1920 = vld [vmem:[#allocation9 + $0x68] sm:$0xff]
          %v1921 = vld [vmem:[#allocation9 + $0x70] sm:$0xff]
          %v1922 = vld [vmem:[#allocation9 + $0x78] sm:$0xff]
          %v1923 = vld [vmem:[#allocation9 + $0x80] sm:$0xff]
          %v1924 = vld [vmem:[#allocation9 + $0x88] sm:$0xff]
          %v1925 = vld [vmem:[#allocation9 + $0x90] sm:$0xff]
          %v1926 = vld [vmem:[#allocation9 + $0x98] sm:$0xff]
          %v1927 = vld [vmem:[#allocation9 + $0xa0] sm:$0xff]
          %v1928 = vld [vmem:[#allocation9 + $0xa8] sm:$0xff]
          %v1929 = vld [vmem:[#allocation9 + $0xb0] sm:$0xff]
          %v1930 = vld [vmem:[#allocation9 + $0xb8] sm:$0xff]
          %v1931 = vld [vmem:[#allocation9 + $0xc0] sm:$0xff]
          %v1932 = vld [vmem:[#allocation9 + $0xc8] sm:$0xff]
          %v1933 = vld [vmem:[#allocation9 + $0xd0] sm:$0xff]
          %v1934 = vld [vmem:[#allocation9 + $0xd8] sm:$0xff]
          %v1935 = vld [vmem:[#allocation9 + $0xe0] sm:$0xff]
          %v1936 = vld [vmem:[#allocation9 + $0xe8] sm:$0xff]
          %v1937 = vld [vmem:[#allocation9 + $0xf0] sm:$0xff]
          %v1938 = vld [vmem:[#allocation9 + $0xf8] sm:$0xff]
          %v1939 = vld [vmem:[#allocation9 + $0x100] sm:$0xff]
          %v1940 = vld [vmem:[#allocation9 + $0x108] sm:$0xff]
          %v1941 = vld [vmem:[#allocation9 + $0x110] sm:$0xff]
          %v1942 = vld [vmem:[#allocation9 + $0x118] sm:$0xff]
          %v1943 = vld [vmem:[#allocation9 + $0x120] sm:$0xff]
          %v1944 = vld [vmem:[#allocation9 + $0x128] sm:$0xff]
          %v1945 = vld [vmem:[#allocation9 + $0x130] sm:$0xff]
          %v1946 = vld [vmem:[#allocation9 + $0x138] sm:$0xff]
          %v1947 = vld [vmem:[#allocation9 + $0x140] sm:$0xff]
          %v1948 = vld [vmem:[#allocation9 + $0x148] sm:$0xff]
          %v1949 = vld [vmem:[#allocation9 + $0x150] sm:$0xff]
          %v1950 = vld [vmem:[#allocation9 + $0x158] sm:$0xff]
          %v1951 = vld [vmem:[#allocation9 + $0x160] sm:$0xff]
          %v1952 = vld [vmem:[#allocation9 + $0x168] sm:$0xff]
          %v1953 = vld [vmem:[#allocation9 + $0x170] sm:$0xff]
          %v1954 = vld [vmem:[#allocation9 + $0x178] sm:$0xff]
          %v1955 = vld [vmem:[#allocation9 + $0x180] sm:$0xff]
          %v1956 = vld [vmem:[#allocation9 + $0x188] sm:$0xff]
          %v1957 = vld [vmem:[#allocation9 + $0x190] sm:$0xff]
          %v1958 = vld [vmem:[#allocation9 + $0x198] sm:$0xff]
          %v1959 = vld [vmem:[#allocation9 + $0x1a0] sm:$0xff]
          %v1960 = vld [vmem:[#allocation9 + $0x1a8] sm:$0xff]
          %v1961 = vld [vmem:[#allocation9 + $0x1b0] sm:$0xff]
          %v1962 = vld [vmem:[#allocation9 + $0x1b8] sm:$0xff]
          %v1963 = vld [vmem:[#allocation9 + $0x1c0] sm:$0xff]
          %v1964 = vld [vmem:[#allocation9 + $0x1c8] sm:$0xff]
          %v1965 = vld [vmem:[#allocation9 + $0x1d0] sm:$0xff]
          %v1966 = vld [vmem:[#allocation9 + $0x1d8] sm:$0xff]
          %v1967 = vld [vmem:[#allocation9 + $0x1e0] sm:$0xff]
          %v1968 = vld [vmem:[#allocation9 + $0x1e8] sm:$0xff]
          %v1969 = vld [vmem:[#allocation9 + $0x1f0] sm:$0xff]
          %v1970 = vld [vmem:[#allocation9 + $0x1f8] sm:$0xff]
          %v1971 = vld [vmem:[#allocation9 + $0x200] sm:$0xff]
          %v1972 = vld [vmem:[#allocation9 + $0x208] sm:$0xff]
          %v1973 = vld [vmem:[#allocation9 + $0x210] sm:$0xff]
          %v1974 = vld [vmem:[#allocation9 + $0x218] sm:$0xff]
          %v1975 = vld [vmem:[#allocation9 + $0x220] sm:$0xff]
          %v1976 = vld [vmem:[#allocation9 + $0x228] sm:$0xff]
          %v1977 = vld [vmem:[#allocation9 + $0x230] sm:$0xff]
          %v1978 = vld [vmem:[#allocation9 + $0x238] sm:$0xff]
          %v1979 = vld [vmem:[#allocation9 + $0x240] sm:$0xff]
          %v1980 = vld [vmem:[#allocation9 + $0x248] sm:$0xff]
          %v1981 = vld [vmem:[#allocation9 + $0x250] sm:$0xff]
          %v1982 = vld [vmem:[#allocation9 + $0x258] sm:$0xff]
          %v1983 = vld [vmem:[#allocation9 + $0x260] sm:$0xff]
          %v1984 = vld [vmem:[#allocation9 + $0x268] sm:$0xff]
          %v1985 = vld [vmem:[#allocation9 + $0x270] sm:$0xff]
          %v1986 = vld [vmem:[#allocation9 + $0x278] sm:$0xff]
          %v1987 = vld [vmem:[#allocation9 + $0x280] sm:$0xff]
          %v1988 = vld [vmem:[#allocation9 + $0x288] sm:$0xff]
          %v1989 = vld [vmem:[#allocation9 + $0x290] sm:$0xff]
          %v1990 = vld [vmem:[#allocation9 + $0x298] sm:$0xff]
          %v1991 = vld [vmem:[#allocation9 + $0x2a0] sm:$0xff]
          %v1992 = vld [vmem:[#allocation9 + $0x2a8] sm:$0xff]
          %v1993 = vld [vmem:[#allocation9 + $0x2b0] sm:$0xff]
          %v1994 = vld [vmem:[#allocation9 + $0x2b8] sm:$0xff]
          %v1995 = vld [vmem:[#allocation9 + $0x2c0] sm:$0xff]
          %v1996 = vld [vmem:[#allocation9 + $0x2c8] sm:$0xff]
          %v1997 = vld [vmem:[#allocation9 + $0x2d0] sm:$0xff]
          %v1998 = vld [vmem:[#allocation9 + $0x2d8] sm:$0xff]
          %v1999 = vld [vmem:[#allocation9 + $0x2e0] sm:$0xff]
          %v2000 = vld [vmem:[#allocation9 + $0x2e8] sm:$0xff]
          %v2001 = vld [vmem:[#allocation9 + $0x2f0] sm:$0xff]
          %v2002 = vld [vmem:[#allocation9 + $0x2f8] sm:$0xff]
          %v2003 = vld [vmem:[%s6] sm:$0x3f]
          %v2005 = vlaneseq
          %v2006 = vshrl.u32 %v2005, 7
          %v2007 = vsub.s32 0, %v2006
          %v2008 = vrot.slane %v2003, %v2007
          %v2009 = vlaneseq
          %v2010 = vshrl.u32 %v2009, 7
          %v2011 = vsub.s32 1, %v2010
          %v2012 = vrot.slane %v2003, %v2011
          %v2013 = vlaneseq
          %v2014 = vshrl.u32 %v2013, 7
          %v2015 = vsub.s32 2, %v2014
          %v2016 = vrot.slane %v2003, %v2015
          %v2017 = vlaneseq
          %v2018 = vshrl.u32 %v2017, 7
          %v2019 = vsub.s32 3, %v2018
          %v2020 = vrot.slane %v2003, %v2019
          %v2021 = vlaneseq
          %v2022 = vshrl.u32 %v2021, 7
          %v2023 = vsub.s32 4, %v2022
          %v2024 = vrot.slane %v2003, %v2023
          %v2025 = vlaneseq
          %v2026 = vshrl.u32 %v2025, 7
          %v2027 = vsub.s32 5, %v2026
          %v2028 = vrot.slane %v2003, %v2027
          %v2131 = vunpack.c.l.b16 %v1907
          %v2132 = vunpack.c.h.b16 %v1907
          %v2133 = vunpack.c.l.b16 %v1908
          %v2134 = vunpack.c.h.b16 %v1908
          %v2135 = vunpack.c.l.b16 %v1909
          %v2136 = vunpack.c.h.b16 %v1909
          %v2137 = vunpack.c.l.b16 %v1910
          %v2138 = vunpack.c.h.b16 %v1910
          %v2139 = vunpack.c.l.b16 %v1911
          %v2140 = vunpack.c.h.b16 %v1911
          %v2141 = vunpack.c.l.b16 %v1912
          %v2142 = vunpack.c.h.b16 %v1912
          %v2143 = vunpack.c.l.b16 %v1913
          %v2144 = vunpack.c.h.b16 %v1913
          %v2145 = vunpack.c.l.b16 %v1914
          %v2146 = vunpack.c.h.b16 %v1914
          %v2147 = vunpack.c.l.b16 %v1915
          %v2148 = vunpack.c.h.b16 %v1915
          %v2149 = vunpack.c.l.b16 %v1916
          %v2150 = vunpack.c.h.b16 %v1916
          %v2151 = vunpack.c.l.b16 %v1917
          %v2152 = vunpack.c.h.b16 %v1917
          %v2153 = vunpack.c.l.b16 %v1918
          %v2154 = vunpack.c.h.b16 %v1918
          %v2155 = vunpack.c.l.b16 %v1919
          %v2156 = vunpack.c.h.b16 %v1919
          %v2157 = vunpack.c.l.b16 %v1920
          %v2158 = vunpack.c.h.b16 %v1920
          %v2159 = vunpack.c.l.b16 %v1921
          %v2160 = vunpack.c.h.b16 %v1921
          %v2161 = vunpack.c.l.b16 %v1922
          %v2162 = vunpack.c.h.b16 %v1922
          %v2163 = vunpack.c.l.b16 %v1923
          %v2164 = vunpack.c.h.b16 %v1923
          %v2165 = vunpack.c.l.b16 %v1924
          %v2166 = vunpack.c.h.b16 %v1924
          %v2167 = vunpack.c.l.b16 %v1925
          %v2168 = vunpack.c.h.b16 %v1925
          %v2169 = vunpack.c.l.b16 %v1926
          %v2170 = vunpack.c.h.b16 %v1926
          %v2171 = vunpack.c.l.b16 %v1927
          %v2172 = vunpack.c.h.b16 %v1927
          %v2173 = vunpack.c.l.b16 %v1928
          %v2174 = vunpack.c.h.b16 %v1928
          %v2175 = vunpack.c.l.b16 %v1929
          %v2176 = vunpack.c.h.b16 %v1929
          %v2177 = vunpack.c.l.b16 %v1930
          %v2178 = vunpack.c.h.b16 %v1930
          %v2179 = vunpack.c.l.b16 %v1931
          %v2180 = vunpack.c.h.b16 %v1931
          %v2181 = vunpack.c.l.b16 %v1932
          %v2182 = vunpack.c.h.b16 %v1932
          %v2183 = vunpack.c.l.b16 %v1933
          %v2184 = vunpack.c.h.b16 %v1933
          %v2185 = vunpack.c.l.b16 %v1934
          %v2186 = vunpack.c.h.b16 %v1934
          %v2187 = vunpack.c.l.b16 %v1935
          %v2188 = vunpack.c.h.b16 %v1935
          %v2189 = vunpack.c.l.b16 %v1936
          %v2190 = vunpack.c.h.b16 %v1936
          %v2191 = vunpack.c.l.b16 %v1937
          %v2192 = vunpack.c.h.b16 %v1937
          %v2193 = vunpack.c.l.b16 %v1938
          %v2194 = vunpack.c.h.b16 %v1938
          %v2195 = vunpack.c.l.b16 %v1939
          %v2196 = vunpack.c.h.b16 %v1939
          %v2197 = vunpack.c.l.b16 %v1940
          %v2198 = vunpack.c.h.b16 %v1940
          %v2199 = vunpack.c.l.b16 %v1941
          %v2200 = vunpack.c.h.b16 %v1941
          %v2201 = vunpack.c.l.b16 %v1942
          %v2202 = vunpack.c.h.b16 %v1942
          %v2203 = vunpack.c.l.b16 %v1943
          %v2204 = vunpack.c.h.b16 %v1943
          %v2205 = vunpack.c.l.b16 %v1944
          %v2206 = vunpack.c.h.b16 %v1944
          %v2207 = vunpack.c.l.b16 %v1945
          %v2208 = vunpack.c.h.b16 %v1945
          %v2209 = vunpack.c.l.b16 %v1946
          %v2210 = vunpack.c.h.b16 %v1946
          %v2211 = vunpack.c.l.b16 %v1947
          %v2212 = vunpack.c.h.b16 %v1947
          %v2213 = vunpack.c.l.b16 %v1948
          %v2214 = vunpack.c.h.b16 %v1948
          %v2215 = vunpack.c.l.b16 %v1949
          %v2216 = vunpack.c.h.b16 %v1949
          %v2217 = vunpack.c.l.b16 %v1950
          %v2218 = vunpack.c.h.b16 %v1950
          %v2219 = vunpack.c.l.b16 %v1951
          %v2220 = vunpack.c.h.b16 %v1951
          %v2221 = vunpack.c.l.b16 %v1952
          %v2222 = vunpack.c.h.b16 %v1952
          %v2223 = vunpack.c.l.b16 %v1953
          %v2224 = vunpack.c.h.b16 %v1953
          %v2225 = vunpack.c.l.b16 %v1954
          %v2226 = vunpack.c.h.b16 %v1954
          %v2227 = vunpack.c.l.b16 %v1955
          %v2228 = vunpack.c.h.b16 %v1955
          %v2229 = vunpack.c.l.b16 %v1956
          %v2230 = vunpack.c.h.b16 %v1956
          %v2231 = vunpack.c.l.b16 %v1957
          %v2232 = vunpack.c.h.b16 %v1957
          %v2233 = vunpack.c.l.b16 %v1958
          %v2234 = vunpack.c.h.b16 %v1958
          %v2235 = vunpack.c.l.b16 %v1959
          %v2236 = vunpack.c.h.b16 %v1959
          %v2237 = vunpack.c.l.b16 %v1960
          %v2238 = vunpack.c.h.b16 %v1960
          %v2239 = vunpack.c.l.b16 %v1961
          %v2240 = vunpack.c.h.b16 %v1961
          %v2241 = vunpack.c.l.b16 %v1962
          %v2242 = vunpack.c.h.b16 %v1962
          %v2243 = vunpack.c.l.b16 %v1963
          %v2244 = vunpack.c.h.b16 %v1963
          %v2245 = vunpack.c.l.b16 %v1964
          %v2246 = vunpack.c.h.b16 %v1964
          %v2247 = vunpack.c.l.b16 %v1965
          %v2248 = vunpack.c.h.b16 %v1965
          %v2249 = vunpack.c.l.b16 %v1966
          %v2250 = vunpack.c.h.b16 %v1966
          %v2251 = vunpack.c.l.b16 %v1967
          %v2252 = vunpack.c.h.b16 %v1967
          %v2253 = vunpack.c.l.b16 %v1968
          %v2254 = vunpack.c.h.b16 %v1968
          %v2255 = vunpack.c.l.b16 %v1969
          %v2256 = vunpack.c.h.b16 %v1969
          %v2257 = vunpack.c.l.b16 %v1970
          %v2258 = vunpack.c.h.b16 %v1970
          %v2259 = vunpack.c.l.b16 %v1971
          %v2260 = vunpack.c.h.b16 %v1971
          %v2261 = vunpack.c.l.b16 %v1972
          %v2262 = vunpack.c.h.b16 %v1972
          %v2263 = vunpack.c.l.b16 %v1973
          %v2264 = vunpack.c.h.b16 %v1973
          %v2265 = vunpack.c.l.b16 %v1974
          %v2266 = vunpack.c.h.b16 %v1974
          %v2267 = vunpack.c.l.b16 %v1975
          %v2268 = vunpack.c.h.b16 %v1975
          %v2269 = vunpack.c.l.b16 %v1976
          %v2270 = vunpack.c.h.b16 %v1976
          %v2271 = vunpack.c.l.b16 %v1977
          %v2272 = vunpack.c.h.b16 %v1977
          %v2273 = vunpack.c.l.b16 %v1978
          %v2274 = vunpack.c.h.b16 %v1978
          %v2275 = vunpack.c.l.b16 %v1979
          %v2276 = vunpack.c.h.b16 %v1979
          %v2277 = vunpack.c.l.b16 %v1980
          %v2278 = vunpack.c.h.b16 %v1980
          %v2279 = vunpack.c.l.b16 %v1981
          %v2280 = vunpack.c.h.b16 %v1981
          %v2281 = vunpack.c.l.b16 %v1982
          %v2282 = vunpack.c.h.b16 %v1982
          %v2283 = vunpack.c.l.b16 %v1983
          %v2284 = vunpack.c.h.b16 %v1983
          %v2285 = vunpack.c.l.b16 %v1984
          %v2286 = vunpack.c.h.b16 %v1984
          %v2287 = vunpack.c.l.b16 %v1985
          %v2288 = vunpack.c.h.b16 %v1985
          %v2289 = vunpack.c.l.b16 %v1986
          %v2290 = vunpack.c.h.b16 %v1986
          %v2291 = vunpack.c.l.b16 %v1987
          %v2292 = vunpack.c.h.b16 %v1987
          %v2293 = vunpack.c.l.b16 %v1988
          %v2294 = vunpack.c.h.b16 %v1988
          %v2295 = vunpack.c.l.b16 %v1989
          %v2296 = vunpack.c.h.b16 %v1989
          %v2297 = vunpack.c.l.b16 %v1990
          %v2298 = vunpack.c.h.b16 %v1990
          %v2299 = vunpack.c.l.b16 %v1991
          %v2300 = vunpack.c.h.b16 %v1991
          %v2301 = vunpack.c.l.b16 %v1992
          %v2302 = vunpack.c.h.b16 %v1992
          %v2303 = vunpack.c.l.b16 %v1993
          %v2304 = vunpack.c.h.b16 %v1993
          %v2305 = vunpack.c.l.b16 %v1994
          %v2306 = vunpack.c.h.b16 %v1994
          %v2307 = vunpack.c.l.b16 %v1995
          %v2308 = vunpack.c.h.b16 %v1995
          %v2309 = vunpack.c.l.b16 %v1996
          %v2310 = vunpack.c.h.b16 %v1996
          %v2311 = vunpack.c.l.b16 %v1997
          %v2312 = vunpack.c.h.b16 %v1997
          %v2313 = vunpack.c.l.b16 %v1998
          %v2314 = vunpack.c.h.b16 %v1998
          %v2315 = vunpack.c.l.b16 %v1999
          %v2316 = vunpack.c.h.b16 %v1999
          %v2317 = vunpack.c.l.b16 %v2000
          %v2318 = vunpack.c.h.b16 %v2000
          %v2319 = vunpack.c.l.b16 %v2001
          %v2320 = vunpack.c.h.b16 %v2001
          %v2321 = vunpack.c.l.b16 %v2002
          %v2322 = vunpack.c.h.b16 %v2002
          %v2323 = vpack.c.b16 %v2137, %v2131
          %v2324 = vpack.c.b16 %v2138, %v2132
          %v2325 = vpack.c.b16 %v2139, %v2133
          %v2326 = vpack.c.b16 %v2140, %v2134
          %v2327 = vpack.c.b16 %v2141, %v2135
          %v2328 = vpack.c.b16 %v2142, %v2136
          %v2329 = vpack.c.b16 %v2149, %v2143
          %v2330 = vpack.c.b16 %v2150, %v2144
          %v2331 = vpack.c.b16 %v2151, %v2145
          %v2332 = vpack.c.b16 %v2152, %v2146
          %v2333 = vpack.c.b16 %v2153, %v2147
          %v2334 = vpack.c.b16 %v2154, %v2148
          %v2335 = vpack.c.b16 %v2161, %v2155
          %v2336 = vpack.c.b16 %v2162, %v2156
          %v2337 = vpack.c.b16 %v2163, %v2157
          %v2338 = vpack.c.b16 %v2164, %v2158
          %v2339 = vpack.c.b16 %v2165, %v2159
          %v2340 = vpack.c.b16 %v2166, %v2160
          %v2341 = vpack.c.b16 %v2173, %v2167
          %v2342 = vpack.c.b16 %v2174, %v2168
          %v2343 = vpack.c.b16 %v2175, %v2169
          %v2344 = vpack.c.b16 %v2176, %v2170
          %v2345 = vpack.c.b16 %v2177, %v2171
          %v2346 = vpack.c.b16 %v2178, %v2172
          %v2347 = vpack.c.b16 %v2185, %v2179
          %v2348 = vpack.c.b16 %v2186, %v2180
          %v2349 = vpack.c.b16 %v2187, %v2181
          %v2350 = vpack.c.b16 %v2188, %v2182
          %v2351 = vpack.c.b16 %v2189, %v2183
          %v2352 = vpack.c.b16 %v2190, %v2184
          %v2353 = vpack.c.b16 %v2197, %v2191
          %v2354 = vpack.c.b16 %v2198, %v2192
          %v2355 = vpack.c.b16 %v2199, %v2193
          %v2356 = vpack.c.b16 %v2200, %v2194
          %v2357 = vpack.c.b16 %v2201, %v2195
          %v2358 = vpack.c.b16 %v2202, %v2196
          %v2359 = vpack.c.b16 %v2209, %v2203
          %v2360 = vpack.c.b16 %v2210, %v2204
          %v2361 = vpack.c.b16 %v2211, %v2205
          %v2362 = vpack.c.b16 %v2212, %v2206
          %v2363 = vpack.c.b16 %v2213, %v2207
          %v2364 = vpack.c.b16 %v2214, %v2208
          %v2365 = vpack.c.b16 %v2221, %v2215
          %v2366 = vpack.c.b16 %v2222, %v2216
          %v2367 = vpack.c.b16 %v2223, %v2217
          %v2368 = vpack.c.b16 %v2224, %v2218
          %v2369 = vpack.c.b16 %v2225, %v2219
          %v2370 = vpack.c.b16 %v2226, %v2220
          %v2371 = vpack.c.b16 %v2233, %v2227
          %v2372 = vpack.c.b16 %v2234, %v2228
          %v2373 = vpack.c.b16 %v2235, %v2229
          %v2374 = vpack.c.b16 %v2236, %v2230
          %v2375 = vpack.c.b16 %v2237, %v2231
          %v2376 = vpack.c.b16 %v2238, %v2232
          %v2377 = vpack.c.b16 %v2245, %v2239
          %v2378 = vpack.c.b16 %v2246, %v2240
          %v2379 = vpack.c.b16 %v2247, %v2241
          %v2380 = vpack.c.b16 %v2248, %v2242
          %v2381 = vpack.c.b16 %v2249, %v2243
          %v2382 = vpack.c.b16 %v2250, %v2244
          %v2383 = vpack.c.b16 %v2257, %v2251
          %v2384 = vpack.c.b16 %v2258, %v2252
          %v2385 = vpack.c.b16 %v2259, %v2253
          %v2386 = vpack.c.b16 %v2260, %v2254
          %v2387 = vpack.c.b16 %v2261, %v2255
          %v2388 = vpack.c.b16 %v2262, %v2256
          %v2389 = vpack.c.b16 %v2269, %v2263
          %v2390 = vpack.c.b16 %v2270, %v2264
          %v2391 = vpack.c.b16 %v2271, %v2265
          %v2392 = vpack.c.b16 %v2272, %v2266
          %v2393 = vpack.c.b16 %v2273, %v2267
          %v2394 = vpack.c.b16 %v2274, %v2268
          %v2395 = vpack.c.b16 %v2281, %v2275
          %v2396 = vpack.c.b16 %v2282, %v2276
          %v2397 = vpack.c.b16 %v2283, %v2277
          %v2398 = vpack.c.b16 %v2284, %v2278
          %v2399 = vpack.c.b16 %v2285, %v2279
          %v2400 = vpack.c.b16 %v2286, %v2280
          %v2401 = vpack.c.b16 %v2293, %v2287
          %v2402 = vpack.c.b16 %v2294, %v2288
          %v2403 = vpack.c.b16 %v2295, %v2289
          %v2404 = vpack.c.b16 %v2296, %v2290
          %v2405 = vpack.c.b16 %v2297, %v2291
          %v2406 = vpack.c.b16 %v2298, %v2292
          %v2407 = vpack.c.b16 %v2305, %v2299
          %v2408 = vpack.c.b16 %v2306, %v2300
          %v2409 = vpack.c.b16 %v2307, %v2301
          %v2410 = vpack.c.b16 %v2308, %v2302
          %v2411 = vpack.c.b16 %v2309, %v2303
          %v2412 = vpack.c.b16 %v2310, %v2304
          %v2413 = vpack.c.b16 %v2317, %v2311
          %v2414 = vpack.c.b16 %v2318, %v2312
          %v2415 = vpack.c.b16 %v2319, %v2313
          %v2416 = vpack.c.b16 %v2320, %v2314
          %v2417 = vpack.c.b16 %v2321, %v2315
          %v2418 = vpack.c.b16 %v2322, %v2316
          %2515 = vmatprep.subr.bf16.mxu0 %v2324
          %2516 = vmatpush1.bf16.msra.mxu0 %v2323
          %2517 = vmatprep.subr.bf16.mxu0 %v2330
          %2518 = vmatpush1.bf16.msra.mxu0 %v2329
          %2519 = vmatprep.subr.bf16.mxu0 %v2336
          %2520 = vmatpush1.bf16.msra.mxu0 %v2335
          %2521 = vmatprep.subr.bf16.mxu0 %v2342
          %2522 = vmatpush1.bf16.msra.mxu0 %v2341
          %2523 = vmatprep.subr.bf16.mxu0 %v2348
          %2524 = vmatpush1.bf16.msra.mxu0 %v2347
          %2525 = vmatprep.subr.bf16.mxu0 %v2354
          %2526 = vmatpush1.bf16.msra.mxu0 %v2353
          %2527 = vmatprep.subr.bf16.mxu0 %v2360
          %2528 = vmatpush1.bf16.msra.mxu0 %v2359
          %2529 = vmatprep.subr.bf16.mxu0 %v2366
          %2530 = vmatpush1.bf16.msra.mxu0 %v2365
          %2531 = vmatprep.subr.bf16.mxu0 %v2372
          %2532 = vmatpush1.bf16.msra.mxu0 %v2371
          %2533 = vmatprep.subr.bf16.mxu0 %v2378
          %2534 = vmatpush1.bf16.msra.mxu0 %v2377
          %2535 = vmatprep.subr.bf16.mxu0 %v2384
          %2536 = vmatpush1.bf16.msra.mxu0 %v2383
          %2537 = vmatprep.subr.bf16.mxu0 %v2390
          %2538 = vmatpush1.bf16.msra.mxu0 %v2389
          %2539 = vmatprep.subr.bf16.mxu0 %v2396
          %2540 = vmatpush1.bf16.msra.mxu0 %v2395
          %2541 = vmatprep.subr.bf16.mxu0 %v2402
          %2542 = vmatpush1.bf16.msra.mxu0 %v2401
          %2543 = vmatprep.subr.bf16.mxu0 %v2408
          %2544 = vmatpush1.bf16.msra.mxu0 %v2407
          %2545 = vmatprep.subr.bf16.mxu0 %v2414
          %2546 = vmatpush1.bf16.msra.mxu0 %v2413
          %2547 = vmatprep.mubr.bf16.mxu0 %v1900
          %2548 = vmatmul.mubr.bf16.gmra.mrb[0].mxu0 %v1899
          %v2549 = vpop.f32.mrb[0].mxu0
          %v2550 = vadd.f32 %v2008, %v2549
          %v2551 = vpop.f32.mrb[0].mxu0
          %v2552 = vadd.f32 %v2012, %v2551
          %v2553 = vpop.f32.mrb[0].mxu0
          %v2554 = vadd.f32 %v2008, %v2553
          %v2555 = vpop.f32.mrb[0].mxu0
          %v2556 = vadd.f32 %v2012, %v2555
          %2557 = vmatprep.mubr.bf16.mxu0 %v1902
          %2558 = vmatmul.mubr.bf16.gmra.mrb[0].mxu0 %v1901
          %v2559 = vpop.f32.mrb[0].mxu0
          %v2560 = vadd.f32 %v2008, %v2559
          %v2561 = vpop.f32.mrb[0].mxu0
          %v2562 = vadd.f32 %v2012, %v2561
          %v2563 = vpop.f32.mrb[0].mxu0
          %v2564 = vadd.f32 %v2008, %v2563
          %v2565 = vpop.f32.mrb[0].mxu0
          %v2566 = vadd.f32 %v2012, %v2565
          %2567 = vmatprep.mubr.bf16.mxu0 %v1904
          %2568 = vmatmul.mubr.bf16.gmra.mrb[0].mxu0 %v1903
          %v2569 = vpop.f32.mrb[0].mxu0
          %v2570 = vadd.f32 %v2008, %v2569
          %v2571 = vpop.f32.mrb[0].mxu0
          %v2572 = vadd.f32 %v2012, %v2571
          %v2573 = vpop.f32.mrb[0].mxu0
          %v2574 = vadd.f32 %v2008, %v2573
          %v2575 = vpop.f32.mrb[0].mxu0
          %v2576 = vadd.f32 %v2012, %v2575
          %2577 = vmatprep.mubr.bf16.mxu0 %v1906
          %2578 = vmatmul.mubr.bf16.gmra.mrb[0].mxu0 %v1905
          %v2579 = vpop.f32.mrb[0].mxu0
          %v2580 = vadd.f32 %v2008, %v2579
          %v2581 = vpop.f32.mrb[0].mxu0
          %v2582 = vadd.f32 %v2012, %v2581
          %v2583 = vpop.f32.mrb[0].mxu0
          %v2584 = vadd.f32 %v2008, %v2583
          %v2585 = vpop.f32.mrb[0].mxu0
          %v2586 = vadd.f32 %v2012, %v2585
          %2587 = vdwg.mxu0
          %2588 = vmatprep.subr.bf16.mxu0 %v2326
          %2589 = vmatpush1.bf16.msra.mxu0 %v2325
          %2590 = vmatprep.subr.bf16.mxu0 %v2332
          %2591 = vmatpush1.bf16.msra.mxu0 %v2331
          %2592 = vmatprep.subr.bf16.mxu0 %v2338
          %2593 = vmatpush1.bf16.msra.mxu0 %v2337
          %2594 = vmatprep.subr.bf16.mxu0 %v2344
          %2595 = vmatpush1.bf16.msra.mxu0 %v2343
          %2596 = vmatprep.subr.bf16.mxu0 %v2350
          %2597 = vmatpush1.bf16.msra.mxu0 %v2349
          %2598 = vmatprep.subr.bf16.mxu0 %v2356
          %2599 = vmatpush1.bf16.msra.mxu0 %v2355
          %2600 = vmatprep.subr.bf16.mxu0 %v2362
          %2601 = vmatpush1.bf16.msra.mxu0 %v2361
          %2602 = vmatprep.subr.bf16.mxu0 %v2368
          %2603 = vmatpush1.bf16.msra.mxu0 %v2367
          %2604 = vmatprep.subr.bf16.mxu0 %v2374
          %2605 = vmatpush1.bf16.msra.mxu0 %v2373
          %2606 = vmatprep.subr.bf16.mxu0 %v2380
          %2607 = vmatpush1.bf16.msra.mxu0 %v2379
          %2608 = vmatprep.subr.bf16.mxu0 %v2386
          %2609 = vmatpush1.bf16.msra.mxu0 %v2385
          %2610 = vmatprep.subr.bf16.mxu0 %v2392
          %2611 = vmatpush1.bf16.msra.mxu0 %v2391
          %2612 = vmatprep.subr.bf16.mxu0 %v2398
          %2613 = vmatpush1.bf16.msra.mxu0 %v2397
          %2614 = vmatprep.subr.bf16.mxu0 %v2404
          %2615 = vmatpush1.bf16.msra.mxu0 %v2403
          %2616 = vmatprep.subr.bf16.mxu0 %v2410
          %2617 = vmatpush1.bf16.msra.mxu0 %v2409
          %2618 = vmatprep.subr.bf16.mxu0 %v2416
          %2619 = vmatpush1.bf16.msra.mxu0 %v2415
          %2620 = vmatprep.mubr.bf16.mxu0 %v1900
          %2621 = vmatmul.mubr.bf16.gmra.mrb[0].mxu0 %v1899
          %v2622 = vpop.f32.mrb[0].mxu0
          %v2623 = vadd.f32 %v2016, %v2622
          %v2624 = vpop.f32.mrb[0].mxu0
          %v2625 = vadd.f32 %v2020, %v2624
          %v2626 = vpop.f32.mrb[0].mxu0
          %v2627 = vadd.f32 %v2016, %v2626
          %v2628 = vpop.f32.mrb[0].mxu0
          %v2629 = vadd.f32 %v2020, %v2628
          %2630 = vmatprep.mubr.bf16.mxu0 %v1902
          %2631 = vmatmul.mubr.bf16.gmra.mrb[0].mxu0 %v1901
          %v2632 = vpop.f32.mrb[0].mxu0
          %v2633 = vadd.f32 %v2016, %v2632
          %v2634 = vpop.f32.mrb[0].mxu0
          %v2635 = vadd.f32 %v2020, %v2634
          %v2636 = vpop.f32.mrb[0].mxu0
          %v2637 = vadd.f32 %v2016, %v2636
          %v2638 = vpop.f32.mrb[0].mxu0
          %v2639 = vadd.f32 %v2020, %v2638
          %2640 = vmatprep.mubr.bf16.mxu0 %v1904
          %2641 = vmatmul.mubr.bf16.gmra.mrb[0].mxu0 %v1903
          %v2642 = vpop.f32.mrb[0].mxu0
          %v2643 = vadd.f32 %v2016, %v2642
          %v2644 = vpop.f32.mrb[0].mxu0
          %v2645 = vadd.f32 %v2020, %v2644
          %v2646 = vpop.f32.mrb[0].mxu0
          %v2647 = vadd.f32 %v2016, %v2646
          %v2648 = vpop.f32.mrb[0].mxu0
          %v2649 = vadd.f32 %v2020, %v2648
          %2650 = vmatprep.mubr.bf16.mxu0 %v1906
          %2651 = vmatmul.mubr.bf16.gmra.mrb[0].mxu0 %v1905
          %v2652 = vpop.f32.mrb[0].mxu0
          %v2653 = vadd.f32 %v2016, %v2652
          %v2654 = vpop.f32.mrb[0].mxu0
          %v2655 = vadd.f32 %v2020, %v2654
          %v2656 = vpop.f32.mrb[0].mxu0
          %v2657 = vadd.f32 %v2016, %v2656
          %v2658 = vpop.f32.mrb[0].mxu0
          %v2659 = vadd.f32 %v2020, %v2658
          %2660 = vdwg.mxu0
          %2661 = vmatprep.subr.bf16.mxu0 %v2328
          %2662 = vmatpush1.bf16.msra.mxu0 %v2327
          %2663 = vmatprep.subr.bf16.mxu0 %v2334
          %2664 = vmatpush1.bf16.msra.mxu0 %v2333
          %2665 = vmatprep.subr.bf16.mxu0 %v2340
          %2666 = vmatpush1.bf16.msra.mxu0 %v2339
          %2667 = vmatprep.subr.bf16.mxu0 %v2346
          %2668 = vmatpush1.bf16.msra.mxu0 %v2345
          %2669 = vmatprep.subr.bf16.mxu0 %v2352
          %2670 = vmatpush1.bf16.msra.mxu0 %v2351
          %2671 = vmatprep.subr.bf16.mxu0 %v2358
          %2672 = vmatpush1.bf16.msra.mxu0 %v2357
          %2673 = vmatprep.subr.bf16.mxu0 %v2364
          %2674 = vmatpush1.bf16.msra.mxu0 %v2363
          %2675 = vmatprep.subr.bf16.mxu0 %v2370
          %2676 = vmatpush1.bf16.msra.mxu0 %v2369
          %2677 = vmatprep.subr.bf16.mxu0 %v2376
          %2678 = vmatpush1.bf16.msra.mxu0 %v2375
          %2679 = vmatprep.subr.bf16.mxu0 %v2382
          %2680 = vmatpush1.bf16.msra.mxu0 %v2381
          %2681 = vmatprep.subr.bf16.mxu0 %v2388
          %2682 = vmatpush1.bf16.msra.mxu0 %v2387
          %2683 = vmatprep.subr.bf16.mxu0 %v2394
          %2684 = vmatpush1.bf16.msra.mxu0 %v2393
          %2685 = vmatprep.subr.bf16.mxu0 %v2400
          %2686 = vmatpush1.bf16.msra.mxu0 %v2399
          %2687 = vmatprep.subr.bf16.mxu0 %v2406
          %2688 = vmatpush1.bf16.msra.mxu0 %v2405
          %2689 = vmatprep.subr.bf16.mxu0 %v2412
          %2690 = vmatpush1.bf16.msra.mxu0 %v2411
          %2691 = vmatprep.subr.bf16.mxu0 %v2418
          %2692 = vmatpush1.bf16.msra.mxu0 %v2417
          %2693 = vmatprep.mubr.bf16.mxu0 %v1900
          %2694 = vmatmul.mubr.bf16.gmra.mrb[0].mxu0 %v1899
          %v2695 = vpop.f32.mrb[0].mxu0
          %v2696 = vadd.f32 %v2024, %v2695
          %v2697 = vpop.f32.mrb[0].mxu0
          %v2698 = vadd.f32 %v2028, %v2697
          %v2699 = vpop.f32.mrb[0].mxu0
          %v2700 = vadd.f32 %v2024, %v2699
          %v2701 = vpop.f32.mrb[0].mxu0
          %v2702 = vadd.f32 %v2028, %v2701
          %2703 = vmatprep.mubr.bf16.mxu0 %v1902
          %2704 = vmatmul.mubr.bf16.gmra.mrb[0].mxu0 %v1901
          %v2705 = vpop.f32.mrb[0].mxu0
          %v2706 = vadd.f32 %v2024, %v2705
          %v2707 = vpop.f32.mrb[0].mxu0
          %v2708 = vadd.f32 %v2028, %v2707
          %v2709 = vpop.f32.mrb[0].mxu0
          %v2710 = vadd.f32 %v2024, %v2709
          %v2711 = vpop.f32.mrb[0].mxu0
          %v2712 = vadd.f32 %v2028, %v2711
          %2713 = vmatprep.mubr.bf16.mxu0 %v1904
          %2714 = vmatmul.mubr.bf16.gmra.mrb[0].mxu0 %v1903
          %v2715 = vpop.f32.mrb[0].mxu0
          %v2716 = vadd.f32 %v2024, %v2715
          %v2717 = vpop.f32.mrb[0].mxu0
          %v2718 = vadd.f32 %v2028, %v2717
          %v2719 = vpop.f32.mrb[0].mxu0
          %v2720 = vadd.f32 %v2024, %v2719
          %v2721 = vpop.f32.mrb[0].mxu0
          %v2722 = vadd.f32 %v2028, %v2721
          %2723 = vmatprep.mubr.bf16.mxu0 %v1906
          %2724 = vmatmul.mubr.bf16.gmra.mrb[0].mxu0 %v1905
          %v2725 = vpop.f32.mrb[0].mxu0
          %v2726 = vadd.f32 %v2024, %v2725
          %v2727 = vpop.f32.mrb[0].mxu0
          %v2728 = vadd.f32 %v2028, %v2727
          %v2729 = vpop.f32.mrb[0].mxu0
          %v2730 = vadd.f32 %v2024, %v2729
          %v2731 = vpop.f32.mrb[0].mxu0
          %v2732 = vadd.f32 %v2028, %v2731
          %2733 = vdwg.mxu0
          %v2734 = vxor.u32 %v2550, 2147483648
          %v2735 = vxor.u32 %v2552, 2147483648
          %v2736 = vxor.u32 %v2554, 2147483648
          %v2737 = vxor.u32 %v2556, 2147483648
          %v2738 = vxor.u32 %v2560, 2147483648
          %v2739 = vxor.u32 %v2562, 2147483648
          %v2740 = vxor.u32 %v2564, 2147483648
          %v2741 = vxor.u32 %v2566, 2147483648
          %v2742 = vxor.u32 %v2570, 2147483648
          %v2743 = vxor.u32 %v2572, 2147483648
          %v2744 = vxor.u32 %v2574, 2147483648
          %v2745 = vxor.u32 %v2576, 2147483648
          %v2746 = vxor.u32 %v2580, 2147483648
          %v2747 = vxor.u32 %v2582, 2147483648
          %v2748 = vxor.u32 %v2584, 2147483648
          %v2749 = vxor.u32 %v2586, 2147483648
          %v2750 = vmul.f32 %v2734, 1.442695
          %v2751 = vpow.pop %v2750
          %v2752 = vmul.f32 %v2735, 1.442695
          %v2753 = vpow.pop %v2752
          %v2754 = vmul.f32 %v2736, 1.442695
          %v2755 = vpow.pop %v2754
          %v2756 = vmul.f32 %v2737, 1.442695
          %v2757 = vpow.pop %v2756
          %v2758 = vmul.f32 %v2738, 1.442695
          %v2759 = vpow.pop %v2758
          %v2760 = vmul.f32 %v2739, 1.442695
          %v2761 = vpow.pop %v2760
          %v2762 = vmul.f32 %v2740, 1.442695
          %v2763 = vpow.pop %v2762
          %v2764 = vmul.f32 %v2741, 1.442695
          %v2765 = vpow.pop %v2764
          %v2766 = vmul.f32 %v2742, 1.442695
          %v2767 = vpow.pop %v2766
          %v2768 = vmul.f32 %v2743, 1.442695
          %v2769 = vpow.pop %v2768
          %v2770 = vmul.f32 %v2744, 1.442695
          %v2771 = vpow.pop %v2770
          %v2772 = vmul.f32 %v2745, 1.442695
          %v2773 = vpow.pop %v2772
          %v2774 = vmul.f32 %v2746, 1.442695
          %v2775 = vpow.pop %v2774
          %v2776 = vmul.f32 %v2747, 1.442695
          %v2777 = vpow.pop %v2776
          %v2778 = vmul.f32 %v2748, 1.442695
          %v2779 = vpow.pop %v2778
          %v2780 = vmul.f32 %v2749, 1.442695
          %v2781 = vpow.pop %v2780
          %v2782 = vadd.f32 %v2751, 1.0
          %v2783 = vadd.f32 %v2753, 1.0
          %v2784 = vadd.f32 %v2755, 1.0
          %v2785 = vadd.f32 %v2757, 1.0
          %v2786 = vadd.f32 %v2759, 1.0
          %v2787 = vadd.f32 %v2761, 1.0
          %v2788 = vadd.f32 %v2763, 1.0
          %v2789 = vadd.f32 %v2765, 1.0
          %v2790 = vadd.f32 %v2767, 1.0
          %v2791 = vadd.f32 %v2769, 1.0
          %v2792 = vadd.f32 %v2771, 1.0
          %v2793 = vadd.f32 %v2773, 1.0
          %v2794 = vadd.f32 %v2775, 1.0
          %v2795 = vadd.f32 %v2777, 1.0
          %v2796 = vadd.f32 %v2779, 1.0
          %v2797 = vadd.f32 %v2781, 1.0
          %v2798 = vrcp.pop %v2782
          %v2799 = vmul.f32 1.0, %v2798
          %v2800 = vrcp.pop %v2783
          %v2801 = vmul.f32 1.0, %v2800
          %v2802 = vrcp.pop %v2784
          %v2803 = vmul.f32 1.0, %v2802
          %v2804 = vrcp.pop %v2785
          %v2805 = vmul.f32 1.0, %v2804
          %v2806 = vrcp.pop %v2786
          %v2807 = vmul.f32 1.0, %v2806
          %v2808 = vrcp.pop %v2787
          %v2809 = vmul.f32 1.0, %v2808
          %v2810 = vrcp.pop %v2788
          %v2811 = vmul.f32 1.0, %v2810
          %v2812 = vrcp.pop %v2789
          %v2813 = vmul.f32 1.0, %v2812
          %v2814 = vrcp.pop %v2790
          %v2815 = vmul.f32 1.0, %v2814
          %v2816 = vrcp.pop %v2791
          %v2817 = vmul.f32 1.0, %v2816
          %v2818 = vrcp.pop %v2792
          %v2819 = vmul.f32 1.0, %v2818
          %v2820 = vrcp.pop %v2793
          %v2821 = vmul.f32 1.0, %v2820
          %v2822 = vrcp.pop %v2794
          %v2823 = vmul.f32 1.0, %v2822
          %v2824 = vrcp.pop %v2795
          %v2825 = vmul.f32 1.0, %v2824
          %v2826 = vrcp.pop %v2796
          %v2827 = vmul.f32 1.0, %v2826
          %v2828 = vrcp.pop %v2797
          %v2829 = vmul.f32 1.0, %v2828
          %v2830 = vtanh.pop %v2623
          %v2831 = vtanh.pop %v2625
          %v2832 = vtanh.pop %v2627
          %v2833 = vtanh.pop %v2629
          %v2834 = vtanh.pop %v2633
          %v2835 = vtanh.pop %v2635
          %v2836 = vtanh.pop %v2637
          %v2837 = vtanh.pop %v2639
          %v2838 = vtanh.pop %v2643
          %v2839 = vtanh.pop %v2645
          %v2840 = vtanh.pop %v2647
          %v2841 = vtanh.pop %v2649
          %v2842 = vtanh.pop %v2653
          %v2843 = vtanh.pop %v2655
          %v2844 = vtanh.pop %v2657
          %v2845 = vtanh.pop %v2659
          %v2846 = vxor.u32 %v2696, 2147483648
          %v2847 = vxor.u32 %v2698, 2147483648
          %v2848 = vxor.u32 %v2700, 2147483648
          %v2849 = vxor.u32 %v2702, 2147483648
          %v2850 = vxor.u32 %v2706, 2147483648
          %v2851 = vxor.u32 %v2708, 2147483648
          %v2852 = vxor.u32 %v2710, 2147483648
          %v2853 = vxor.u32 %v2712, 2147483648
          %v2854 = vxor.u32 %v2716, 2147483648
          %v2855 = vxor.u32 %v2718, 2147483648
          %v2856 = vxor.u32 %v2720, 2147483648
          %v2857 = vxor.u32 %v2722, 2147483648
          %v2858 = vxor.u32 %v2726, 2147483648
          %v2859 = vxor.u32 %v2728, 2147483648
          %v2860 = vxor.u32 %v2730, 2147483648
          %v2861 = vxor.u32 %v2732, 2147483648
          %v2862 = vmul.f32 %v2846, 1.442695
          %v2863 = vpow.pop %v2862
          %v2864 = vmul.f32 %v2847, 1.442695
          %v2865 = vpow.pop %v2864
          %v2866 = vmul.f32 %v2848, 1.442695
          %v2867 = vpow.pop %v2866
          %v2868 = vmul.f32 %v2849, 1.442695
          %v2869 = vpow.pop %v2868
          %v2870 = vmul.f32 %v2850, 1.442695
          %v2871 = vpow.pop %v2870
          %v2872 = vmul.f32 %v2851, 1.442695
          %v2873 = vpow.pop %v2872
          %v2874 = vmul.f32 %v2852, 1.442695
          %v2875 = vpow.pop %v2874
          %v2876 = vmul.f32 %v2853, 1.442695
          %v2877 = vpow.pop %v2876
          %v2878 = vmul.f32 %v2854, 1.442695
          %v2879 = vpow.pop %v2878
          %v2880 = vmul.f32 %v2855, 1.442695
          %v2881 = vpow.pop %v2880
          %v2882 = vmul.f32 %v2856, 1.442695
          %v2883 = vpow.pop %v2882
          %v2884 = vmul.f32 %v2857, 1.442695
          %v2885 = vpow.pop %v2884
          %v2886 = vmul.f32 %v2858, 1.442695
          %v2887 = vpow.pop %v2886
          %v2888 = vmul.f32 %v2859, 1.442695
          %v2889 = vpow.pop %v2888
          %v2890 = vmul.f32 %v2860, 1.442695
          %v2891 = vpow.pop %v2890
          %v2892 = vmul.f32 %v2861, 1.442695
          %v2893 = vpow.pop %v2892
          %v2894 = vadd.f32 %v2863, 1.0
          %v2895 = vadd.f32 %v2865, 1.0
          %v2896 = vadd.f32 %v2867, 1.0
          %v2897 = vadd.f32 %v2869, 1.0
          %v2898 = vadd.f32 %v2871, 1.0
          %v2899 = vadd.f32 %v2873, 1.0
          %v2900 = vadd.f32 %v2875, 1.0
          %v2901 = vadd.f32 %v2877, 1.0
          %v2902 = vadd.f32 %v2879, 1.0
          %v2903 = vadd.f32 %v2881, 1.0
          %v2904 = vadd.f32 %v2883, 1.0
          %v2905 = vadd.f32 %v2885, 1.0
          %v2906 = vadd.f32 %v2887, 1.0
          %v2907 = vadd.f32 %v2889, 1.0
          %v2908 = vadd.f32 %v2891, 1.0
          %v2909 = vadd.f32 %v2893, 1.0
          %v2910 = vrcp.pop %v2894
          %v2911 = vmul.f32 1.0, %v2910
          %v2912 = vrcp.pop %v2895
          %v2913 = vmul.f32 1.0, %v2912
          %v2914 = vrcp.pop %v2896
          %v2915 = vmul.f32 1.0, %v2914
          %v2916 = vrcp.pop %v2897
          %v2917 = vmul.f32 1.0, %v2916
          %v2918 = vrcp.pop %v2898
          %v2919 = vmul.f32 1.0, %v2918
          %v2920 = vrcp.pop %v2899
          %v2921 = vmul.f32 1.0, %v2920
          %v2922 = vrcp.pop %v2900
          %v2923 = vmul.f32 1.0, %v2922
          %v2924 = vrcp.pop %v2901
          %v2925 = vmul.f32 1.0, %v2924
          %v2926 = vrcp.pop %v2902
          %v2927 = vmul.f32 1.0, %v2926
          %v2928 = vrcp.pop %v2903
          %v2929 = vmul.f32 1.0, %v2928
          %v2930 = vrcp.pop %v2904
          %v2931 = vmul.f32 1.0, %v2930
          %v2932 = vrcp.pop %v2905
          %v2933 = vmul.f32 1.0, %v2932
          %v2934 = vrcp.pop %v2906
          %v2935 = vmul.f32 1.0, %v2934
          %v2936 = vrcp.pop %v2907
          %v2937 = vmul.f32 1.0, %v2936
          %v2938 = vrcp.pop %v2908
          %v2939 = vmul.f32 1.0, %v2938
          %v2940 = vrcp.pop %v2909
          %v2941 = vmul.f32 1.0, %v2940
          %v2942 = vmul.f32 %v2799, %v2830
          %v2943 = vmul.f32 %v2801, %v2831
          %v2944 = vmul.f32 %v2803, %v2832
          %v2945 = vmul.f32 %v2805, %v2833
          %v2946 = vmul.f32 %v2807, %v2834
          %v2947 = vmul.f32 %v2809, %v2835
          %v2948 = vmul.f32 %v2811, %v2836
          %v2949 = vmul.f32 %v2813, %v2837
          %v2950 = vmul.f32 %v2815, %v2838
          %v2951 = vmul.f32 %v2817, %v2839
          %v2952 = vmul.f32 %v2819, %v2840
          %v2953 = vmul.f32 %v2821, %v2841
          %v2954 = vmul.f32 %v2823, %v2842
          %v2955 = vmul.f32 %v2825, %v2843
          %v2956 = vmul.f32 %v2827, %v2844
          %v2957 = vmul.f32 %v2829, %v2845
          %v2958 = vtanh.pop %v2942
          %v2959 = vtanh.pop %v2943
          %v2960 = vtanh.pop %v2944
          %v2961 = vtanh.pop %v2945
          %v2962 = vtanh.pop %v2946
          %v2963 = vtanh.pop %v2947
          %v2964 = vtanh.pop %v2948
          %v2965 = vtanh.pop %v2949
          %v2966 = vtanh.pop %v2950
          %v2967 = vtanh.pop %v2951
          %v2968 = vtanh.pop %v2952
          %v2969 = vtanh.pop %v2953
          %v2970 = vtanh.pop %v2954
          %v2971 = vtanh.pop %v2955
          %v2972 = vtanh.pop %v2956
          %v2973 = vtanh.pop %v2957
          %v2974 = vmul.f32 %v2911, %v2958
          %v2975 = vmul.f32 %v2913, %v2959
          %v2976 = vmul.f32 %v2915, %v2960
          %v2977 = vmul.f32 %v2917, %v2961
          %v2978 = vmul.f32 %v2919, %v2962
          %v2979 = vmul.f32 %v2921, %v2963
          %v2980 = vmul.f32 %v2923, %v2964
          %v2981 = vmul.f32 %v2925, %v2965
          %v2982 = vmul.f32 %v2927, %v2966
          %v2983 = vmul.f32 %v2929, %v2967
          %v2984 = vmul.f32 %v2931, %v2968
          %v2985 = vmul.f32 %v2933, %v2969
          %v2986 = vmul.f32 %v2935, %v2970
          %v2987 = vmul.f32 %v2937, %v2971
          %v2988 = vmul.f32 %v2939, %v2972
          %v2989 = vmul.f32 %v2941, %v2973
          %2990 = vst [vmem:[#allocation2] sm:$0xff] %v2974
          %2991 = vst [vmem:[#allocation2 + $0x8] sm:$0xff] %v2975
          %2992 = vst [vmem:[#allocation2 + $0x10] sm:$0xff] %v2976
          %2993 = vst [vmem:[#allocation2 + $0x18] sm:$0xff] %v2977
          %2994 = vst [vmem:[#allocation2 + $0x20] sm:$0xff] %v2978
          %2995 = vst [vmem:[#allocation2 + $0x28] sm:$0xff] %v2979
          %2996 = vst [vmem:[#allocation2 + $0x30] sm:$0xff] %v2980
          %2997 = vst [vmem:[#allocation2 + $0x38] sm:$0xff] %v2981
          %2998 = vst [vmem:[#allocation2 + $0x40] sm:$0xff] %v2982
          %2999 = vst [vmem:[#allocation2 + $0x48] sm:$0xff] %v2983
          %3000 = vst [vmem:[#allocation2 + $0x50] sm:$0xff] %v2984
          %3001 = vst [vmem:[#allocation2 + $0x58] sm:$0xff] %v2985
          %3002 = vst [vmem:[#allocation2 + $0x60] sm:$0xff] %v2986
          %3003 = vst [vmem:[#allocation2 + $0x68] sm:$0xff] %v2987
          %3004 = vst [vmem:[#allocation2 + $0x70] sm:$0xff] %v2988
          %3005 = vst [vmem:[#allocation2 + $0x78] sm:$0xff] %v2989
        $region80: #{tpu_custom_call.1} parent=55 // pred_fallthru
          _
        %v3006 = vld [vmem:[#allocation2] sm:$0xff]
        %v3007 = vld [vmem:[#allocation2 + $0x8] sm:$0xff]
        %v3008 = vld [vmem:[#allocation2 + $0x10] sm:$0xff]
        %v3009 = vld [vmem:[#allocation2 + $0x18] sm:$0xff]
        %v3010 = vld [vmem:[#allocation2 + $0x20] sm:$0xff]
        %v3011 = vld [vmem:[#allocation2 + $0x28] sm:$0xff]
        %v3012 = vld [vmem:[#allocation2 + $0x30] sm:$0xff]
        %v3013 = vld [vmem:[#allocation2 + $0x38] sm:$0xff]
        %v3014 = vld [vmem:[#allocation2 + $0x40] sm:$0xff]
        %v3015 = vld [vmem:[#allocation2 + $0x48] sm:$0xff]
        %v3016 = vld [vmem:[#allocation2 + $0x50] sm:$0xff]
        %v3017 = vld [vmem:[#allocation2 + $0x58] sm:$0xff]
        %v3018 = vld [vmem:[#allocation2 + $0x60] sm:$0xff]
        %v3019 = vld [vmem:[#allocation2 + $0x68] sm:$0xff]
        %v3020 = vld [vmem:[#allocation2 + $0x70] sm:$0xff]
        %v3021 = vld [vmem:[#allocation2 + $0x78] sm:$0xff]
        %v3022 = vpack.c.bf16 %v3008, %v3006
        %v3023 = vpack.c.bf16 %v3009, %v3007
        %v3024 = vpack.c.bf16 %v3012, %v3010
        %v3025 = vpack.c.bf16 %v3013, %v3011
        %v3026 = vpack.c.bf16 %v3016, %v3014
        %v3027 = vpack.c.bf16 %v3017, %v3015
        %v3028 = vpack.c.bf16 %v3020, %v3018
        %v3029 = vpack.c.bf16 %v3021, %v3019
        %v3030 = vld [vmem:[%s414] sm:$0xf]
        %v3031 = vld [vmem:[%s414 + $0x4] sm:$0xf]
        %v3032 = vld [vmem:[%s414 + $0x8] sm:$0xf]
        %v3033 = vld [vmem:[%s414 + $0xc] sm:$0xf]
        %v3034 = vld [vmem:[%s414 + $0x10] sm:$0xf]
        %v3035 = vld [vmem:[%s414 + $0x14] sm:$0xf]
        %v3036 = vld [vmem:[%s414 + $0x18] sm:$0xf]
        %v3037 = vld [vmem:[%s414 + $0x1c] sm:$0xf]
        %v3038 = vld [vmem:[%s414 + $0x20] sm:$0xf]
        %v3039 = vld [vmem:[%s414 + $0x24] sm:$0xf]
        %v3040 = vld [vmem:[%s414 + $0x28] sm:$0xf]
        %v3041 = vld [vmem:[%s414 + $0x2c] sm:$0xf]
        %v3042 = vld [vmem:[%s414 + $0x30] sm:$0xf]
        %v3043 = vld [vmem:[%s414 + $0x34] sm:$0xf]
        %v3044 = vld [vmem:[%s414 + $0x38] sm:$0xf]
        %v3045 = vld [vmem:[%s414 + $0x3c] sm:$0xf]
        %v3046 = vld [vmem:[%s414 + $0x40] sm:$0xf]
        %v3047 = vld [vmem:[%s414 + $0x44] sm:$0xf]
        %v3048 = vld [vmem:[%s414 + $0x48] sm:$0xf]
        %v3049 = vld [vmem:[%s414 + $0x4c] sm:$0xf]
        %v3050 = vld [vmem:[%s414 + $0x50] sm:$0xf]
        %v3051 = vld [vmem:[%s414 + $0x54] sm:$0xf]
        %v3052 = vld [vmem:[%s414 + $0x58] sm:$0xf]
        %v3053 = vld [vmem:[%s414 + $0x5c] sm:$0xf]
        %v3054 = vld [vmem:[%s414 + $0x60] sm:$0xf]
        %v3055 = vld [vmem:[%s414 + $0x64] sm:$0xf]
        %v3056 = vld [vmem:[%s414 + $0x68] sm:$0xf]
        %v3057 = vld [vmem:[%s414 + $0x6c] sm:$0xf]
        %v3058 = vld [vmem:[%s414 + $0x70] sm:$0xf]
        %v3059 = vld [vmem:[%s414 + $0x74] sm:$0xf]
        %v3060 = vld [vmem:[%s414 + $0x78] sm:$0xf]
        %v3061 = vld [vmem:[%s414 + $0x7c] sm:$0xf]
        %v3062 = vld [vmem:[%s460] sm:$0x1]
        %v3064 = vlaneseq
        %v3065 = vshrl.u32 %v3064, 7
        %v3066 = vsub.s32 0, %v3065
        %v3067 = vrot.slane %v3062, %v3066
        %v3101 = vunpack.c.l.b16 %v3030
        %v3102 = vunpack.c.l.b16 %v3031
        %v3103 = vunpack.c.l.b16 %v3032
        %v3104 = vunpack.c.l.b16 %v3033
        %v3105 = vunpack.c.l.b16 %v3034
        %v3106 = vunpack.c.l.b16 %v3035
        %v3107 = vunpack.c.l.b16 %v3036
        %v3108 = vunpack.c.l.b16 %v3037
        %v3109 = vunpack.c.l.b16 %v3038
        %v3110 = vunpack.c.l.b16 %v3039
        %v3111 = vunpack.c.l.b16 %v3040
        %v3112 = vunpack.c.l.b16 %v3041
        %v3113 = vunpack.c.l.b16 %v3042
        %v3114 = vunpack.c.l.b16 %v3043
        %v3115 = vunpack.c.l.b16 %v3044
        %v3116 = vunpack.c.l.b16 %v3045
        %v3117 = vunpack.c.l.b16 %v3046
        %v3118 = vunpack.c.l.b16 %v3047
        %v3119 = vunpack.c.l.b16 %v3048
        %v3120 = vunpack.c.l.b16 %v3049
        %v3121 = vunpack.c.l.b16 %v3050
        %v3122 = vunpack.c.l.b16 %v3051
        %v3123 = vunpack.c.l.b16 %v3052
        %v3124 = vunpack.c.l.b16 %v3053
        %v3125 = vunpack.c.l.b16 %v3054
        %v3126 = vunpack.c.l.b16 %v3055
        %v3127 = vunpack.c.l.b16 %v3056
        %v3128 = vunpack.c.l.b16 %v3057
        %v3129 = vunpack.c.l.b16 %v3058
        %v3130 = vunpack.c.l.b16 %v3059
        %v3131 = vunpack.c.l.b16 %v3060
        %v3132 = vunpack.c.l.b16 %v3061
        %v3133 = vpack.c.b16 %v3102, %v3101
        %v3134 = vpack.c.b16 %v3104, %v3103
        %v3135 = vpack.c.b16 %v3106, %v3105
        %v3136 = vpack.c.b16 %v3108, %v3107
        %v3137 = vpack.c.b16 %v3110, %v3109
        %v3138 = vpack.c.b16 %v3112, %v3111
        %v3139 = vpack.c.b16 %v3114, %v3113
        %v3140 = vpack.c.b16 %v3116, %v3115
        %v3141 = vpack.c.b16 %v3118, %v3117
        %v3142 = vpack.c.b16 %v3120, %v3119
        %v3143 = vpack.c.b16 %v3122, %v3121
        %v3144 = vpack.c.b16 %v3124, %v3123
        %v3145 = vpack.c.b16 %v3126, %v3125
        %v3146 = vpack.c.b16 %v3128, %v3127
        %v3147 = vpack.c.b16 %v3130, %v3129
        %v3148 = vpack.c.b16 %v3132, %v3131
        %3165 = vmatprep.subr.bf16.mxu0 0
        %3166 = vmatpush1.bf16.msra.mxu0 %v3133
        %3167 = vmatprep.subr.bf16.mxu0 0
        %3168 = vmatpush1.bf16.msra.mxu0 %v3134
        %3169 = vmatprep.subr.bf16.mxu0 0
        %3170 = vmatpush1.bf16.msra.mxu0 %v3135
        %3171 = vmatprep.subr.bf16.mxu0 0
        %3172 = vmatpush1.bf16.msra.mxu0 %v3136
        %3173 = vmatprep.subr.bf16.mxu0 0
        %3174 = vmatpush1.bf16.msra.mxu0 %v3137
        %3175 = vmatprep.subr.bf16.mxu0 0
        %3176 = vmatpush1.bf16.msra.mxu0 %v3138
        %3177 = vmatprep.subr.bf16.mxu0 0
        %3178 = vmatpush1.bf16.msra.mxu0 %v3139
        %3179 = vmatprep.subr.bf16.mxu0 0
        %3180 = vmatpush1.bf16.msra.mxu0 %v3140
        %3181 = vmatprep.subr.bf16.mxu0 0
        %3182 = vmatpush1.bf16.msra.mxu0 %v3141
        %3183 = vmatprep.subr.bf16.mxu0 0
        %3184 = vmatpush1.bf16.msra.mxu0 %v3142
        %3185 = vmatprep.subr.bf16.mxu0 0
        %3186 = vmatpush1.bf16.msra.mxu0 %v3143
        %3187 = vmatprep.subr.bf16.mxu0 0
        %3188 = vmatpush1.bf16.msra.mxu0 %v3144
        %3189 = vmatprep.subr.bf16.mxu0 0
        %3190 = vmatpush1.bf16.msra.mxu0 %v3145
        %3191 = vmatprep.subr.bf16.mxu0 0
        %3192 = vmatpush1.bf16.msra.mxu0 %v3146
        %3193 = vmatprep.subr.bf16.mxu0 0
        %3194 = vmatpush1.bf16.msra.mxu0 %v3147
        %3195 = vmatprep.subr.bf16.mxu0 0
        %3196 = vmatpush1.bf16.msra.mxu0 %v3148
        %3197 = vmatprep.mubr.bf16.mxu0 %v3023
        %3198 = vmatmul.mubr.bf16.gmra.mrb[0].mxu0 %v3022
        %v3199 = vpop.f32.mrb[0].mxu0
        %v3200 = vadd.f32 %v3067, %v3199
        %v3201 = vpop.f32.mrb[0].mxu0
        %v3202 = vpop.f32.mrb[0].mxu0
        %v3203 = vadd.f32 %v3067, %v3202
        %v3204 = vpop.f32.mrb[0].mxu0
        %3205 = vmatprep.mubr.bf16.mxu0 %v3025
        %3206 = vmatmul.mubr.bf16.gmra.mrb[0].mxu0 %v3024
        %v3207 = vpop.f32.mrb[0].mxu0
        %v3208 = vadd.f32 %v3067, %v3207
        %v3209 = vpop.f32.mrb[0].mxu0
        %v3210 = vpop.f32.mrb[0].mxu0
        %v3211 = vadd.f32 %v3067, %v3210
        %v3212 = vpop.f32.mrb[0].mxu0
        %3213 = vmatprep.mubr.bf16.mxu0 %v3027
        %3214 = vmatmul.mubr.bf16.gmra.mrb[0].mxu0 %v3026
        %v3215 = vpop.f32.mrb[0].mxu0
        %v3216 = vadd.f32 %v3067, %v3215
        %v3217 = vpop.f32.mrb[0].mxu0
        %v3218 = vpop.f32.mrb[0].mxu0
        %v3219 = vadd.f32 %v3067, %v3218
        %v3220 = vpop.f32.mrb[0].mxu0
        %3221 = vmatprep.mubr.bf16.mxu0 %v3029
        %3222 = vmatmul.mubr.bf16.gmra.mrb[0].mxu0 %v3028
        %v3223 = vpop.f32.mrb[0].mxu0
        %v3224 = vadd.f32 %v3067, %v3223
        %v3225 = vpop.f32.mrb[0].mxu0
        %v3226 = vpop.f32.mrb[0].mxu0
        %v3227 = vadd.f32 %v3067, %v3226
        %v3228 = vpop.f32.mrb[0].mxu0
        %3229 = vdwg.mxu0
        %v3230 = vmul.f32 %v3200, 0.5
        %v3231 = vmul.f32 %v3203, 0.5
        %v3232 = vmul.f32 %v3208, 0.5
        %v3233 = vmul.f32 %v3211, 0.5
        %v3234 = vmul.f32 %v3216, 0.5
        %v3235 = vmul.f32 %v3219, 0.5
        %v3236 = vmul.f32 %v3224, 0.5
        %v3237 = vmul.f32 %v3227, 0.5
        %v3238 = vtanh.pop %v3230
        %v3239 = vtanh.pop %v3231
        %v3240 = vtanh.pop %v3232
        %v3241 = vtanh.pop %v3233
        %v3242 = vtanh.pop %v3234
        %v3243 = vtanh.pop %v3235
        %v3244 = vtanh.pop %v3236
        %v3245 = vtanh.pop %v3237
        %v3246 = vpack.c.bf16 %v3239, %v3238
        %v3247 = vpack.c.bf16 %v3241, %v3240
        %v3248 = vpack.c.bf16 %v3243, %v3242
        %v3249 = vpack.c.bf16 %v3245, %v3244
        %v3254 = vunpack.c.l.b16 %v3246
        %v3255 = vunpack.c.h.b16 %v3246
        %v3256 = vunpack.c.l.b16 %v3247
        %v3257 = vunpack.c.h.b16 %v3247
        %v3258 = vunpack.c.l.b16 %v3248
        %v3259 = vunpack.c.h.b16 %v3248
        %v3260 = vunpack.c.l.b16 %v3249
        %v3261 = vunpack.c.h.b16 %v3249
        %v3262 = vpack.c.b16 %v3254, %v3254
        %v3263 = vpack.c.b16 %v3255, %v3255
        %v3264 = vpack.c.b16 %v3256, %v3256
        %v3265 = vpack.c.b16 %v3257, %v3257
        %v3266 = vpack.c.b16 %v3258, %v3258
        %v3267 = vpack.c.b16 %v3259, %v3259
        %v3268 = vpack.c.b16 %v3260, %v3260
        %v3269 = vpack.c.b16 %v3261, %v3261
        %3278 = vst [vmem:[%s456] sm:$0xf] %v3262
        %3279 = vst [vmem:[%s456 + $0x4] sm:$0xf] %v3263
        %3280 = vst [vmem:[%s456 + $0x8] sm:$0xf] %v3264
        %3281 = vst [vmem:[%s456 + $0xc] sm:$0xf] %v3265
        %3282 = vst [vmem:[%s456 + $0x10] sm:$0xf] %v3266
        %3283 = vst [vmem:[%s456 + $0x14] sm:$0xf] %v3267
        %3284 = vst [vmem:[%s456 + $0x18] sm:$0xf] %v3268
        %3285 = vst [vmem:[%s456 + $0x1c] sm:$0xf] %v3269
        %s3286 = sand.u32 %s254, 1
        %s3287 = scalar_lea.sflag [#allocation5], %s3286
        %s3288 = sand.u32 %s254, 1
        %s3289 = smul.addr %s3288, 32
        %s3290 = scalar_lea.vmem [#allocation12], %s3289
        // Predicated region
        $region81: #{tpu_custom_call.1} parent=55 // pred_check
          %p3291 = pneg %p264
        $region82: #{tpu_custom_call.1} parent=55 // pred_check_branch
          %3293 = sbr.rel (%p3291) target = $region84
        $region83: #{tpu_custom_call.1} parent=55 // pred_region
          %s3294 = smul.u32 8, %s32
          %s3296 = ssub.s32 512, 512
          %3297 = vsyncadd %s3287, %s3296
          %s3298 = smul.addr %s3294, 2
          %s3299 = sadd.s32 %s33, %s3298
          %s3300 = smul.addr %s3299, 64
          %s3301 = scalar_lea.hbm %s9, %s3300
          %s3302 = sshll.u32 %s3290, 4
          %s3303 = int_to_ptr.vmem [resolvable:$true] %s3302
          %3308 = dma.vmem_to_hbm [thread:$0]  %s3303, 512, %s3301, %s3287, 64, 128, 4
        $region84: #{tpu_custom_call.1} parent=55 // pred_fallthru
          _
      $region56: #{tpu_custom_call.1} parent=5 // pred_fallthru
        _
      %p3309 = scmp.le.s32.totalorder 2, %s23
      // Predicated region
      $region85: #{tpu_custom_call.1} parent=5 // pred_check
        %p3310 = pneg %p3309
      $region86: #{tpu_custom_call.1} parent=5 // pred_check_branch
        %3312 = sbr.rel (%p3310) target = $region88
      $region87: #{tpu_custom_call.1} parent=5 // pred_region
        %s3313 = ssub.s32 %s23, 2
        // Predicated region
        $region89: #{tpu_custom_call.1} parent=87 // pred_check
          %p3314 = pneg %p270
        $region90: #{tpu_custom_call.1} parent=87 // pred_check_branch
          %3316 = sbr.rel (%p3314) target = $region92
        $region91: #{tpu_custom_call.1} parent=87 // pred_region
          %s3317 = sand.u32 %s255, 1
          %s3318 = scalar_lea.sflag [#allocation5], %s3317
          %s3319 = sand.u32 %s255, 1
          %s3320 = smul.addr %s3319, 32
          %s3321 = scalar_lea.vmem [#allocation12], %s3320
          %3322 = dma.done %s3318, 512
        $region92: #{tpu_custom_call.1} parent=87 // pred_fallthru
          _
      $region88: #{tpu_custom_call.1} parent=5 // pred_fallthru
        _
    $region6: #{tpu_custom_call.1} parent=1 // loop_footer
      %s27 = sadd.s32 1, %s23
    $region7: #{tpu_custom_call.1} parent=1 // loop_footer_branch
      %22 = sbr.rel target = $region3
    $region8: #{tpu_custom_call.1} parent=1 // loop_exit
      _
    %3323 = vsyncpa [#allocation4], 1
    %s3324 = scalar_lea.sflag [#allocation4], 1
    %3325 = vsyncpa %s3324, 1
    %3326 = vsyncpa [#allocation7], 1
    %3327 = vsyncpa [#allocation10], 1
    %3328 = vsyncpa [#allocation5], 1
    %s3329 = scalar_lea.sflag [#allocation5], 1
    %3330 = vsyncpa %s3329, 1

</llo_original>
